<compile_context>
chip_gen: v6e
topology: v6e:2x2x1
jax: 0.10.0
libtpu: 0.0.40
codegen_flags: <defaults>
</compile_context>

<pallas_src>
import functools

import jax
import jax.numpy as jnp
from jax import lax
from jax.experimental import pallas as pl
from jax.experimental.pallas import tpu as pltpu


def _const_map(ndim):
    return lambda *_: (0,) * ndim


# ----------------------------------------------------------------------------
# Shared LSTM cell math (PyTorch gate order: i, f, g, o)
# ----------------------------------------------------------------------------
def _lstm_step(x, h, c, wih_t, whh_t, b, H):
    gates = (jnp.dot(x, wih_t, preferred_element_type=jnp.float32)
             + jnp.dot(h, whh_t, preferred_element_type=jnp.float32)
             + b)                                    # (B, 4H)
    i = jax.nn.sigmoid(gates[:, 0 * H:1 * H])
    f = jax.nn.sigmoid(gates[:, 1 * H:2 * H])
    g = jnp.tanh(gates[:, 2 * H:3 * H])
    o = jax.nn.sigmoid(gates[:, 3 * H:4 * H])
    c_new = f * c + i * g
    h_new = o * jnp.tanh(c_new)
    return h_new, c_new


# ----------------------------------------------------------------------------
# Kernel 1: bidirectional LSTM encoder (single invocation, in-kernel time loop)
# ----------------------------------------------------------------------------
def encoder_kernel(emb_ref, wih_f_ref, whh_f_ref, b_f_ref,
                   wih_b_ref, whh_b_ref, b_b_ref,
                   out_f_ref, out_b_ref, *, S, H):
    B = emb_ref.shape[1]
    # weights loaded once, reused by every unrolled iteration
    wih_f = wih_f_ref[...]; whh_f = whh_f_ref[...]; b_f = b_f_ref[...]
    wih_b = wih_b_ref[...]; whh_b = whh_b_ref[...]; b_b = b_b_ref[...]

    def body(t, carry):
        hf, cf, hb, cb = carry
        hf, cf = _lstm_step(emb_ref[t], hf, cf, wih_f, whh_f, b_f, H)
        hb, cb = _lstm_step(emb_ref[S - 1 - t], hb, cb, wih_b, whh_b, b_b, H)
        out_f_ref[t] = hf
        out_b_ref[S - 1 - t] = hb
        return hf, cf, hb, cb

    z = jnp.zeros((B, H), jnp.float32)
    lax.fori_loop(0, S, body, (z, z, z, z), unroll=True)


def bilstm_encode(emb_x_tm, p, H):
    """emb_x_tm: (S, B, E) time-major embeddings. Returns (out_f, out_b), each (S, B, H)."""
    S, B, E = emb_x_tm.shape
    args = (
        emb_x_tm,
        p["enc_wih_f"].T, p["enc_whh_f"].T, p["enc_b_f"].reshape(1, -1),
        p["enc_wih_b"].T, p["enc_whh_b"].T, p["enc_b_b"].reshape(1, -1),
    )
    in_specs = [pl.BlockSpec(a.shape, _const_map(a.ndim)) for a in args]
    out_f, out_b = pl.pallas_call(
        functools.partial(encoder_kernel, S=S, H=H),
        grid=(1,),
        in_specs=in_specs,
        out_specs=[pl.BlockSpec((S, B, H), lambda i: (0, 0, 0))] * 2,
        out_shape=[jax.ShapeDtypeStruct((S, B, H), jnp.float32)] * 2,
        compiler_params=pltpu.CompilerParams(dimension_semantics=("arbitrary",)),
    )(*args)
    return out_f, out_b


# ----------------------------------------------------------------------------
# Kernel 2: decoder LSTM recurrence only (emits all hidden states)
# ----------------------------------------------------------------------------
def decoder_lstm_kernel(x_ref, wih_ref, whh_ref, b_ref, h_out_ref, *, T, H):
    B = x_ref.shape[1]
    wih = wih_ref[...]; whh = whh_ref[...]; b = b_ref[...]

    def body(i, carry):
        h, c = carry
        h, c = _lstm_step(x_ref[i], h, c, wih, whh, b, H)
        h_out_ref[i] = h
        return h, c

    z = jnp.zeros((B, H), jnp.float32)   # PyTorch LSTM default zero init state
    lax.fori_loop(0, T, body, (z, z), unroll=True)


def decoder_lstm(dec_in_tm, p, H):
    """dec_in_tm: (T-1, B, E).  Returns all decoder hidden states (T-1, B, H)."""
    T, B, E = dec_in_tm.shape
    args = (dec_in_tm, p["dec_wih"].T, p["dec_whh"].T, p["dec_b"].reshape(1, -1))
    in_specs = [pl.BlockSpec(a.shape, _const_map(a.ndim)) for a in args]
    return pl.pallas_call(
        functools.partial(decoder_lstm_kernel, T=T, H=H),
        grid=(1,),
        in_specs=in_specs,
        out_specs=pl.BlockSpec((T, B, H), lambda i: (0, 0, 0)),
        out_shape=jax.ShapeDtypeStruct((T, B, H), jnp.float32),
        compiler_params=pltpu.CompilerParams(dimension_semantics=("arbitrary",)),
    )(*args)


# ----------------------------------------------------------------------------
# Kernel 3: attention + V1/V2 + softmax, batched over all decode steps
# ----------------------------------------------------------------------------
def attn_output_kernel(h_ref, enc_ref, alias_ref,
                       wh_w_ref, wh_b_ref, ws_w_ref, ws_b_ref, v_w_ref,
                       v1h_ref, v1c_ref, v1_b_ref, v2_w_ref, v2_b_ref,
                       vb_ref, out_ref, *, H):
    # h_ref:   (B, T, H)   all decoder hidden states (batch-major)
    # enc_ref: (B, L, 2H)  encoder outputs
    # alias_ref: (B, B, L) one-hot reproducing torch `.repeat(input_len, 1)`
    B, T, _ = h_ref.shape
    L = enc_ref.shape[1]
    v_w = v_w_ref[...]                    # (1, H)
    v_b = vb_ref[0, 0]                    # scalar from SMEM

    # --- encoder-side attention projection: loop-invariant, computed ONCE ---
    enc = enc_ref[...]                                            # (B, L, 2H)
    wh = jnp.dot(enc.reshape(B * L, 2 * H), wh_w_ref[...],
                 preferred_element_type=jnp.float32) + wh_b_ref[...]          # (B*L, H)
    wh_score = jnp.sum(wh.reshape(B, L, H) * v_w.reshape(1, 1, H), axis=-1)   # (B, L)

    alias = alias_ref[...]                                        # (B, B, L)

    # --- decoder-side projection, all T steps of a batch row at once --------
    ws_scores = []
    for bp in range(B):
        ws_bp = jnp.dot(h_ref[bp], ws_w_ref[...],
                        preferred_element_type=jnp.float32) + ws_b_ref[...]   # (T, H)
        ws_scores.append(jnp.sum(ws_bp * v_w, axis=-1, keepdims=True))        # (T, 1)

    # --- per batch row: scores, softmax, context, V1/V2, vocab softmax ------
    # TODO(synk): for larger batch sizes, flatten (B, T) into one M dimension.
    for b in range(B):
        # torch `.repeat(L, 1)` aliasing: flat row b*L+l pairs with the decoder
        # state of batch (b*L + l) % B; alias one-hot precomputed in the wrapper.
        ws_rep = jnp.zeros((T, L), jnp.float32)
        for bp in range(B):
            ws_rep = ws_rep + alias[bp, b:b + 1, :] * ws_scores[bp]           # (1,L)*(T,1)
        scores = wh_score[b:b + 1, :] + ws_rep + v_b                          # (T, L)

        # attention softmax over input positions (EUP reciprocal)
        scores = scores - jnp.max(scores, axis=-1, keepdims=True)
        e = jnp.exp(scores)
        attn = e * pl.reciprocal(jnp.sum(e, axis=-1, keepdims=True), approx=True)

        # context on the MXU: (T, L) @ (L, 2H)
        ctx = jnp.dot(attn, enc_ref[b], preferred_element_type=jnp.float32)   # (T, 2H)

        # V1 applied as two dots (no lane concat), then V2
        v1 = (jnp.dot(h_ref[b], v1h_ref[...], preferred_element_type=jnp.float32)
              + jnp.dot(ctx, v1c_ref[...], preferred_element_type=jnp.float32)
              + v1_b_ref[...])                                                # (T, 3H)
        v2 = jnp.dot(v1, v2_w_ref[...],
                     preferred_element_type=jnp.float32) + v2_b_ref[...]      # (T, W)

        # output softmax over vocab; exact divide keeps the 1e-3 parity check
        v2 = v2 - jnp.max(v2, axis=-1, keepdims=True)
        ev = jnp.exp(v2)
        out_ref[b] = ev / jnp.sum(ev, axis=-1, keepdims=True)


def attention_output(h_all_bm, encoded, p, H):
    """h_all_bm: (B, T-1, H), encoded: (B, L, 2H).  Returns probs (B, T-1, W)."""
    B, T, _ = h_all_bm.shape
    L = encoded.shape[1]
    W = p["V2_w"].shape[0]

    # one-hot mask reproducing the PyTorch `.repeat(input_len, 1)` row aliasing
    b_i = jnp.arange(B, dtype=jnp.int32)[:, None]
    l_i = jnp.arange(L, dtype=jnp.int32)[None, :]
    src = (b_i * L + l_i) % B                                            # (B, L)
    alias_mask = (jnp.arange(B, dtype=jnp.int32)[:, None, None]
                  == src[None]).astype(jnp.float32)                      # (B, B, L)

    v1t = p["V1_w"].T
    args = (
        h_all_bm, encoded, alias_mask,
        p["Wh_w"].T, p["Wh_b"].reshape(1, -1),
        p["Ws_w"].T, p["Ws_b"].reshape(1, -1),
        p["v_w"],
        v1t[:H], v1t[H:], p["V1_b"].reshape(1, -1),
        p["V2_w"].T, p["V2_b"].reshape(1, -1),
    )
    in_specs = [pl.BlockSpec(a.shape, _const_map(a.ndim)) for a in args]
    # scalar v_b goes through SMEM (scalar path) instead of a padded VMEM tile
    in_specs.append(pl.BlockSpec((1, 1), lambda i: (0, 0),
                                 memory_space=pltpu.MemorySpace.SMEM))

    return pl.pallas_call(
        functools.partial(attn_output_kernel, H=H),
        grid=(1,),
        in_specs=in_specs,
        out_specs=pl.BlockSpec((B, T, W), lambda i: (0, 0, 0)),
        out_shape=jax.ShapeDtypeStruct((B, T, W), jnp.float32),
        compiler_params=pltpu.CompilerParams(dimension_semantics=("arbitrary",)),
    )(*args, p["v_b"].reshape(1, 1))


# ----------------------------------------------------------------------------
# Full forward (train=True path of Model.forward, teacher forcing)
# ----------------------------------------------------------------------------
def model_forward(inputs, target, p):
    # TODO(synk): only the train=True (teacher forcing) branch is implemented.
    H = p["enc_whh_f"].shape[1]

    # embedding gathers + layout glue (XLA)
    emb_x_tm = jnp.transpose(p["embed"][inputs], (1, 0, 2))              # (S, B, E)
    out_f, out_b = bilstm_encode(emb_x_tm, p, H)                         # (S, B, H) x2
    encoded = jnp.transpose(jnp.concatenate([out_f, out_b], -1),
                            (1, 0, 2))                                   # (B, S, 2H)

    dec_in_tm = jnp.transpose(p["embed"][target[:, :-1]], (1, 0, 2))     # (T-1, B, E)
    h_all_tm = decoder_lstm(dec_in_tm, p, H)                             # (T-1, B, H)
    h_all_bm = jnp.transpose(h_all_tm, (1, 0, 2))                        # (B, T-1, H)

    return attention_output(h_all_bm, encoded, p, H)                     # (B, T-1, W)


# ----------------------------------------------------------------------------
# Pure-JAX reference (direct transcription of the PyTorch forward)
# ----------------------------------------------------------------------------
def reference_forward(inputs, target, p):
    H = p["enc_whh_f"].shape[1]
    emb = p["embed"][inputs]
    B, S, E = emb.shape

    def cell(x, h, c, wih, whh, b):
        g = x @ wih.T + h @ whh.T + b
        i = jax.nn.sigmoid(g[:, :H]); f = jax.nn.sigmoid(g[:, H:2 * H])
        gg = jnp.tanh(g[:, 2 * H:3 * H]); o = jax.nn.sigmoid(g[:, 3 * H:])
        c = f * c + i * gg
        return o * jnp.tanh(c), c

    hf = jnp.zeros((B, H)); cf = jnp.zeros((B, H)); outs_f = []
    for t in range(S):
        hf, cf = cell(emb[:, t], hf, cf, p["enc_wih_f"], p["enc_whh_f"], p["enc_b_f"])
        outs_f.append(hf)
    hb = jnp.zeros((B, H)); cb = jnp.zeros((B, H)); outs_b = [None] * S
    for t in range(S - 1, -1, -1):
        hb, cb = cell(emb[:, t], hb, cb, p["enc_wih_b"], p["enc_whh_b"], p["enc_b_b"])
        outs_b[t] = hb
    encoded = jnp.concatenate([jnp.stack(outs_f, 1), jnp.stack(outs_b, 1)], -1)  # (B, S, 2H)

    T = target.shape[1]
    h = jnp.zeros((B, H)); c = jnp.zeros((B, H)); outs = []
    for i in range(T - 1):
        x = p["embed"][target[:, i]]
        h, c = cell(x, h, c, p["dec_wih"], p["dec_whh"], p["dec_b"])
        enc_flat = encoded.reshape(B * S, 2 * H)
        attn1 = (enc_flat @ p["Wh_w"].T + p["Wh_b"]
                 + jnp.tile(h @ p["Ws_w"].T + p["Ws_b"], (S, 1)))   # == torch .repeat(S, 1)
        attn2 = attn1 @ p["v_w"].T + p["v_b"]
        attn = jax.nn.softmax(attn2.reshape(B, S), axis=1)
        context = jnp.einsum("bl,bld->bd", attn, encoded)
        cat = jnp.concatenate([h, context], -1)
        v2 = (cat @ p["V1_w"].T + p["V1_b"]) @ p["V2_w"].T + p["V2_b"]
        outs.append(jax.nn.softmax(v2, axis=1))
    return jnp.stack(outs, 1)


# ----------------------------------------------------------------------------
# Deterministic parameter init (shapes from Model.__init__; small scale)
# ----------------------------------------------------------------------------
def init_params(key, word_count, art_len, emb_dim, hidden_dim):
    keys = iter(jax.random.split(key, 32))

    def rnd(shape, scale=0.1):
        return jax.random.normal(next(keys), shape, dtype=jnp.float32) * scale

    H, E = hidden_dim, emb_dim
    return {
        "embed": rnd((word_count, E)),
        # encoder biLSTM (b_ih + b_hh fused into one bias per direction)
        "enc_wih_f": rnd((4 * H, E)), "enc_whh_f": rnd((4 * H, H)),
        "enc_b_f": rnd((4 * H,)) + rnd((4 * H,)),
        "enc_wih_b": rnd((4 * H, E)), "enc_whh_b": rnd((4 * H, H)),
        "enc_b_b": rnd((4 * H,)) + rnd((4 * H,)),
        # decoder LSTM
        "dec_wih": rnd((4 * H, E)), "dec_whh": rnd((4 * H, H)),
        "dec_b": rnd((4 * H,)) + rnd((4 * H,)),
        # attention / output heads (Wc, wh, ws, wx exist in __init__ but are
        # unused by forward(), so they are not materialized here)
        "Wh_w": rnd((H, 2 * H)), "Wh_b": rnd((H,)),
        "Ws_w": rnd((H, H)), "Ws_b": rnd((H,)),
        "v_w": rnd((1, H)), "v_b": rnd((1,)),
        "V1_w": rnd((3 * H, 3 * H)), "V1_b": rnd((3 * H,)),
        "V2_w": rnd((word_count, 3 * H)), "V2_b": rnd((word_count,)),
    }


if __name__ == "__main__":
    B, S, T = 2, 8, 6          # batch, article length (art_len), target length
    E, H = 16, 32              # emb_dim, hidden_dim
    WORD_COUNT = 64

    key = jax.random.PRNGKey(0)
    k_p, k_in, k_tg = jax.random.split(key, 3)
    params = init_params(k_p, WORD_COUNT, S, E, H)

    inputs = jax.random.randint(k_in, (B, S), 0, WORD_COUNT, dtype=jnp.int32)
    target = jax.random.randint(k_tg, (B, T), 0, WORD_COUNT, dtype=jnp.int32)

    out = model_forward(inputs, target, params)
    out = jax.block_until_ready(out)

    assert out.shape == (B, T - 1, WORD_COUNT), out.shape
    ref = reference_forward(inputs, target, params)
    err = float(jnp.max(jnp.abs(out - ref)))
    assert err < 1e-3, f"mismatch vs reference: {err}"

    print("KERNEL_OK")
</pallas_src>

<mosaic_0001>
module attributes {stable_mosaic.version = 11 : i64} {
  func.func @encoder_kernel(%arg0: i32, %arg1: memref<8x2x16xf32, #tpu.memory_space<vmem>>, %arg2: memref<16x128xf32, #tpu.memory_space<vmem>>, %arg3: memref<32x128xf32, #tpu.memory_space<vmem>>, %arg4: memref<1x128xf32, #tpu.memory_space<vmem>>, %arg5: memref<16x128xf32, #tpu.memory_space<vmem>>, %arg6: memref<32x128xf32, #tpu.memory_space<vmem>>, %arg7: memref<1x128xf32, #tpu.memory_space<vmem>>, %arg8: memref<8x2x32xf32, #tpu.memory_space<vmem>>, %arg9: memref<8x2x32xf32, #tpu.memory_space<vmem>>) attributes {dimension_semantics = [#tpu.dimension_semantics<arbitrary>], iteration_bounds = array<i64: 1>, scalar_prefetch = 0 : i64, scratch_operands = 0 : i64, tpu.core_type = #tpu.core_type<tc>, window_params = [{pipeline_mode = #tpu.pipeline_mode<synchronous>, transform_indices = @transform_0, window_bounds = array<i64: 8, 2, 16>}, {pipeline_mode = #tpu.pipeline_mode<synchronous>, transform_indices = @transform_1, window_bounds = array<i64: 16, 128>}, {pipeline_mode = #tpu.pipeline_mode<synchronous>, transform_indices = @transform_2, window_bounds = array<i64: 32, 128>}, {pipeline_mode = #tpu.pipeline_mode<synchronous>, transform_indices = @transform_3, window_bounds = array<i64: 1, 128>}, {pipeline_mode = #tpu.pipeline_mode<synchronous>, transform_indices = @transform_4, window_bounds = array<i64: 16, 128>}, {pipeline_mode = #tpu.pipeline_mode<synchronous>, transform_indices = @transform_5, window_bounds = array<i64: 32, 128>}, {pipeline_mode = #tpu.pipeline_mode<synchronous>, transform_indices = @transform_6, window_bounds = array<i64: 1, 128>}, {pipeline_mode = #tpu.pipeline_mode<synchronous>, transform_indices = @transform_7, window_bounds = array<i64: 8, 2, 32>}, {pipeline_mode = #tpu.pipeline_mode<synchronous>, transform_indices = @transform_8, window_bounds = array<i64: 8, 2, 32>}]} {
    %c0 = arith.constant 0 : index
    %c0_0 = arith.constant 0 : index
    %0 = vector.load %arg2[%c0, %c0_0] : memref<16x128xf32, #tpu.memory_space<vmem>>, vector<16x128xf32>
    %c0_1 = arith.constant 0 : index
    %c0_2 = arith.constant 0 : index
    %1 = vector.load %arg3[%c0_1, %c0_2] : memref<32x128xf32, #tpu.memory_space<vmem>>, vector<32x128xf32>
    %c0_3 = arith.constant 0 : index
    %c0_4 = arith.constant 0 : index
    %2 = vector.load %arg4[%c0_3, %c0_4] : memref<1x128xf32, #tpu.memory_space<vmem>>, vector<1x128xf32>
    %c0_5 = arith.constant 0 : index
    %c0_6 = arith.constant 0 : index
    %3 = vector.load %arg5[%c0_5, %c0_6] : memref<16x128xf32, #tpu.memory_space<vmem>>, vector<16x128xf32>
    %c0_7 = arith.constant 0 : index
    %c0_8 = arith.constant 0 : index
    %4 = vector.load %arg6[%c0_7, %c0_8] : memref<32x128xf32, #tpu.memory_space<vmem>>, vector<32x128xf32>
    %c0_9 = arith.constant 0 : index
    %c0_10 = arith.constant 0 : index
    %5 = vector.load %arg7[%c0_9, %c0_10] : memref<1x128xf32, #tpu.memory_space<vmem>>, vector<1x128xf32>
    %cst = arith.constant 0.000000e+00 : f32
    %6 = vector.broadcast %cst : f32 to vector<2x32xf32>
    %c0_i32 = arith.constant 0 : i32
    %7 = arith.index_cast %c0_i32 : i32 to index
    %c0_11 = arith.constant 0 : index
    %c0_12 = arith.constant 0 : index
    %8 = vector.load %arg1[%7, %c0_11, %c0_12] : memref<8x2x16xf32, #tpu.memory_space<vmem>>, vector<1x2x16xf32>
    %9 = vector.shape_cast %8 : vector<1x2x16xf32> to vector<2x16xf32>
    %cst_13 = arith.constant dense<0.000000e+00> : vector<2x128xf32>
    %10 = tpu.matmul %9, %0, %cst_13 {dimension_numbers = #tpu.dot_dimension_numbers<[1], [0], [0], [1], [0, 0, 1, 1], [], []>} : vector<2x16xf32>, vector<16x128xf32>, vector<2x128xf32> -> vector<2x128xf32>
    %cst_14 = arith.constant dense<0.000000e+00> : vector<2x128xf32>
    %11 = tpu.matmul %6, %1, %cst_14 {dimension_numbers = #tpu.dot_dimension_numbers<[1], [0], [0], [1], [0, 0, 1, 1], [], []>} : vector<2x32xf32>, vector<32x128xf32>, vector<2x128xf32> -> vector<2x128xf32>
    %12 = arith.addf %10, %11 : vector<2x128xf32>
    %13 = vector.broadcast %2 : vector<1x128xf32> to vector<2x128xf32>
    %14 = arith.addf %12, %13 : vector<2x128xf32>
    %15 = vector.extract_strided_slice %14 {offsets = [0, 0], sizes = [2, 32], strides = [1, 1]} : vector<2x128xf32> to vector<2x32xf32>
    %16 = arith.negf %15 : vector<2x32xf32>
    %17 = math.exp %16 : vector<2x32xf32>
    %cst_15 = arith.constant 1.000000e+00 : f32
    %18 = vector.broadcast %cst_15 : f32 to vector<2x32xf32>
    %19 = arith.addf %18, %17 : vector<2x32xf32>
    %20 = arith.divf %18, %19 : vector<2x32xf32>
    %21 = vector.extract_strided_slice %14 {offsets = [0, 32], sizes = [2, 32], strides = [1, 1]} : vector<2x128xf32> to vector<2x32xf32>
    %22 = arith.negf %21 : vector<2x32xf32>
    %23 = math.exp %22 : vector<2x32xf32>
    %cst_16 = arith.constant 1.000000e+00 : f32
    %24 = vector.broadcast %cst_16 : f32 to vector<2x32xf32>
    %25 = arith.addf %24, %23 : vector<2x32xf32>
    %26 = arith.divf %24, %25 : vector<2x32xf32>
    %27 = vector.extract_strided_slice %14 {offsets = [0, 64], sizes = [2, 32], strides = [1, 1]} : vector<2x128xf32> to vector<2x32xf32>
    %28 = math.tanh %27 : vector<2x32xf32>
    %29 = vector.extract_strided_slice %14 {offsets = [0, 96], sizes = [2, 32], strides = [1, 1]} : vector<2x128xf32> to vector<2x32xf32>
    %30 = arith.negf %29 : vector<2x32xf32>
    %31 = math.exp %30 : vector<2x32xf32>
    %cst_17 = arith.constant 1.000000e+00 : f32
    %32 = vector.broadcast %cst_17 : f32 to vector<2x32xf32>
    %33 = arith.addf %32, %31 : vector<2x32xf32>
    %34 = arith.divf %32, %33 : vector<2x32xf32>
    %35 = arith.mulf %26, %6 : vector<2x32xf32>
    %36 = arith.mulf %20, %28 : vector<2x32xf32>
    %37 = arith.addf %35, %36 : vector<2x32xf32>
    %38 = math.tanh %37 : vector<2x32xf32>
    %39 = arith.mulf %34, %38 : vector<2x32xf32>
    %c7_i32 = arith.constant 7 : i32
    %40 = arith.subi %c7_i32, %c0_i32 : i32
    %41 = arith.index_cast %40 : i32 to index
    %c0_18 = arith.constant 0 : index
    %c0_19 = arith.constant 0 : index
    %42 = vector.load %arg1[%41, %c0_18, %c0_19] : memref<8x2x16xf32, #tpu.memory_space<vmem>>, vector<1x2x16xf32>
    %43 = vector.shape_cast %42 : vector<1x2x16xf32> to vector<2x16xf32>
    %cst_20 = arith.constant dense<0.000000e+00> : vector<2x128xf32>
    %44 = tpu.matmul %43, %3, %cst_20 {dimension_numbers = #tpu.dot_dimension_numbers<[1], [0], [0], [1], [0, 0, 1, 1], [], []>} : vector<2x16xf32>, vector<16x128xf32>, vector<2x128xf32> -> vector<2x128xf32>
    %cst_21 = arith.constant dense<0.000000e+00> : vector<2x128xf32>
    %45 = tpu.matmul %6, %4, %cst_21 {dimension_numbers = #tpu.dot_dimension_numbers<[1], [0], [0], [1], [0, 0, 1, 1], [], []>} : vector<2x32xf32>, vector<32x128xf32>, vector<2x128xf32> -> vector<2x128xf32>
    %46 = arith.addf %44, %45 : vector<2x128xf32>
    %47 = vector.broadcast %5 : vector<1x128xf32> to vector<2x128xf32>
    %48 = arith.addf %46, %47 : vector<2x128xf32>
    %49 = vector.extract_strided_slice %48 {offsets = [0, 0], sizes = [2, 32], strides = [1, 1]} : vector<2x128xf32> to vector<2x32xf32>
    %50 = arith.negf %49 : vector<2x32xf32>
    %51 = math.exp %50 : vector<2x32xf32>
    %cst_22 = arith.constant 1.000000e+00 : f32
    %52 = vector.broadcast %cst_22 : f32 to vector<2x32xf32>
    %53 = arith.addf %52, %51 : vector<2x32xf32>
    %54 = arith.divf %52, %53 : vector<2x32xf32>
    %55 = vector.extract_strided_slice %48 {offsets = [0, 32], sizes = [2, 32], strides = [1, 1]} : vector<2x128xf32> to vector<2x32xf32>
    %56 = arith.negf %55 : vector<2x32xf32>
    %57 = math.exp %56 : vector<2x32xf32>
    %cst_23 = arith.constant 1.000000e+00 : f32
    %58 = vector.broadcast %cst_23 : f32 to vector<2x32xf32>
    %59 = arith.addf %58, %57 : vector<2x32xf32>
    %60 = arith.divf %58, %59 : vector<2x32xf32>
    %61 = vector.extract_strided_slice %48 {offsets = [0, 64], sizes = [2, 32], strides = [1, 1]} : vector<2x128xf32> to vector<2x32xf32>
    %62 = math.tanh %61 : vector<2x32xf32>
    %63 = vector.extract_strided_slice %48 {offsets = [0, 96], sizes = [2, 32], strides = [1, 1]} : vector<2x128xf32> to vector<2x32xf32>
    %64 = arith.negf %63 : vector<2x32xf32>
    %65 = math.exp %64 : vector<2x32xf32>
    %cst_24 = arith.constant 1.000000e+00 : f32
    %66 = vector.broadcast %cst_24 : f32 to vector<2x32xf32>
    %67 = arith.addf %66, %65 : vector<2x32xf32>
    %68 = arith.divf %66, %67 : vector<2x32xf32>
    %69 = arith.mulf %60, %6 : vector<2x32xf32>
    %70 = arith.mulf %54, %62 : vector<2x32xf32>
    %71 = arith.addf %69, %70 : vector<2x32xf32>
    %72 = math.tanh %71 : vector<2x32xf32>
    %73 = arith.mulf %68, %72 : vector<2x32xf32>
    %74 = arith.index_cast %c0_i32 : i32 to index
    %c0_25 = arith.constant 0 : index
    %c0_26 = arith.constant 0 : index
    %75 = vector.load %arg8[%74, %c0_25, %c0_26] : memref<8x2x32xf32, #tpu.memory_space<vmem>>, vector<1x2x32xf32>
    %76 = vector.shape_cast %75 : vector<1x2x32xf32> to vector<2x32xf32>
    %77 = vector.shape_cast %39 : vector<2x32xf32> to vector<1x2x32xf32>
    tpu.vector_store %arg8[%74, %c0_25, %c0_26], %77 {strides = array<i32>} : memref<8x2x32xf32, #tpu.memory_space<vmem>>, vector<1x2x32xf32>,
    %c7_i32_27 = arith.constant 7 : i32
    %78 = arith.subi %c7_i32_27, %c0_i32 : i32
    %79 = arith.index_cast %78 : i32 to index
    %c0_28 = arith.constant 0 : index
    %c0_29 = arith.constant 0 : index
    %80 = vector.load %arg9[%79, %c0_28, %c0_29] : memref<8x2x32xf32, #tpu.memory_space<vmem>>, vector<1x2x32xf32>
    %81 = vector.shape_cast %80 : vector<1x2x32xf32> to vector<2x32xf32>
    %82 = vector.shape_cast %73 : vector<2x32xf32> to vector<1x2x32xf32>
    tpu.vector_store %arg9[%79, %c0_28, %c0_29], %82 {strides = array<i32>} : memref<8x2x32xf32, #tpu.memory_space<vmem>>, vector<1x2x32xf32>,
    %c1_i32 = arith.constant 1 : i32
    %83 = arith.index_cast %c1_i32 : i32 to index
    %c0_30 = arith.constant 0 : index
    %c0_31 = arith.constant 0 : index
    %84 = vector.load %arg1[%83, %c0_30, %c0_31] : memref<8x2x16xf32, #tpu.memory_space<vmem>>, vector<1x2x16xf32>
    %85 = vector.shape_cast %84 : vector<1x2x16xf32> to vector<2x16xf32>
    %cst_32 = arith.constant dense<0.000000e+00> : vector<2x128xf32>
    %86 = tpu.matmul %85, %0, %cst_32 {dimension_numbers = #tpu.dot_dimension_numbers<[1], [0], [0], [1], [0, 0, 1, 1], [], []>} : vector<2x16xf32>, vector<16x128xf32>, vector<2x128xf32> -> vector<2x128xf32>
    %cst_33 = arith.constant dense<0.000000e+00> : vector<2x128xf32>
    %87 = tpu.matmul %39, %1, %cst_33 {dimension_numbers = #tpu.dot_dimension_numbers<[1], [0], [0], [1], [0, 0, 1, 1], [], []>} : vector<2x32xf32>, vector<32x128xf32>, vector<2x128xf32> -> vector<2x128xf32>
    %88 = arith.addf %86, %87 : vector<2x128xf32>
    %89 = vector.broadcast %2 : vector<1x128xf32> to vector<2x128xf32>
    %90 = arith.addf %88, %89 : vector<2x128xf32>
    %91 = vector.extract_strided_slice %90 {offsets = [0, 0], sizes = [2, 32], strides = [1, 1]} : vector<2x128xf32> to vector<2x32xf32>
    %92 = arith.negf %91 : vector<2x32xf32>
    %93 = math.exp %92 : vector<2x32xf32>
    %cst_34 = arith.constant 1.000000e+00 : f32
    %94 = vector.broadcast %cst_34 : f32 to vector<2x32xf32>
    %95 = arith.addf %94, %93 : vector<2x32xf32>
    %96 = arith.divf %94, %95 : vector<2x32xf32>
    %97 = vector.extract_strided_slice %90 {offsets = [0, 32], sizes = [2, 32], strides = [1, 1]} : vector<2x128xf32> to vector<2x32xf32>
    %98 = arith.negf %97 : vector<2x32xf32>
    %99 = math.exp %98 : vector<2x32xf32>
    %cst_35 = arith.constant 1.000000e+00 : f32
    %100 = vector.broadcast %cst_35 : f32 to vector<2x32xf32>
    %101 = arith.addf %100, %99 : vector<2x32xf32>
    %102 = arith.divf %100, %101 : vector<2x32xf32>
    %103 = vector.extract_strided_slice %90 {offsets = [0, 64], sizes = [2, 32], strides = [1, 1]} : vector<2x128xf32> to vector<2x32xf32>
    %104 = math.tanh %103 : vector<2x32xf32>
    %105 = vector.extract_strided_slice %90 {offsets = [0, 96], sizes = [2, 32], strides = [1, 1]} : vector<2x128xf32> to vector<2x32xf32>
    %106 = arith.negf %105 : vector<2x32xf32>
    %107 = math.exp %106 : vector<2x32xf32>
    %cst_36 = arith.constant 1.000000e+00 : f32
    %108 = vector.broadcast %cst_36 : f32 to vector<2x32xf32>
    %109 = arith.addf %108, %107 : vector<2x32xf32>
    %110 = arith.divf %108, %109 : vector<2x32xf32>
    %111 = arith.mulf %102, %37 : vector<2x32xf32>
    %112 = arith.mulf %96, %104 : vector<2x32xf32>
    %113 = arith.addf %111, %112 : vector<2x32xf32>
    %114 = math.tanh %113 : vector<2x32xf32>
    %115 = arith.mulf %110, %114 : vector<2x32xf32>
    %c7_i32_37 = arith.constant 7 : i32
    %116 = arith.subi %c7_i32_37, %c1_i32 : i32
    %117 = arith.index_cast %116 : i32 to index
    %c0_38 = arith.constant 0 : index
    %c0_39 = arith.constant 0 : index
    %118 = vector.load %arg1[%117, %c0_38, %c0_39] : memref<8x2x16xf32, #tpu.memory_space<vmem>>, vector<1x2x16xf32>
    %119 = vector.shape_cast %118 : vector<1x2x16xf32> to vector<2x16xf32>
    %cst_40 = arith.constant dense<0.000000e+00> : vector<2x128xf32>
    %120 = tpu.matmul %119, %3, %cst_40 {dimension_numbers = #tpu.dot_dimension_numbers<[1], [0], [0], [1], [0, 0, 1, 1], [], []>} : vector<2x16xf32>, vector<16x128xf32>, vector<2x128xf32> -> vector<2x128xf32>
    %cst_41 = arith.constant dense<0.000000e+00> : vector<2x128xf32>
    %121 = tpu.matmul %73, %4, %cst_41 {dimension_numbers = #tpu.dot_dimension_numbers<[1], [0], [0], [1], [0, 0, 1, 1], [], []>} : vector<2x32xf32>, vector<32x128xf32>, vector<2x128xf32> -> vector<2x128xf32>
    %122 = arith.addf %120, %121 : vector<2x128xf32>
    %123 = vector.broadcast %5 : vector<1x128xf32> to vector<2x128xf32>
    %124 = arith.addf %122, %123 : vector<2x128xf32>
    %125 = vector.extract_strided_slice %124 {offsets = [0, 0], sizes = [2, 32], strides = [1, 1]} : vector<2x128xf32> to vector<2x32xf32>
    %126 = arith.negf %125 : vector<2x32xf32>
    %127 = math.exp %126 : vector<2x32xf32>
    %cst_42 = arith.constant 1.000000e+00 : f32
    %128 = vector.broadcast %cst_42 : f32 to vector<2x32xf32>
    %129 = arith.addf %128, %127 : vector<2x32xf32>
    %130 = arith.divf %128, %129 : vector<2x32xf32>
    %131 = vector.extract_strided_slice %124 {offsets = [0, 32], sizes = [2, 32], strides = [1, 1]} : vector<2x128xf32> to vector<2x32xf32>
    %132 = arith.negf %131 : vector<2x32xf32>
    %133 = math.exp %132 : vector<2x32xf32>
    %cst_43 = arith.constant 1.000000e+00 : f32
    %134 = vector.broadcast %cst_43 : f32 to vector<2x32xf32>
    %135 = arith.addf %134, %133 : vector<2x32xf32>
    %136 = arith.divf %134, %135 : vector<2x32xf32>
    %137 = vector.extract_strided_slice %124 {offsets = [0, 64], sizes = [2, 32], strides = [1, 1]} : vector<2x128xf32> to vector<2x32xf32>
    %138 = math.tanh %137 : vector<2x32xf32>
    %139 = vector.extract_strided_slice %124 {offsets = [0, 96], sizes = [2, 32], strides = [1, 1]} : vector<2x128xf32> to vector<2x32xf32>
    %140 = arith.negf %139 : vector<2x32xf32>
    %141 = math.exp %140 : vector<2x32xf32>
    %cst_44 = arith.constant 1.000000e+00 : f32
    %142 = vector.broadcast %cst_44 : f32 to vector<2x32xf32>
    %143 = arith.addf %142, %141 : vector<2x32xf32>
    %144 = arith.divf %142, %143 : vector<2x32xf32>
    %145 = arith.mulf %136, %71 : vector<2x32xf32>
    %146 = arith.mulf %130, %138 : vector<2x32xf32>
    %147 = arith.addf %145, %146 : vector<2x32xf32>
    %148 = math.tanh %147 : vector<2x32xf32>
    %149 = arith.mulf %144, %148 : vector<2x32xf32>
    %150 = arith.index_cast %c1_i32 : i32 to index
    %c0_45 = arith.constant 0 : index
    %c0_46 = arith.constant 0 : index
    %151 = vector.load %arg8[%150, %c0_45, %c0_46] : memref<8x2x32xf32, #tpu.memory_space<vmem>>, vector<1x2x32xf32>
    %152 = vector.shape_cast %151 : vector<1x2x32xf32> to vector<2x32xf32>
    %153 = vector.shape_cast %115 : vector<2x32xf32> to vector<1x2x32xf32>
    tpu.vector_store %arg8[%150, %c0_45, %c0_46], %153 {strides = array<i32>} : memref<8x2x32xf32, #tpu.memory_space<vmem>>, vector<1x2x32xf32>,
    %c7_i32_47 = arith.constant 7 : i32
    %154 = arith.subi %c7_i32_47, %c1_i32 : i32
    %155 = arith.index_cast %154 : i32 to index
    %c0_48 = arith.constant 0 : index
    %c0_49 = arith.constant 0 : index
    %156 = vector.load %arg9[%155, %c0_48, %c0_49] : memref<8x2x32xf32, #tpu.memory_space<vmem>>, vector<1x2x32xf32>
    %157 = vector.shape_cast %156 : vector<1x2x32xf32> to vector<2x32xf32>
    %158 = vector.shape_cast %149 : vector<2x32xf32> to vector<1x2x32xf32>
    tpu.vector_store %arg9[%155, %c0_48, %c0_49], %158 {strides = array<i32>} : memref<8x2x32xf32, #tpu.memory_space<vmem>>, vector<1x2x32xf32>,
    %c2_i32 = arith.constant 2 : i32
    %159 = arith.index_cast %c2_i32 : i32 to index
    %c0_50 = arith.constant 0 : index
    %c0_51 = arith.constant 0 : index
    %160 = vector.load %arg1[%159, %c0_50, %c0_51] : memref<8x2x16xf32, #tpu.memory_space<vmem>>, vector<1x2x16xf32>
    %161 = vector.shape_cast %160 : vector<1x2x16xf32> to vector<2x16xf32>
    %cst_52 = arith.constant dense<0.000000e+00> : vector<2x128xf32>
    %162 = tpu.matmul %161, %0, %cst_52 {dimension_numbers = #tpu.dot_dimension_numbers<[1], [0], [0], [1], [0, 0, 1, 1], [], []>} : vector<2x16xf32>, vector<16x128xf32>, vector<2x128xf32> -> vector<2x128xf32>
    %cst_53 = arith.constant dense<0.000000e+00> : vector<2x128xf32>
    %163 = tpu.matmul %115, %1, %cst_53 {dimension_numbers = #tpu.dot_dimension_numbers<[1], [0], [0], [1], [0, 0, 1, 1], [], []>} : vector<2x32xf32>, vector<32x128xf32>, vector<2x128xf32> -> vector<2x128xf32>
    %164 = arith.addf %162, %163 : vector<2x128xf32>
    %165 = vector.broadcast %2 : vector<1x128xf32> to vector<2x128xf32>
    %166 = arith.addf %164, %165 : vector<2x128xf32>
    %167 = vector.extract_strided_slice %166 {offsets = [0, 0], sizes = [2, 32], strides = [1, 1]} : vector<2x128xf32> to vector<2x32xf32>
    %168 = arith.negf %167 : vector<2x32xf32>
    %169 = math.exp %168 : vector<2x32xf32>
    %cst_54 = arith.constant 1.000000e+00 : f32
    %170 = vector.broadcast %cst_54 : f32 to vector<2x32xf32>
    %171 = arith.addf %170, %169 : vector<2x32xf32>
    %172 = arith.divf %170, %171 : vector<2x32xf32>
    %173 = vector.extract_strided_slice %166 {offsets = [0, 32], sizes = [2, 32], strides = [1, 1]} : vector<2x128xf32> to vector<2x32xf32>
    %174 = arith.negf %173 : vector<2x32xf32>
    %175 = math.exp %174 : vector<2x32xf32>
    %cst_55 = arith.constant 1.000000e+00 : f32
    %176 = vector.broadcast %cst_55 : f32 to vector<2x32xf32>
    %177 = arith.addf %176, %175 : vector<2x32xf32>
    %178 = arith.divf %176, %177 : vector<2x32xf32>
    %179 = vector.extract_strided_slice %166 {offsets = [0, 64], sizes = [2, 32], strides = [1, 1]} : vector<2x128xf32> to vector<2x32xf32>
    %180 = math.tanh %179 : vector<2x32xf32>
    %181 = vector.extract_strided_slice %166 {offsets = [0, 96], sizes = [2, 32], strides = [1, 1]} : vector<2x128xf32> to vector<2x32xf32>
    %182 = arith.negf %181 : vector<2x32xf32>
    %183 = math.exp %182 : vector<2x32xf32>
    %cst_56 = arith.constant 1.000000e+00 : f32
    %184 = vector.broadcast %cst_56 : f32 to vector<2x32xf32>
    %185 = arith.addf %184, %183 : vector<2x32xf32>
    %186 = arith.divf %184, %185 : vector<2x32xf32>
    %187 = arith.mulf %178, %113 : vector<2x32xf32>
    %188 = arith.mulf %172, %180 : vector<2x32xf32>
    %189 = arith.addf %187, %188 : vector<2x32xf32>
    %190 = math.tanh %189 : vector<2x32xf32>
    %191 = arith.mulf %186, %190 : vector<2x32xf32>
    %c7_i32_57 = arith.constant 7 : i32
    %192 = arith.subi %c7_i32_57, %c2_i32 : i32
    %193 = arith.index_cast %192 : i32 to index
    %c0_58 = arith.constant 0 : index
    %c0_59 = arith.constant 0 : index
    %194 = vector.load %arg1[%193, %c0_58, %c0_59] : memref<8x2x16xf32, #tpu.memory_space<vmem>>, vector<1x2x16xf32>
    %195 = vector.shape_cast %194 : vector<1x2x16xf32> to vector<2x16xf32>
    %cst_60 = arith.constant dense<0.000000e+00> : vector<2x128xf32>
    %196 = tpu.matmul %195, %3, %cst_60 {dimension_numbers = #tpu.dot_dimension_numbers<[1], [0], [0], [1], [0, 0, 1, 1], [], []>} : vector<2x16xf32>, vector<16x128xf32>, vector<2x128xf32> -> vector<2x128xf32>
    %cst_61 = arith.constant dense<0.000000e+00> : vector<2x128xf32>
    %197 = tpu.matmul %149, %4, %cst_61 {dimension_numbers = #tpu.dot_dimension_numbers<[1], [0], [0], [1], [0, 0, 1, 1], [], []>} : vector<2x32xf32>, vector<32x128xf32>, vector<2x128xf32> -> vector<2x128xf32>
    %198 = arith.addf %196, %197 : vector<2x128xf32>
    %199 = vector.broadcast %5 : vector<1x128xf32> to vector<2x128xf32>
    %200 = arith.addf %198, %199 : vector<2x128xf32>
    %201 = vector.extract_strided_slice %200 {offsets = [0, 0], sizes = [2, 32], strides = [1, 1]} : vector<2x128xf32> to vector<2x32xf32>
    %202 = arith.negf %201 : vector<2x32xf32>
    %203 = math.exp %202 : vector<2x32xf32>
    %cst_62 = arith.constant 1.000000e+00 : f32
    %204 = vector.broadcast %cst_62 : f32 to vector<2x32xf32>
    %205 = arith.addf %204, %203 : vector<2x32xf32>
    %206 = arith.divf %204, %205 : vector<2x32xf32>
    %207 = vector.extract_strided_slice %200 {offsets = [0, 32], sizes = [2, 32], strides = [1, 1]} : vector<2x128xf32> to vector<2x32xf32>
    %208 = arith.negf %207 : vector<2x32xf32>
    %209 = math.exp %208 : vector<2x32xf32>
    %cst_63 = arith.constant 1.000000e+00 : f32
    %210 = vector.broadcast %cst_63 : f32 to vector<2x32xf32>
    %211 = arith.addf %210, %209 : vector<2x32xf32>
    %212 = arith.divf %210, %211 : vector<2x32xf32>
    %213 = vector.extract_strided_slice %200 {offsets = [0, 64], sizes = [2, 32], strides = [1, 1]} : vector<2x128xf32> to vector<2x32xf32>
    %214 = math.tanh %213 : vector<2x32xf32>
    %215 = vector.extract_strided_slice %200 {offsets = [0, 96], sizes = [2, 32], strides = [1, 1]} : vector<2x128xf32> to vector<2x32xf32>
    %216 = arith.negf %215 : vector<2x32xf32>
    %217 = math.exp %216 : vector<2x32xf32>
    %cst_64 = arith.constant 1.000000e+00 : f32
    %218 = vector.broadcast %cst_64 : f32 to vector<2x32xf32>
    %219 = arith.addf %218, %217 : vector<2x32xf32>
    %220 = arith.divf %218, %219 : vector<2x32xf32>
    %221 = arith.mulf %212, %147 : vector<2x32xf32>
    %222 = arith.mulf %206, %214 : vector<2x32xf32>
    %223 = arith.addf %221, %222 : vector<2x32xf32>
    %224 = math.tanh %223 : vector<2x32xf32>
    %225 = arith.mulf %220, %224 : vector<2x32xf32>
    %226 = arith.index_cast %c2_i32 : i32 to index
    %c0_65 = arith.constant 0 : index
    %c0_66 = arith.constant 0 : index
    %227 = vector.load %arg8[%226, %c0_65, %c0_66] : memref<8x2x32xf32, #tpu.memory_space<vmem>>, vector<1x2x32xf32>
    %228 = vector.shape_cast %227 : vector<1x2x32xf32> to vector<2x32xf32>
    %229 = vector.shape_cast %191 : vector<2x32xf32> to vector<1x2x32xf32>
    tpu.vector_store %arg8[%226, %c0_65, %c0_66], %229 {strides = array<i32>} : memref<8x2x32xf32, #tpu.memory_space<vmem>>, vector<1x2x32xf32>,
    %c7_i32_67 = arith.constant 7 : i32
    %230 = arith.subi %c7_i32_67, %c2_i32 : i32
    %231 = arith.index_cast %230 : i32 to index
    %c0_68 = arith.constant 0 : index
    %c0_69 = arith.constant 0 : index
    %232 = vector.load %arg9[%231, %c0_68, %c0_69] : memref<8x2x32xf32, #tpu.memory_space<vmem>>, vector<1x2x32xf32>
    %233 = vector.shape_cast %232 : vector<1x2x32xf32> to vector<2x32xf32>
    %234 = vector.shape_cast %225 : vector<2x32xf32> to vector<1x2x32xf32>
    tpu.vector_store %arg9[%231, %c0_68, %c0_69], %234 {strides = array<i32>} : memref<8x2x32xf32, #tpu.memory_space<vmem>>, vector<1x2x32xf32>,
    %c3_i32 = arith.constant 3 : i32
    %235 = arith.index_cast %c3_i32 : i32 to index
    %c0_70 = arith.constant 0 : index
    %c0_71 = arith.constant 0 : index
    %236 = vector.load %arg1[%235, %c0_70, %c0_71] : memref<8x2x16xf32, #tpu.memory_space<vmem>>, vector<1x2x16xf32>
    %237 = vector.shape_cast %236 : vector<1x2x16xf32> to vector<2x16xf32>
    %cst_72 = arith.constant dense<0.000000e+00> : vector<2x128xf32>
    %238 = tpu.matmul %237, %0, %cst_72 {dimension_numbers = #tpu.dot_dimension_numbers<[1], [0], [0], [1], [0, 0, 1, 1], [], []>} : vector<2x16xf32>, vector<16x128xf32>, vector<2x128xf32> -> vector<2x128xf32>
    %cst_73 = arith.constant dense<0.000000e+00> : vector<2x128xf32>
    %239 = tpu.matmul %191, %1, %cst_73 {dimension_numbers = #tpu.dot_dimension_numbers<[1], [0], [0], [1], [0, 0, 1, 1], [], []>} : vector<2x32xf32>, vector<32x128xf32>, vector<2x128xf32> -> vector<2x128xf32>
    %240 = arith.addf %238, %239 : vector<2x128xf32>
    %241 = vector.broadcast %2 : vector<1x128xf32> to vector<2x128xf32>
    %242 = arith.addf %240, %241 : vector<2x128xf32>
    %243 = vector.extract_strided_slice %242 {offsets = [0, 0], sizes = [2, 32], strides = [1, 1]} : vector<2x128xf32> to vector<2x32xf32>
    %244 = arith.negf %243 : vector<2x32xf32>
    %245 = math.exp %244 : vector<2x32xf32>
    %cst_74 = arith.constant 1.000000e+00 : f32
    %246 = vector.broadcast %cst_74 : f32 to vector<2x32xf32>
    %247 = arith.addf %246, %245 : vector<2x32xf32>
    %248 = arith.divf %246, %247 : vector<2x32xf32>
    %249 = vector.extract_strided_slice %242 {offsets = [0, 32], sizes = [2, 32], strides = [1, 1]} : vector<2x128xf32> to vector<2x32xf32>
    %250 = arith.negf %249 : vector<2x32xf32>
    %251 = math.exp %250 : vector<2x32xf32>
    %cst_75 = arith.constant 1.000000e+00 : f32
    %252 = vector.broadcast %cst_75 : f32 to vector<2x32xf32>
    %253 = arith.addf %252, %251 : vector<2x32xf32>
    %254 = arith.divf %252, %253 : vector<2x32xf32>
    %255 = vector.extract_strided_slice %242 {offsets = [0, 64], sizes = [2, 32], strides = [1, 1]} : vector<2x128xf32> to vector<2x32xf32>
    %256 = math.tanh %255 : vector<2x32xf32>
    %257 = vector.extract_strided_slice %242 {offsets = [0, 96], sizes = [2, 32], strides = [1, 1]} : vector<2x128xf32> to vector<2x32xf32>
    %258 = arith.negf %257 : vector<2x32xf32>
    %259 = math.exp %258 : vector<2x32xf32>
    %cst_76 = arith.constant 1.000000e+00 : f32
    %260 = vector.broadcast %cst_76 : f32 to vector<2x32xf32>
    %261 = arith.addf %260, %259 : vector<2x32xf32>
    %262 = arith.divf %260, %261 : vector<2x32xf32>
    %263 = arith.mulf %254, %189 : vector<2x32xf32>
    %264 = arith.mulf %248, %256 : vector<2x32xf32>
    %265 = arith.addf %263, %264 : vector<2x32xf32>
    %266 = math.tanh %265 : vector<2x32xf32>
    %267 = arith.mulf %262, %266 : vector<2x32xf32>
    %c7_i32_77 = arith.constant 7 : i32
    %268 = arith.subi %c7_i32_77, %c3_i32 : i32
    %269 = arith.index_cast %268 : i32 to index
    %c0_78 = arith.constant 0 : index
    %c0_79 = arith.constant 0 : index
    %270 = vector.load %arg1[%269, %c0_78, %c0_79] : memref<8x2x16xf32, #tpu.memory_space<vmem>>, vector<1x2x16xf32>
    %271 = vector.shape_cast %270 : vector<1x2x16xf32> to vector<2x16xf32>
    %cst_80 = arith.constant dense<0.000000e+00> : vector<2x128xf32>
    %272 = tpu.matmul %271, %3, %cst_80 {dimension_numbers = #tpu.dot_dimension_numbers<[1], [0], [0], [1], [0, 0, 1, 1], [], []>} : vector<2x16xf32>, vector<16x128xf32>, vector<2x128xf32> -> vector<2x128xf32>
    %cst_81 = arith.constant dense<0.000000e+00> : vector<2x128xf32>
    %273 = tpu.matmul %225, %4, %cst_81 {dimension_numbers = #tpu.dot_dimension_numbers<[1], [0], [0], [1], [0, 0, 1, 1], [], []>} : vector<2x32xf32>, vector<32x128xf32>, vector<2x128xf32> -> vector<2x128xf32>
    %274 = arith.addf %272, %273 : vector<2x128xf32>
    %275 = vector.broadcast %5 : vector<1x128xf32> to vector<2x128xf32>
    %276 = arith.addf %274, %275 : vector<2x128xf32>
    %277 = vector.extract_strided_slice %276 {offsets = [0, 0], sizes = [2, 32], strides = [1, 1]} : vector<2x128xf32> to vector<2x32xf32>
    %278 = arith.negf %277 : vector<2x32xf32>
    %279 = math.exp %278 : vector<2x32xf32>
    %cst_82 = arith.constant 1.000000e+00 : f32
    %280 = vector.broadcast %cst_82 : f32 to vector<2x32xf32>
    %281 = arith.addf %280, %279 : vector<2x32xf32>
    %282 = arith.divf %280, %281 : vector<2x32xf32>
    %283 = vector.extract_strided_slice %276 {offsets = [0, 32], sizes = [2, 32], strides = [1, 1]} : vector<2x128xf32> to vector<2x32xf32>
    %284 = arith.negf %283 : vector<2x32xf32>
    %285 = math.exp %284 : vector<2x32xf32>
    %cst_83 = arith.constant 1.000000e+00 : f32
    %286 = vector.broadcast %cst_83 : f32 to vector<2x32xf32>
    %287 = arith.addf %286, %285 : vector<2x32xf32>
    %288 = arith.divf %286, %287 : vector<2x32xf32>
    %289 = vector.extract_strided_slice %276 {offsets = [0, 64], sizes = [2, 32], strides = [1, 1]} : vector<2x128xf32> to vector<2x32xf32>
    %290 = math.tanh %289 : vector<2x32xf32>
    %291 = vector.extract_strided_slice %276 {offsets = [0, 96], sizes = [2, 32], strides = [1, 1]} : vector<2x128xf32> to vector<2x32xf32>
    %292 = arith.negf %291 : vector<2x32xf32>
    %293 = math.exp %292 : vector<2x32xf32>
    %cst_84 = arith.constant 1.000000e+00 : f32
    %294 = vector.broadcast %cst_84 : f32 to vector<2x32xf32>
    %295 = arith.addf %294, %293 : vector<2x32xf32>
    %296 = arith.divf %294, %295 : vector<2x32xf32>
    %297 = arith.mulf %288, %223 : vector<2x32xf32>
    %298 = arith.mulf %282, %290 : vector<2x32xf32>
    %299 = arith.addf %297, %298 : vector<2x32xf32>
    %300 = math.tanh %299 : vector<2x32xf32>
    %301 = arith.mulf %296, %300 : vector<2x32xf32>
    %302 = arith.index_cast %c3_i32 : i32 to index
    %c0_85 = arith.constant 0 : index
    %c0_86 = arith.constant 0 : index
    %303 = vector.load %arg8[%302, %c0_85, %c0_86] : memref<8x2x32xf32, #tpu.memory_space<vmem>>, vector<1x2x32xf32>
    %304 = vector.shape_cast %303 : vector<1x2x32xf32> to vector<2x32xf32>
    %305 = vector.shape_cast %267 : vector<2x32xf32> to vector<1x2x32xf32>
    tpu.vector_store %arg8[%302, %c0_85, %c0_86], %305 {strides = array<i32>} : memref<8x2x32xf32, #tpu.memory_space<vmem>>, vector<1x2x32xf32>,
    %c7_i32_87 = arith.constant 7 : i32
    %306 = arith.subi %c7_i32_87, %c3_i32 : i32
    %307 = arith.index_cast %306 : i32 to index
    %c0_88 = arith.constant 0 : index
    %c0_89 = arith.constant 0 : index
    %308 = vector.load %arg9[%307, %c0_88, %c0_89] : memref<8x2x32xf32, #tpu.memory_space<vmem>>, vector<1x2x32xf32>
    %309 = vector.shape_cast %308 : vector<1x2x32xf32> to vector<2x32xf32>
    %310 = vector.shape_cast %301 : vector<2x32xf32> to vector<1x2x32xf32>
    tpu.vector_store %arg9[%307, %c0_88, %c0_89], %310 {strides = array<i32>} : memref<8x2x32xf32, #tpu.memory_space<vmem>>, vector<1x2x32xf32>,
    %c4_i32 = arith.constant 4 : i32
    %311 = arith.index_cast %c4_i32 : i32 to index
    %c0_90 = arith.constant 0 : index
    %c0_91 = arith.constant 0 : index
    %312 = vector.load %arg1[%311, %c0_90, %c0_91] : memref<8x2x16xf32, #tpu.memory_space<vmem>>, vector<1x2x16xf32>
    %313 = vector.shape_cast %312 : vector<1x2x16xf32> to vector<2x16xf32>
    %cst_92 = arith.constant dense<0.000000e+00> : vector<2x128xf32>
    %314 = tpu.matmul %313, %0, %cst_92 {dimension_numbers = #tpu.dot_dimension_numbers<[1], [0], [0], [1], [0, 0, 1, 1], [], []>} : vector<2x16xf32>, vector<16x128xf32>, vector<2x128xf32> -> vector<2x128xf32>
    %cst_93 = arith.constant dense<0.000000e+00> : vector<2x128xf32>
    %315 = tpu.matmul %267, %1, %cst_93 {dimension_numbers = #tpu.dot_dimension_numbers<[1], [0], [0], [1], [0, 0, 1, 1], [], []>} : vector<2x32xf32>, vector<32x128xf32>, vector<2x128xf32> -> vector<2x128xf32>
    %316 = arith.addf %314, %315 : vector<2x128xf32>
    %317 = vector.broadcast %2 : vector<1x128xf32> to vector<2x128xf32>
    %318 = arith.addf %316, %317 : vector<2x128xf32>
    %319 = vector.extract_strided_slice %318 {offsets = [0, 0], sizes = [2, 32], strides = [1, 1]} : vector<2x128xf32> to vector<2x32xf32>
    %320 = arith.negf %319 : vector<2x32xf32>
    %321 = math.exp %320 : vector<2x32xf32>
    %cst_94 = arith.constant 1.000000e+00 : f32
    %322 = vector.broadcast %cst_94 : f32 to vector<2x32xf32>
    %323 = arith.addf %322, %321 : vector<2x32xf32>
    %324 = arith.divf %322, %323 : vector<2x32xf32>
    %325 = vector.extract_strided_slice %318 {offsets = [0, 32], sizes = [2, 32], strides = [1, 1]} : vector<2x128xf32> to vector<2x32xf32>
    %326 = arith.negf %325 : vector<2x32xf32>
    %327 = math.exp %326 : vector<2x32xf32>
    %cst_95 = arith.constant 1.000000e+00 : f32
    %328 = vector.broadcast %cst_95 : f32 to vector<2x32xf32>
    %329 = arith.addf %328, %327 : vector<2x32xf32>
    %330 = arith.divf %328, %329 : vector<2x32xf32>
    %331 = vector.extract_strided_slice %318 {offsets = [0, 64], sizes = [2, 32], strides = [1, 1]} : vector<2x128xf32> to vector<2x32xf32>
    %332 = math.tanh %331 : vector<2x32xf32>
    %333 = vector.extract_strided_slice %318 {offsets = [0, 96], sizes = [2, 32], strides = [1, 1]} : vector<2x128xf32> to vector<2x32xf32>
    %334 = arith.negf %333 : vector<2x32xf32>
    %335 = math.exp %334 : vector<2x32xf32>
    %cst_96 = arith.constant 1.000000e+00 : f32
    %336 = vector.broadcast %cst_96 : f32 to vector<2x32xf32>
    %337 = arith.addf %336, %335 : vector<2x32xf32>
    %338 = arith.divf %336, %337 : vector<2x32xf32>
    %339 = arith.mulf %330, %265 : vector<2x32xf32>
    %340 = arith.mulf %324, %332 : vector<2x32xf32>
    %341 = arith.addf %339, %340 : vector<2x32xf32>
    %342 = math.tanh %341 : vector<2x32xf32>
    %343 = arith.mulf %338, %342 : vector<2x32xf32>
    %c7_i32_97 = arith.constant 7 : i32
    %344 = arith.subi %c7_i32_97, %c4_i32 : i32
    %345 = arith.index_cast %344 : i32 to index
    %c0_98 = arith.constant 0 : index
    %c0_99 = arith.constant 0 : index
    %346 = vector.load %arg1[%345, %c0_98, %c0_99] : memref<8x2x16xf32, #tpu.memory_space<vmem>>, vector<1x2x16xf32>
    %347 = vector.shape_cast %346 : vector<1x2x16xf32> to vector<2x16xf32>
    %cst_100 = arith.constant dense<0.000000e+00> : vector<2x128xf32>
    %348 = tpu.matmul %347, %3, %cst_100 {dimension_numbers = #tpu.dot_dimension_numbers<[1], [0], [0], [1], [0, 0, 1, 1], [], []>} : vector<2x16xf32>, vector<16x128xf32>, vector<2x128xf32> -> vector<2x128xf32>
    %cst_101 = arith.constant dense<0.000000e+00> : vector<2x128xf32>
    %349 = tpu.matmul %301, %4, %cst_101 {dimension_numbers = #tpu.dot_dimension_numbers<[1], [0], [0], [1], [0, 0, 1, 1], [], []>} : vector<2x32xf32>, vector<32x128xf32>, vector<2x128xf32> -> vector<2x128xf32>
    %350 = arith.addf %348, %349 : vector<2x128xf32>
    %351 = vector.broadcast %5 : vector<1x128xf32> to vector<2x128xf32>
    %352 = arith.addf %350, %351 : vector<2x128xf32>
    %353 = vector.extract_strided_slice %352 {offsets = [0, 0], sizes = [2, 32], strides = [1, 1]} : vector<2x128xf32> to vector<2x32xf32>
    %354 = arith.negf %353 : vector<2x32xf32>
    %355 = math.exp %354 : vector<2x32xf32>
    %cst_102 = arith.constant 1.000000e+00 : f32
    %356 = vector.broadcast %cst_102 : f32 to vector<2x32xf32>
    %357 = arith.addf %356, %355 : vector<2x32xf32>
    %358 = arith.divf %356, %357 : vector<2x32xf32>
    %359 = vector.extract_strided_slice %352 {offsets = [0, 32], sizes = [2, 32], strides = [1, 1]} : vector<2x128xf32> to vector<2x32xf32>
    %360 = arith.negf %359 : vector<2x32xf32>
    %361 = math.exp %360 : vector<2x32xf32>
    %cst_103 = arith.constant 1.000000e+00 : f32
    %362 = vector.broadcast %cst_103 : f32 to vector<2x32xf32>
    %363 = arith.addf %362, %361 : vector<2x32xf32>
    %364 = arith.divf %362, %363 : vector<2x32xf32>
    %365 = vector.extract_strided_slice %352 {offsets = [0, 64], sizes = [2, 32], strides = [1, 1]} : vector<2x128xf32> to vector<2x32xf32>
    %366 = math.tanh %365 : vector<2x32xf32>
    %367 = vector.extract_strided_slice %352 {offsets = [0, 96], sizes = [2, 32], strides = [1, 1]} : vector<2x128xf32> to vector<2x32xf32>
    %368 = arith.negf %367 : vector<2x32xf32>
    %369 = math.exp %368 : vector<2x32xf32>
    %cst_104 = arith.constant 1.000000e+00 : f32
    %370 = vector.broadcast %cst_104 : f32 to vector<2x32xf32>
    %371 = arith.addf %370, %369 : vector<2x32xf32>
    %372 = arith.divf %370, %371 : vector<2x32xf32>
    %373 = arith.mulf %364, %299 : vector<2x32xf32>
    %374 = arith.mulf %358, %366 : vector<2x32xf32>
    %375 = arith.addf %373, %374 : vector<2x32xf32>
    %376 = math.tanh %375 : vector<2x32xf32>
    %377 = arith.mulf %372, %376 : vector<2x32xf32>
    %378 = arith.index_cast %c4_i32 : i32 to index
    %c0_105 = arith.constant 0 : index
    %c0_106 = arith.constant 0 : index
    %379 = vector.load %arg8[%378, %c0_105, %c0_106] : memref<8x2x32xf32, #tpu.memory_space<vmem>>, vector<1x2x32xf32>
    %380 = vector.shape_cast %379 : vector<1x2x32xf32> to vector<2x32xf32>
    %381 = vector.shape_cast %343 : vector<2x32xf32> to vector<1x2x32xf32>
    tpu.vector_store %arg8[%378, %c0_105, %c0_106], %381 {strides = array<i32>} : memref<8x2x32xf32, #tpu.memory_space<vmem>>, vector<1x2x32xf32>,
    %c7_i32_107 = arith.constant 7 : i32
    %382 = arith.subi %c7_i32_107, %c4_i32 : i32
    %383 = arith.index_cast %382 : i32 to index
    %c0_108 = arith.constant 0 : index
    %c0_109 = arith.constant 0 : index
    %384 = vector.load %arg9[%383, %c0_108, %c0_109] : memref<8x2x32xf32, #tpu.memory_space<vmem>>, vector<1x2x32xf32>
    %385 = vector.shape_cast %384 : vector<1x2x32xf32> to vector<2x32xf32>
    %386 = vector.shape_cast %377 : vector<2x32xf32> to vector<1x2x32xf32>
    tpu.vector_store %arg9[%383, %c0_108, %c0_109], %386 {strides = array<i32>} : memref<8x2x32xf32, #tpu.memory_space<vmem>>, vector<1x2x32xf32>,
    %c5_i32 = arith.constant 5 : i32
    %387 = arith.index_cast %c5_i32 : i32 to index
    %c0_110 = arith.constant 0 : index
    %c0_111 = arith.constant 0 : index
    %388 = vector.load %arg1[%387, %c0_110, %c0_111] : memref<8x2x16xf32, #tpu.memory_space<vmem>>, vector<1x2x16xf32>
    %389 = vector.shape_cast %388 : vector<1x2x16xf32> to vector<2x16xf32>
    %cst_112 = arith.constant dense<0.000000e+00> : vector<2x128xf32>
    %390 = tpu.matmul %389, %0, %cst_112 {dimension_numbers = #tpu.dot_dimension_numbers<[1], [0], [0], [1], [0, 0, 1, 1], [], []>} : vector<2x16xf32>, vector<16x128xf32>, vector<2x128xf32> -> vector<2x128xf32>
    %cst_113 = arith.constant dense<0.000000e+00> : vector<2x128xf32>
    %391 = tpu.matmul %343, %1, %cst_113 {dimension_numbers = #tpu.dot_dimension_numbers<[1], [0], [0], [1], [0, 0, 1, 1], [], []>} : vector<2x32xf32>, vector<32x128xf32>, vector<2x128xf32> -> vector<2x128xf32>
    %392 = arith.addf %390, %391 : vector<2x128xf32>
    %393 = vector.broadcast %2 : vector<1x128xf32> to vector<2x128xf32>
    %394 = arith.addf %392, %393 : vector<2x128xf32>
    %395 = vector.extract_strided_slice %394 {offsets = [0, 0], sizes = [2, 32], strides = [1, 1]} : vector<2x128xf32> to vector<2x32xf32>
    %396 = arith.negf %395 : vector<2x32xf32>
    %397 = math.exp %396 : vector<2x32xf32>
    %cst_114 = arith.constant 1.000000e+00 : f32
    %398 = vector.broadcast %cst_114 : f32 to vector<2x32xf32>
    %399 = arith.addf %398, %397 : vector<2x32xf32>
    %400 = arith.divf %398, %399 : vector<2x32xf32>
    %401 = vector.extract_strided_slice %394 {offsets = [0, 32], sizes = [2, 32], strides = [1, 1]} : vector<2x128xf32> to vector<2x32xf32>
    %402 = arith.negf %401 : vector<2x32xf32>
    %403 = math.exp %402 : vector<2x32xf32>
    %cst_115 = arith.constant 1.000000e+00 : f32
    %404 = vector.broadcast %cst_115 : f32 to vector<2x32xf32>
    %405 = arith.addf %404, %403 : vector<2x32xf32>
    %406 = arith.divf %404, %405 : vector<2x32xf32>
    %407 = vector.extract_strided_slice %394 {offsets = [0, 64], sizes = [2, 32], strides = [1, 1]} : vector<2x128xf32> to vector<2x32xf32>
    %408 = math.tanh %407 : vector<2x32xf32>
    %409 = vector.extract_strided_slice %394 {offsets = [0, 96], sizes = [2, 32], strides = [1, 1]} : vector<2x128xf32> to vector<2x32xf32>
    %410 = arith.negf %409 : vector<2x32xf32>
    %411 = math.exp %410 : vector<2x32xf32>
    %cst_116 = arith.constant 1.000000e+00 : f32
    %412 = vector.broadcast %cst_116 : f32 to vector<2x32xf32>
    %413 = arith.addf %412, %411 : vector<2x32xf32>
    %414 = arith.divf %412, %413 : vector<2x32xf32>
    %415 = arith.mulf %406, %341 : vector<2x32xf32>
    %416 = arith.mulf %400, %408 : vector<2x32xf32>
    %417 = arith.addf %415, %416 : vector<2x32xf32>
    %418 = math.tanh %417 : vector<2x32xf32>
    %419 = arith.mulf %414, %418 : vector<2x32xf32>
    %c7_i32_117 = arith.constant 7 : i32
    %420 = arith.subi %c7_i32_117, %c5_i32 : i32
    %421 = arith.index_cast %420 : i32 to index
    %c0_118 = arith.constant 0 : index
    %c0_119 = arith.constant 0 : index
    %422 = vector.load %arg1[%421, %c0_118, %c0_119] : memref<8x2x16xf32, #tpu.memory_space<vmem>>, vector<1x2x16xf32>
    %423 = vector.shape_cast %422 : vector<1x2x16xf32> to vector<2x16xf32>
    %cst_120 = arith.constant dense<0.000000e+00> : vector<2x128xf32>
    %424 = tpu.matmul %423, %3, %cst_120 {dimension_numbers = #tpu.dot_dimension_numbers<[1], [0], [0], [1], [0, 0, 1, 1], [], []>} : vector<2x16xf32>, vector<16x128xf32>, vector<2x128xf32> -> vector<2x128xf32>
    %cst_121 = arith.constant dense<0.000000e+00> : vector<2x128xf32>
    %425 = tpu.matmul %377, %4, %cst_121 {dimension_numbers = #tpu.dot_dimension_numbers<[1], [0], [0], [1], [0, 0, 1, 1], [], []>} : vector<2x32xf32>, vector<32x128xf32>, vector<2x128xf32> -> vector<2x128xf32>
    %426 = arith.addf %424, %425 : vector<2x128xf32>
    %427 = vector.broadcast %5 : vector<1x128xf32> to vector<2x128xf32>
    %428 = arith.addf %426, %427 : vector<2x128xf32>
    %429 = vector.extract_strided_slice %428 {offsets = [0, 0], sizes = [2, 32], strides = [1, 1]} : vector<2x128xf32> to vector<2x32xf32>
    %430 = arith.negf %429 : vector<2x32xf32>
    %431 = math.exp %430 : vector<2x32xf32>
    %cst_122 = arith.constant 1.000000e+00 : f32
    %432 = vector.broadcast %cst_122 : f32 to vector<2x32xf32>
    %433 = arith.addf %432, %431 : vector<2x32xf32>
    %434 = arith.divf %432, %433 : vector<2x32xf32>
    %435 = vector.extract_strided_slice %428 {offsets = [0, 32], sizes = [2, 32], strides = [1, 1]} : vector<2x128xf32> to vector<2x32xf32>
    %436 = arith.negf %435 : vector<2x32xf32>
    %437 = math.exp %436 : vector<2x32xf32>
    %cst_123 = arith.constant 1.000000e+00 : f32
    %438 = vector.broadcast %cst_123 : f32 to vector<2x32xf32>
    %439 = arith.addf %438, %437 : vector<2x32xf32>
    %440 = arith.divf %438, %439 : vector<2x32xf32>
    %441 = vector.extract_strided_slice %428 {offsets = [0, 64], sizes = [2, 32], strides = [1, 1]} : vector<2x128xf32> to vector<2x32xf32>
    %442 = math.tanh %441 : vector<2x32xf32>
    %443 = vector.extract_strided_slice %428 {offsets = [0, 96], sizes = [2, 32], strides = [1, 1]} : vector<2x128xf32> to vector<2x32xf32>
    %444 = arith.negf %443 : vector<2x32xf32>
    %445 = math.exp %444 : vector<2x32xf32>
    %cst_124 = arith.constant 1.000000e+00 : f32
    %446 = vector.broadcast %cst_124 : f32 to vector<2x32xf32>
    %447 = arith.addf %446, %445 : vector<2x32xf32>
    %448 = arith.divf %446, %447 : vector<2x32xf32>
    %449 = arith.mulf %440, %375 : vector<2x32xf32>
    %450 = arith.mulf %434, %442 : vector<2x32xf32>
    %451 = arith.addf %449, %450 : vector<2x32xf32>
    %452 = math.tanh %451 : vector<2x32xf32>
    %453 = arith.mulf %448, %452 : vector<2x32xf32>
    %454 = arith.index_cast %c5_i32 : i32 to index
    %c0_125 = arith.constant 0 : index
    %c0_126 = arith.constant 0 : index
    %455 = vector.load %arg8[%454, %c0_125, %c0_126] : memref<8x2x32xf32, #tpu.memory_space<vmem>>, vector<1x2x32xf32>
    %456 = vector.shape_cast %455 : vector<1x2x32xf32> to vector<2x32xf32>
    %457 = vector.shape_cast %419 : vector<2x32xf32> to vector<1x2x32xf32>
    tpu.vector_store %arg8[%454, %c0_125, %c0_126], %457 {strides = array<i32>} : memref<8x2x32xf32, #tpu.memory_space<vmem>>, vector<1x2x32xf32>,
    %c7_i32_127 = arith.constant 7 : i32
    %458 = arith.subi %c7_i32_127, %c5_i32 : i32
    %459 = arith.index_cast %458 : i32 to index
    %c0_128 = arith.constant 0 : index
    %c0_129 = arith.constant 0 : index
    %460 = vector.load %arg9[%459, %c0_128, %c0_129] : memref<8x2x32xf32, #tpu.memory_space<vmem>>, vector<1x2x32xf32>
    %461 = vector.shape_cast %460 : vector<1x2x32xf32> to vector<2x32xf32>
    %462 = vector.shape_cast %453 : vector<2x32xf32> to vector<1x2x32xf32>
    tpu.vector_store %arg9[%459, %c0_128, %c0_129], %462 {strides = array<i32>} : memref<8x2x32xf32, #tpu.memory_space<vmem>>, vector<1x2x32xf32>,
    %c6_i32 = arith.constant 6 : i32
    %463 = arith.index_cast %c6_i32 : i32 to index
    %c0_130 = arith.constant 0 : index
    %c0_131 = arith.constant 0 : index
    %464 = vector.load %arg1[%463, %c0_130, %c0_131] : memref<8x2x16xf32, #tpu.memory_space<vmem>>, vector<1x2x16xf32>
    %465 = vector.shape_cast %464 : vector<1x2x16xf32> to vector<2x16xf32>
    %cst_132 = arith.constant dense<0.000000e+00> : vector<2x128xf32>
    %466 = tpu.matmul %465, %0, %cst_132 {dimension_numbers = #tpu.dot_dimension_numbers<[1], [0], [0], [1], [0, 0, 1, 1], [], []>} : vector<2x16xf32>, vector<16x128xf32>, vector<2x128xf32> -> vector<2x128xf32>
    %cst_133 = arith.constant dense<0.000000e+00> : vector<2x128xf32>
    %467 = tpu.matmul %419, %1, %cst_133 {dimension_numbers = #tpu.dot_dimension_numbers<[1], [0], [0], [1], [0, 0, 1, 1], [], []>} : vector<2x32xf32>, vector<32x128xf32>, vector<2x128xf32> -> vector<2x128xf32>
    %468 = arith.addf %466, %467 : vector<2x128xf32>
    %469 = vector.broadcast %2 : vector<1x128xf32> to vector<2x128xf32>
    %470 = arith.addf %468, %469 : vector<2x128xf32>
    %471 = vector.extract_strided_slice %470 {offsets = [0, 0], sizes = [2, 32], strides = [1, 1]} : vector<2x128xf32> to vector<2x32xf32>
    %472 = arith.negf %471 : vector<2x32xf32>
    %473 = math.exp %472 : vector<2x32xf32>
    %cst_134 = arith.constant 1.000000e+00 : f32
    %474 = vector.broadcast %cst_134 : f32 to vector<2x32xf32>
    %475 = arith.addf %474, %473 : vector<2x32xf32>
    %476 = arith.divf %474, %475 : vector<2x32xf32>
    %477 = vector.extract_strided_slice %470 {offsets = [0, 32], sizes = [2, 32], strides = [1, 1]} : vector<2x128xf32> to vector<2x32xf32>
    %478 = arith.negf %477 : vector<2x32xf32>
    %479 = math.exp %478 : vector<2x32xf32>
    %cst_135 = arith.constant 1.000000e+00 : f32
    %480 = vector.broadcast %cst_135 : f32 to vector<2x32xf32>
    %481 = arith.addf %480, %479 : vector<2x32xf32>
    %482 = arith.divf %480, %481 : vector<2x32xf32>
    %483 = vector.extract_strided_slice %470 {offsets = [0, 64], sizes = [2, 32], strides = [1, 1]} : vector<2x128xf32> to vector<2x32xf32>
    %484 = math.tanh %483 : vector<2x32xf32>
    %485 = vector.extract_strided_slice %470 {offsets = [0, 96], sizes = [2, 32], strides = [1, 1]} : vector<2x128xf32> to vector<2x32xf32>
    %486 = arith.negf %485 : vector<2x32xf32>
    %487 = math.exp %486 : vector<2x32xf32>
    %cst_136 = arith.constant 1.000000e+00 : f32
    %488 = vector.broadcast %cst_136 : f32 to vector<2x32xf32>
    %489 = arith.addf %488, %487 : vector<2x32xf32>
    %490 = arith.divf %488, %489 : vector<2x32xf32>
    %491 = arith.mulf %482, %417 : vector<2x32xf32>
    %492 = arith.mulf %476, %484 : vector<2x32xf32>
    %493 = arith.addf %491, %492 : vector<2x32xf32>
    %494 = math.tanh %493 : vector<2x32xf32>
    %495 = arith.mulf %490, %494 : vector<2x32xf32>
    %c7_i32_137 = arith.constant 7 : i32
    %496 = arith.subi %c7_i32_137, %c6_i32 : i32
    %497 = arith.index_cast %496 : i32 to index
    %c0_138 = arith.constant 0 : index
    %c0_139 = arith.constant 0 : index
    %498 = vector.load %arg1[%497, %c0_138, %c0_139] : memref<8x2x16xf32, #tpu.memory_space<vmem>>, vector<1x2x16xf32>
    %499 = vector.shape_cast %498 : vector<1x2x16xf32> to vector<2x16xf32>
    %cst_140 = arith.constant dense<0.000000e+00> : vector<2x128xf32>
    %500 = tpu.matmul %499, %3, %cst_140 {dimension_numbers = #tpu.dot_dimension_numbers<[1], [0], [0], [1], [0, 0, 1, 1], [], []>} : vector<2x16xf32>, vector<16x128xf32>, vector<2x128xf32> -> vector<2x128xf32>
    %cst_141 = arith.constant dense<0.000000e+00> : vector<2x128xf32>
    %501 = tpu.matmul %453, %4, %cst_141 {dimension_numbers = #tpu.dot_dimension_numbers<[1], [0], [0], [1], [0, 0, 1, 1], [], []>} : vector<2x32xf32>, vector<32x128xf32>, vector<2x128xf32> -> vector<2x128xf32>
    %502 = arith.addf %500, %501 : vector<2x128xf32>
    %503 = vector.broadcast %5 : vector<1x128xf32> to vector<2x128xf32>
    %504 = arith.addf %502, %503 : vector<2x128xf32>
    %505 = vector.extract_strided_slice %504 {offsets = [0, 0], sizes = [2, 32], strides = [1, 1]} : vector<2x128xf32> to vector<2x32xf32>
    %506 = arith.negf %505 : vector<2x32xf32>
    %507 = math.exp %506 : vector<2x32xf32>
    %cst_142 = arith.constant 1.000000e+00 : f32
    %508 = vector.broadcast %cst_142 : f32 to vector<2x32xf32>
    %509 = arith.addf %508, %507 : vector<2x32xf32>
    %510 = arith.divf %508, %509 : vector<2x32xf32>
    %511 = vector.extract_strided_slice %504 {offsets = [0, 32], sizes = [2, 32], strides = [1, 1]} : vector<2x128xf32> to vector<2x32xf32>
    %512 = arith.negf %511 : vector<2x32xf32>
    %513 = math.exp %512 : vector<2x32xf32>
    %cst_143 = arith.constant 1.000000e+00 : f32
    %514 = vector.broadcast %cst_143 : f32 to vector<2x32xf32>
    %515 = arith.addf %514, %513 : vector<2x32xf32>
    %516 = arith.divf %514, %515 : vector<2x32xf32>
    %517 = vector.extract_strided_slice %504 {offsets = [0, 64], sizes = [2, 32], strides = [1, 1]} : vector<2x128xf32> to vector<2x32xf32>
    %518 = math.tanh %517 : vector<2x32xf32>
    %519 = vector.extract_strided_slice %504 {offsets = [0, 96], sizes = [2, 32], strides = [1, 1]} : vector<2x128xf32> to vector<2x32xf32>
    %520 = arith.negf %519 : vector<2x32xf32>
    %521 = math.exp %520 : vector<2x32xf32>
    %cst_144 = arith.constant 1.000000e+00 : f32
    %522 = vector.broadcast %cst_144 : f32 to vector<2x32xf32>
    %523 = arith.addf %522, %521 : vector<2x32xf32>
    %524 = arith.divf %522, %523 : vector<2x32xf32>
    %525 = arith.mulf %516, %451 : vector<2x32xf32>
    %526 = arith.mulf %510, %518 : vector<2x32xf32>
    %527 = arith.addf %525, %526 : vector<2x32xf32>
    %528 = math.tanh %527 : vector<2x32xf32>
    %529 = arith.mulf %524, %528 : vector<2x32xf32>
    %530 = arith.index_cast %c6_i32 : i32 to index
    %c0_145 = arith.constant 0 : index
    %c0_146 = arith.constant 0 : index
    %531 = vector.load %arg8[%530, %c0_145, %c0_146] : memref<8x2x32xf32, #tpu.memory_space<vmem>>, vector<1x2x32xf32>
    %532 = vector.shape_cast %531 : vector<1x2x32xf32> to vector<2x32xf32>
    %533 = vector.shape_cast %495 : vector<2x32xf32> to vector<1x2x32xf32>
    tpu.vector_store %arg8[%530, %c0_145, %c0_146], %533 {strides = array<i32>} : memref<8x2x32xf32, #tpu.memory_space<vmem>>, vector<1x2x32xf32>,
    %c7_i32_147 = arith.constant 7 : i32
    %534 = arith.subi %c7_i32_147, %c6_i32 : i32
    %535 = arith.index_cast %534 : i32 to index
    %c0_148 = arith.constant 0 : index
    %c0_149 = arith.constant 0 : index
    %536 = vector.load %arg9[%535, %c0_148, %c0_149] : memref<8x2x32xf32, #tpu.memory_space<vmem>>, vector<1x2x32xf32>
    %537 = vector.shape_cast %536 : vector<1x2x32xf32> to vector<2x32xf32>
    %538 = vector.shape_cast %529 : vector<2x32xf32> to vector<1x2x32xf32>
    tpu.vector_store %arg9[%535, %c0_148, %c0_149], %538 {strides = array<i32>} : memref<8x2x32xf32, #tpu.memory_space<vmem>>, vector<1x2x32xf32>,
    %c7_i32_150 = arith.constant 7 : i32
    %539 = arith.index_cast %c7_i32_150 : i32 to index
    %c0_151 = arith.constant 0 : index
    %c0_152 = arith.constant 0 : index
    %540 = vector.load %arg1[%539, %c0_151, %c0_152] : memref<8x2x16xf32, #tpu.memory_space<vmem>>, vector<1x2x16xf32>
    %541 = vector.shape_cast %540 : vector<1x2x16xf32> to vector<2x16xf32>
    %cst_153 = arith.constant dense<0.000000e+00> : vector<2x128xf32>
    %542 = tpu.matmul %541, %0, %cst_153 {dimension_numbers = #tpu.dot_dimension_numbers<[1], [0], [0], [1], [0, 0, 1, 1], [], []>} : vector<2x16xf32>, vector<16x128xf32>, vector<2x128xf32> -> vector<2x128xf32>
    %cst_154 = arith.constant dense<0.000000e+00> : vector<2x128xf32>
    %543 = tpu.matmul %495, %1, %cst_154 {dimension_numbers = #tpu.dot_dimension_numbers<[1], [0], [0], [1], [0, 0, 1, 1], [], []>} : vector<2x32xf32>, vector<32x128xf32>, vector<2x128xf32> -> vector<2x128xf32>
    %544 = arith.addf %542, %543 : vector<2x128xf32>
    %545 = vector.broadcast %2 : vector<1x128xf32> to vector<2x128xf32>
    %546 = arith.addf %544, %545 : vector<2x128xf32>
    %547 = vector.extract_strided_slice %546 {offsets = [0, 0], sizes = [2, 32], strides = [1, 1]} : vector<2x128xf32> to vector<2x32xf32>
    %548 = arith.negf %547 : vector<2x32xf32>
    %549 = math.exp %548 : vector<2x32xf32>
    %cst_155 = arith.constant 1.000000e+00 : f32
    %550 = vector.broadcast %cst_155 : f32 to vector<2x32xf32>
    %551 = arith.addf %550, %549 : vector<2x32xf32>
    %552 = arith.divf %550, %551 : vector<2x32xf32>
    %553 = vector.extract_strided_slice %546 {offsets = [0, 32], sizes = [2, 32], strides = [1, 1]} : vector<2x128xf32> to vector<2x32xf32>
    %554 = arith.negf %553 : vector<2x32xf32>
    %555 = math.exp %554 : vector<2x32xf32>
    %cst_156 = arith.constant 1.000000e+00 : f32
    %556 = vector.broadcast %cst_156 : f32 to vector<2x32xf32>
    %557 = arith.addf %556, %555 : vector<2x32xf32>
    %558 = arith.divf %556, %557 : vector<2x32xf32>
    %559 = vector.extract_strided_slice %546 {offsets = [0, 64], sizes = [2, 32], strides = [1, 1]} : vector<2x128xf32> to vector<2x32xf32>
    %560 = math.tanh %559 : vector<2x32xf32>
    %561 = vector.extract_strided_slice %546 {offsets = [0, 96], sizes = [2, 32], strides = [1, 1]} : vector<2x128xf32> to vector<2x32xf32>
    %562 = arith.negf %561 : vector<2x32xf32>
    %563 = math.exp %562 : vector<2x32xf32>
    %cst_157 = arith.constant 1.000000e+00 : f32
    %564 = vector.broadcast %cst_157 : f32 to vector<2x32xf32>
    %565 = arith.addf %564, %563 : vector<2x32xf32>
    %566 = arith.divf %564, %565 : vector<2x32xf32>
    %567 = arith.mulf %558, %493 : vector<2x32xf32>
    %568 = arith.mulf %552, %560 : vector<2x32xf32>
    %569 = arith.addf %567, %568 : vector<2x32xf32>
    %570 = math.tanh %569 : vector<2x32xf32>
    %571 = arith.mulf %566, %570 : vector<2x32xf32>
    %c7_i32_158 = arith.constant 7 : i32
    %572 = arith.subi %c7_i32_158, %c7_i32_150 : i32
    %573 = arith.index_cast %572 : i32 to index
    %c0_159 = arith.constant 0 : index
    %c0_160 = arith.constant 0 : index
    %574 = vector.load %arg1[%573, %c0_159, %c0_160] : memref<8x2x16xf32, #tpu.memory_space<vmem>>, vector<1x2x16xf32>
    %575 = vector.shape_cast %574 : vector<1x2x16xf32> to vector<2x16xf32>
    %cst_161 = arith.constant dense<0.000000e+00> : vector<2x128xf32>
    %576 = tpu.matmul %575, %3, %cst_161 {dimension_numbers = #tpu.dot_dimension_numbers<[1], [0], [0], [1], [0, 0, 1, 1], [], []>} : vector<2x16xf32>, vector<16x128xf32>, vector<2x128xf32> -> vector<2x128xf32>
    %cst_162 = arith.constant dense<0.000000e+00> : vector<2x128xf32>
    %577 = tpu.matmul %529, %4, %cst_162 {dimension_numbers = #tpu.dot_dimension_numbers<[1], [0], [0], [1], [0, 0, 1, 1], [], []>} : vector<2x32xf32>, vector<32x128xf32>, vector<2x128xf32> -> vector<2x128xf32>
    %578 = arith.addf %576, %577 : vector<2x128xf32>
    %579 = vector.broadcast %5 : vector<1x128xf32> to vector<2x128xf32>
    %580 = arith.addf %578, %579 : vector<2x128xf32>
    %581 = vector.extract_strided_slice %580 {offsets = [0, 0], sizes = [2, 32], strides = [1, 1]} : vector<2x128xf32> to vector<2x32xf32>
    %582 = arith.negf %581 : vector<2x32xf32>
    %583 = math.exp %582 : vector<2x32xf32>
    %cst_163 = arith.constant 1.000000e+00 : f32
    %584 = vector.broadcast %cst_163 : f32 to vector<2x32xf32>
    %585 = arith.addf %584, %583 : vector<2x32xf32>
    %586 = arith.divf %584, %585 : vector<2x32xf32>
    %587 = vector.extract_strided_slice %580 {offsets = [0, 32], sizes = [2, 32], strides = [1, 1]} : vector<2x128xf32> to vector<2x32xf32>
    %588 = arith.negf %587 : vector<2x32xf32>
    %589 = math.exp %588 : vector<2x32xf32>
    %cst_164 = arith.constant 1.000000e+00 : f32
    %590 = vector.broadcast %cst_164 : f32 to vector<2x32xf32>
    %591 = arith.addf %590, %589 : vector<2x32xf32>
    %592 = arith.divf %590, %591 : vector<2x32xf32>
    %593 = vector.extract_strided_slice %580 {offsets = [0, 64], sizes = [2, 32], strides = [1, 1]} : vector<2x128xf32> to vector<2x32xf32>
    %594 = math.tanh %593 : vector<2x32xf32>
    %595 = vector.extract_strided_slice %580 {offsets = [0, 96], sizes = [2, 32], strides = [1, 1]} : vector<2x128xf32> to vector<2x32xf32>
    %596 = arith.negf %595 : vector<2x32xf32>
    %597 = math.exp %596 : vector<2x32xf32>
    %cst_165 = arith.constant 1.000000e+00 : f32
    %598 = vector.broadcast %cst_165 : f32 to vector<2x32xf32>
    %599 = arith.addf %598, %597 : vector<2x32xf32>
    %600 = arith.divf %598, %599 : vector<2x32xf32>
    %601 = arith.mulf %592, %527 : vector<2x32xf32>
    %602 = arith.mulf %586, %594 : vector<2x32xf32>
    %603 = arith.addf %601, %602 : vector<2x32xf32>
    %604 = math.tanh %603 : vector<2x32xf32>
    %605 = arith.mulf %600, %604 : vector<2x32xf32>
    %606 = arith.index_cast %c7_i32_150 : i32 to index
    %c0_166 = arith.constant 0 : index
    %c0_167 = arith.constant 0 : index
    %607 = vector.load %arg8[%606, %c0_166, %c0_167] : memref<8x2x32xf32, #tpu.memory_space<vmem>>, vector<1x2x32xf32>
    %608 = vector.shape_cast %607 : vector<1x2x32xf32> to vector<2x32xf32>
    %609 = vector.shape_cast %571 : vector<2x32xf32> to vector<1x2x32xf32>
    tpu.vector_store %arg8[%606, %c0_166, %c0_167], %609 {strides = array<i32>} : memref<8x2x32xf32, #tpu.memory_space<vmem>>, vector<1x2x32xf32>,
    %c7_i32_168 = arith.constant 7 : i32
    %610 = arith.subi %c7_i32_168, %c7_i32_150 : i32
    %611 = arith.index_cast %610 : i32 to index
    %c0_169 = arith.constant 0 : index
    %c0_170 = arith.constant 0 : index
    %612 = vector.load %arg9[%611, %c0_169, %c0_170] : memref<8x2x32xf32, #tpu.memory_space<vmem>>, vector<1x2x32xf32>
    %613 = vector.shape_cast %612 : vector<1x2x32xf32> to vector<2x32xf32>
    %614 = vector.shape_cast %605 : vector<2x32xf32> to vector<1x2x32xf32>
    tpu.vector_store %arg9[%611, %c0_169, %c0_170], %614 {strides = array<i32>} : memref<8x2x32xf32, #tpu.memory_space<vmem>>, vector<1x2x32xf32>,
    %c8_i32 = arith.constant 8 : i32
    return
  }
  func.func @transform_0(%arg0: i32) -> (i32, i32, i32) {
    %c0_i32 = arith.constant 0 : i32
    %c0_i32_0 = arith.constant 0 : i32
    %c0_i32_1 = arith.constant 0 : i32
    %c0_i32_2 = arith.constant 0 : i32
    return %c0_i32, %c0_i32_0, %c0_i32_1 : i32, i32, i32
  }
  func.func @transform_1(%arg0: i32) -> (i32, i32) {
    %c0_i32 = arith.constant 0 : i32
    %c0_i32_0 = arith.constant 0 : i32
    %c0_i32_1 = arith.constant 0 : i32
    return %c0_i32, %c0_i32_0 : i32, i32
  }
  func.func @transform_2(%arg0: i32) -> (i32, i32) {
    %c0_i32 = arith.constant 0 : i32
    %c0_i32_0 = arith.constant 0 : i32
    %c0_i32_1 = arith.constant 0 : i32
    return %c0_i32, %c0_i32_0 : i32, i32
  }
  func.func @transform_3(%arg0: i32) -> (i32, i32) {
    %c0_i32 = arith.constant 0 : i32
    %c0_i32_0 = arith.constant 0 : i32
    %c0_i32_1 = arith.constant 0 : i32
    return %c0_i32, %c0_i32_0 : i32, i32
  }
  func.func @transform_4(%arg0: i32) -> (i32, i32) {
    %c0_i32 = arith.constant 0 : i32
    %c0_i32_0 = arith.constant 0 : i32
    %c0_i32_1 = arith.constant 0 : i32
    return %c0_i32, %c0_i32_0 : i32, i32
  }
  func.func @transform_5(%arg0: i32) -> (i32, i32) {
    %c0_i32 = arith.constant 0 : i32
    %c0_i32_0 = arith.constant 0 : i32
    %c0_i32_1 = arith.constant 0 : i32
    return %c0_i32, %c0_i32_0 : i32, i32
  }
  func.func @transform_6(%arg0: i32) -> (i32, i32) {
    %c0_i32 = arith.constant 0 : i32
    %c0_i32_0 = arith.constant 0 : i32
    %c0_i32_1 = arith.constant 0 : i32
    return %c0_i32, %c0_i32_0 : i32, i32
  }
  func.func @transform_7(%arg0: i32) -> (i32, i32, i32) {
    %c0_i32 = arith.constant 0 : i32
    %c0_i32_0 = arith.constant 0 : i32
    %c0_i32_1 = arith.constant 0 : i32
    %c0_i32_2 = arith.constant 0 : i32
    return %c0_i32, %c0_i32_0, %c0_i32_1 : i32, i32, i32
  }
  func.func @transform_8(%arg0: i32) -> (i32, i32, i32) {
    %c0_i32 = arith.constant 0 : i32
    %c0_i32_0 = arith.constant 0 : i32
    %c0_i32_1 = arith.constant 0 : i32
    %c0_i32_2 = arith.constant 0 : i32
    return %c0_i32, %c0_i32_0, %c0_i32_1 : i32, i32, i32
  }
}

</mosaic_0001>

<llo_original>
// kernel: tpu_custom_call.1
$region0: #{tpu_custom_call.1}
  #allocation0 [shape = 'u32[]', space=smem, size = 0x4, offset = 0x4, fixed_abs, tag = 'smem constant byte address 0x4 - core index']
  #allocation1 [shape = 'u32[144,128]{1,0:T(1,128)}', space=vmem, size = 0x12000, scoped, tag = 'internal scratch']
  %s0 = inlined_call_operand.hbm [shape: f32[8,2,16], index: 0, kind: input, shape index: {}]
  %s1 = inlined_call_operand.hbm [shape: f32[16,128], index: 1, kind: input, shape index: {}]
  %s2 = inlined_call_operand.hbm [shape: f32[32,128], index: 2, kind: input, shape index: {}]
  %s3 = inlined_call_operand.vmem [shape: f32[1,128], index: 3, kind: input, shape index: {}]
  %s4 = inlined_call_operand.hbm [shape: f32[16,128], index: 4, kind: input, shape index: {}]
  %s5 = inlined_call_operand.hbm [shape: f32[32,128], index: 5, kind: input, shape index: {}]
  %s6 = inlined_call_operand.vmem [shape: f32[1,128], index: 6, kind: input, shape index: {}]
  %s7 = inlined_call_operand.hbm [shape: f32[8,2,32], index: 7, kind: output, shape index: {0}]
  %s8 = inlined_call_operand.hbm [shape: f32[8,2,32], index: 8, kind: output, shape index: {1}]
  %9 = xla_tuple %s7, %s8
  %s10 = sld [smem:[#allocation0]]
  $region66: #{tpu_custom_call.1} parent=0
    _
  %s12 = ssub.s32 1, %s10
  %s13 = scalar_select 0, %s12, %s10
  $region1: #{tpu_custom_call.1} parent=0
    #allocation2 [shape = 'u8[8192]{0}', space=vmem, size = 0x2000, scoped, tag = 'input window, operand 0, single buffered']
    #allocation3 [shape = 's32[1]{0}', space=sflag, size = 0x4, scoped, tag = 'scoped memory for tpu_custom_call.1']
    #allocation4 [shape = 's32[1]{0}', space=sflag, size = 0x4, scoped, tag = 'scoped memory for tpu_custom_call.1']
    #allocation5 [shape = 'u8[8192]{0}', space=vmem, size = 0x2000, scoped, tag = 'input window, operand 1, single buffered']
    #allocation6 [shape = 's32[1]{0}', space=sflag, size = 0x4, scoped, tag = 'scoped memory for tpu_custom_call.1']
    #allocation7 [shape = 'u8[16384]{0}', space=vmem, size = 0x4000, scoped, tag = 'input window, operand 2, single buffered']
    #allocation8 [shape = 'u8[8192]{0}', space=vmem, size = 0x2000, scoped, tag = 'input window, operand 4, single buffered']
    #allocation9 [shape = 's32[1]{0}', space=sflag, size = 0x4, scoped, tag = 'scoped memory for tpu_custom_call.1']
    #allocation10 [shape = 'u8[16384]{0}', space=vmem, size = 0x4000, scoped, tag = 'input window, operand 5, single buffered']
    #allocation11 [shape = 'u8[8192]{0}', space=vmem, size = 0x2000, scoped, tag = 'output window, operand 0, single buffered']
    #allocation12 [shape = 'u8[8192]{0}', space=vmem, size = 0x2000, scoped, tag = 'output window, operand 1, single buffered']
    #allocation13 [shape = 's32[1]{0}', space=sflag, size = 0x4, scoped, tag = 'scoped memory for tpu_custom_call.1']
    %14 = vsyncpa [#allocation3], 0
    %15 = vsyncpa [#allocation6], 0
    %16 = vsyncpa [#allocation9], 0
    %17 = vsyncpa [#allocation4], 0
    %18 = vsyncpa [#allocation13], 0
    // Predicated region
    $region2: #{tpu_custom_call.1} parent=1 // pred_check
      _
    $region3: #{tpu_custom_call.1} parent=1 // pred_check_branch
      %20 = sbr.rel (0) target = $region5
    $region4: #{tpu_custom_call.1} parent=1 // pred_region
      %s22 = ssub.s32 256, 256
      %23 = vsyncadd [#allocation3], %s22
      %s24 = sshll.u32 [#allocation2], 4
      %s25 = int_to_ptr.vmem [resolvable:$true] %s24
      %30 = dma.hbm_to_vmem [thread:$0]  %s0, 256, %s25, [#allocation3], 32, 32, 2
    $region5: #{tpu_custom_call.1} parent=1 // pred_fallthru
      _
    // Predicated region
    $region6: #{tpu_custom_call.1} parent=1 // pred_check
      _
    $region7: #{tpu_custom_call.1} parent=1 // pred_check_branch
      %32 = sbr.rel (0) target = $region9
    $region8: #{tpu_custom_call.1} parent=1 // pred_region
      %s34 = ssub.s32 256, 256
      %35 = vsyncadd [#allocation6], %s34
      %s36 = sshll.u32 [#allocation5], 4
      %s37 = int_to_ptr.vmem [resolvable:$true] %s36
      %42 = dma.hbm_to_vmem [thread:$0]  %s1, 256, %s37, [#allocation6], 128, 128, 8
    $region9: #{tpu_custom_call.1} parent=1 // pred_fallthru
      _
    // Predicated region
    $region10: #{tpu_custom_call.1} parent=1 // pred_check
      _
    $region11: #{tpu_custom_call.1} parent=1 // pred_check_branch
      %44 = sbr.rel (0) target = $region13
    $region12: #{tpu_custom_call.1} parent=1 // pred_region
      %s46 = ssub.s32 512, 512
      %47 = vsyncadd [#allocation6], %s46
      %s48 = sshll.u32 [#allocation7], 4
      %s49 = int_to_ptr.vmem [resolvable:$true] %s48
      %54 = dma.hbm_to_vmem [thread:$0]  %s2, 512, %s49, [#allocation6], 128, 128, 8
    $region13: #{tpu_custom_call.1} parent=1 // pred_fallthru
      _
    // Predicated region
    $region14: #{tpu_custom_call.1} parent=1 // pred_check
      _
    $region15: #{tpu_custom_call.1} parent=1 // pred_check_branch
      %56 = sbr.rel (0) target = $region17
    $region16: #{tpu_custom_call.1} parent=1 // pred_region
      _
    $region17: #{tpu_custom_call.1} parent=1 // pred_fallthru
      _
    // Predicated region
    $region18: #{tpu_custom_call.1} parent=1 // pred_check
      _
    $region19: #{tpu_custom_call.1} parent=1 // pred_check_branch
      %58 = sbr.rel (0) target = $region21
    $region20: #{tpu_custom_call.1} parent=1 // pred_region
      %s60 = ssub.s32 256, 256
      %61 = vsyncadd [#allocation9], %s60
      %s62 = sshll.u32 [#allocation8], 4
      %s63 = int_to_ptr.vmem [resolvable:$true] %s62
      %68 = dma.hbm_to_vmem [thread:$0]  %s4, 256, %s63, [#allocation9], 128, 128, 8
    $region21: #{tpu_custom_call.1} parent=1 // pred_fallthru
      _
    // Predicated region
    $region22: #{tpu_custom_call.1} parent=1 // pred_check
      _
    $region23: #{tpu_custom_call.1} parent=1 // pred_check_branch
      %70 = sbr.rel (0) target = $region25
    $region24: #{tpu_custom_call.1} parent=1 // pred_region
      %s72 = ssub.s32 512, 512
      %73 = vsyncadd [#allocation9], %s72
      %s74 = sshll.u32 [#allocation10], 4
      %s75 = int_to_ptr.vmem [resolvable:$true] %s74
      %80 = dma.hbm_to_vmem [thread:$0]  %s5, 512, %s75, [#allocation9], 128, 128, 8
    $region25: #{tpu_custom_call.1} parent=1 // pred_fallthru
      _
    // Predicated region
    $region26: #{tpu_custom_call.1} parent=1 // pred_check
      _
    $region27: #{tpu_custom_call.1} parent=1 // pred_check_branch
      %82 = sbr.rel (0) target = $region29
    $region28: #{tpu_custom_call.1} parent=1 // pred_region
      _
    $region29: #{tpu_custom_call.1} parent=1 // pred_fallthru
      _
    // Predicated region
    $region30: #{tpu_custom_call.1} parent=1 // pred_check
      _
    $region31: #{tpu_custom_call.1} parent=1 // pred_check_branch
      %84 = sbr.rel (0) target = $region33
    $region32: #{tpu_custom_call.1} parent=1 // pred_region
      %85 = dma.done [#allocation3], 256
    $region33: #{tpu_custom_call.1} parent=1 // pred_fallthru
      _
    // Predicated region
    $region34: #{tpu_custom_call.1} parent=1 // pred_check
      _
    $region35: #{tpu_custom_call.1} parent=1 // pred_check_branch
      %87 = sbr.rel (0) target = $region37
    $region36: #{tpu_custom_call.1} parent=1 // pred_region
      %88 = dma.done [#allocation6], 256
    $region37: #{tpu_custom_call.1} parent=1 // pred_fallthru
      _
    // Predicated region
    $region38: #{tpu_custom_call.1} parent=1 // pred_check
      _
    $region39: #{tpu_custom_call.1} parent=1 // pred_check_branch
      %90 = sbr.rel (0) target = $region41
    $region40: #{tpu_custom_call.1} parent=1 // pred_region
      %91 = dma.done [#allocation6], 512
    $region41: #{tpu_custom_call.1} parent=1 // pred_fallthru
      _
    // Predicated region
    $region42: #{tpu_custom_call.1} parent=1 // pred_check
      _
    $region43: #{tpu_custom_call.1} parent=1 // pred_check_branch
      %93 = sbr.rel (0) target = $region45
    $region44: #{tpu_custom_call.1} parent=1 // pred_region
      %94 = dma.done [#allocation9], 256
    $region45: #{tpu_custom_call.1} parent=1 // pred_fallthru
      _
    // Predicated region
    $region46: #{tpu_custom_call.1} parent=1 // pred_check
      _
    $region47: #{tpu_custom_call.1} parent=1 // pred_check_branch
      %96 = sbr.rel (0) target = $region49
    $region48: #{tpu_custom_call.1} parent=1 // pred_region
      %97 = dma.done [#allocation9], 512
    $region49: #{tpu_custom_call.1} parent=1 // pred_fallthru
      _
    %v98 = vld [vmem:[#allocation5] sm:$0xff]
    %v99 = vld [vmem:[#allocation5 + $0x8] sm:$0xff]
    %v100 = vld [vmem:[#allocation7] sm:$0xff]
    %v101 = vld [vmem:[#allocation7 + $0x8] sm:$0xff]
    %v102 = vld [vmem:[#allocation7 + $0x10] sm:$0xff]
    %v103 = vld [vmem:[#allocation7 + $0x18] sm:$0xff]
    %v104 = vld [vmem:[%s3] sm:$0x1]
    %v105 = vld [vmem:[#allocation8] sm:$0xff]
    %v106 = vld [vmem:[#allocation8 + $0x8] sm:$0xff]
    %v107 = vld [vmem:[#allocation10] sm:$0xff]
    %v108 = vld [vmem:[#allocation10 + $0x8] sm:$0xff]
    %v109 = vld [vmem:[#allocation10 + $0x10] sm:$0xff]
    %v110 = vld [vmem:[#allocation10 + $0x18] sm:$0xff]
    %v111 = vld [vmem:[%s6] sm:$0x1]
    %v112 = vld [vmem:[#allocation2] sm:$0x3]
    %vm113 = vcmask 261120
    %v115 = vsel %vm113, 0.0, 0
    %117 = vmatprep.subr.mxu0 0.0
    %118 = vmatpush1.msra.mxu0 0.0
    %119 = vmatprep.subr.mxu0 0.0
    %120 = vmatpush1.msra.mxu0 0.0
    %121 = vmatprep.subr.mxu0 0.0
    %122 = vmatpush1.msra.mxu0 0.0
    %123 = vmatprep.subr.mxu0 0.0
    %124 = vmatpush1.msra.mxu0 0.0
    %125 = vmatprep.subr.mxu0 0.0
    %126 = vmatpush1.msra.mxu0 0.0
    %127 = vmatprep.subr.mxu0 0.0
    %128 = vmatpush1.msra.mxu0 0.0
    %129 = vmatprep.subr.mxu0 0.0
    %130 = vmatpush1.msra.mxu0 0.0
    %131 = vmatprep.subr.mxu0 0.0
    %132 = vmatpush1.msra.mxu0 0.0
    %133 = vmatprep.subr.mxu0 0.0
    %134 = vmatpush1.msra.mxu0 0.0
    %135 = vmatprep.subr.mxu0 0.0
    %136 = vmatpush1.msra.mxu0 0.0
    %137 = vmatprep.subr.mxu0 0.0
    %138 = vmatpush1.msra.mxu0 0.0
    %139 = vmatprep.subr.mxu0 0.0
    %140 = vmatpush1.msra.mxu0 0.0
    %141 = vmatprep.subr.mxu0 0.0
    %142 = vmatpush1.msra.mxu0 %v103
    %143 = vmatprep.subr.mxu0 0.0
    %144 = vmatpush1.msra.mxu0 %v102
    %145 = vmatprep.subr.mxu0 0.0
    %146 = vmatpush1.msra.mxu0 %v101
    %147 = vmatprep.subr.mxu0 0.0
    %148 = vmatpush1.msra.mxu0 %v100
    %149 = vmatprep.subr.mxu0 0.0
    %150 = vmatpush2.msra.mxu0 0.0
    %151 = vmatprep.subr.mxu0 0.0
    %152 = vmatpush2.msra.mxu0 0.0
    %153 = vmatprep.subr.mxu0 0.0
    %154 = vmatpush2.msra.mxu0 0.0
    %155 = vmatprep.subr.mxu0 0.0
    %156 = vmatpush2.msra.mxu0 0.0
    %157 = vmatprep.subr.mxu0 0.0
    %158 = vmatpush2.msra.mxu0 0.0
    %159 = vmatprep.subr.mxu0 0.0
    %160 = vmatpush2.msra.mxu0 0.0
    %161 = vmatprep.subr.mxu0 0.0
    %162 = vmatpush2.msra.mxu0 0.0
    %163 = vmatprep.subr.mxu0 0.0
    %164 = vmatpush2.msra.mxu0 0.0
    %165 = vmatprep.subr.mxu0 0.0
    %166 = vmatpush2.msra.mxu0 0.0
    %167 = vmatprep.subr.mxu0 0.0
    %168 = vmatpush2.msra.mxu0 0.0
    %169 = vmatprep.subr.mxu0 0.0
    %170 = vmatpush2.msra.mxu0 0.0
    %171 = vmatprep.subr.mxu0 0.0
    %172 = vmatpush2.msra.mxu0 0.0
    %173 = vmatprep.subr.mxu0 0.0
    %174 = vmatpush2.msra.mxu0 0.0
    %175 = vmatprep.subr.mxu0 0.0
    %176 = vmatpush2.msra.mxu0 0.0
    %177 = vmatprep.subr.mxu0 0.0
    %178 = vmatpush2.msra.mxu0 0.0
    %179 = vmatprep.subr.mxu0 0.0
    %180 = vmatpush2.msra.mxu0 0.0
    %181 = vmatprep.mubr.f32.mxu0 0.0
    %182 = vmatmul.mubr.f32.gmra.mxu0 %v115
    %v183 = vpop.f32.mrf.mxu0
    %v184 = vadd.f32 0.0, %v183
    %v185 = vpop.f32.mrf.mxu0
    %186 = vdwg.mxu0
    %vm187 = vcmask 130048
    %v189 = vsel %vm187, %v112, 0
    %191 = vmatprep.subr.mxu0 0.0
    %192 = vmatpush1.msra.mxu0 0.0
    %193 = vmatprep.subr.mxu0 0.0
    %194 = vmatpush1.msra.mxu0 0.0
    %195 = vmatprep.subr.mxu0 0.0
    %196 = vmatpush1.msra.mxu0 0.0
    %197 = vmatprep.subr.mxu0 0.0
    %198 = vmatpush1.msra.mxu0 0.0
    %199 = vmatprep.subr.mxu0 0.0
    %200 = vmatpush1.msra.mxu0 0.0
    %201 = vmatprep.subr.mxu0 0.0
    %202 = vmatpush1.msra.mxu0 0.0
    %203 = vmatprep.subr.mxu0 0.0
    %204 = vmatpush1.msra.mxu0 0.0
    %205 = vmatprep.subr.mxu0 0.0
    %206 = vmatpush1.msra.mxu0 0.0
    %207 = vmatprep.subr.mxu0 0.0
    %208 = vmatpush1.msra.mxu0 0.0
    %209 = vmatprep.subr.mxu0 0.0
    %210 = vmatpush1.msra.mxu0 0.0
    %211 = vmatprep.subr.mxu0 0.0
    %212 = vmatpush1.msra.mxu0 0.0
    %213 = vmatprep.subr.mxu0 0.0
    %214 = vmatpush1.msra.mxu0 0.0
    %215 = vmatprep.subr.mxu0 0.0
    %216 = vmatpush1.msra.mxu0 0.0
    %217 = vmatprep.subr.mxu0 0.0
    %218 = vmatpush1.msra.mxu0 0.0
    %219 = vmatprep.subr.mxu0 0.0
    %220 = vmatpush1.msra.mxu0 %v99
    %221 = vmatprep.subr.mxu0 0.0
    %222 = vmatpush1.msra.mxu0 %v98
    %223 = vmatprep.subr.mxu0 0.0
    %224 = vmatpush2.msra.mxu0 0.0
    %225 = vmatprep.subr.mxu0 0.0
    %226 = vmatpush2.msra.mxu0 0.0
    %227 = vmatprep.subr.mxu0 0.0
    %228 = vmatpush2.msra.mxu0 0.0
    %229 = vmatprep.subr.mxu0 0.0
    %230 = vmatpush2.msra.mxu0 0.0
    %231 = vmatprep.subr.mxu0 0.0
    %232 = vmatpush2.msra.mxu0 0.0
    %233 = vmatprep.subr.mxu0 0.0
    %234 = vmatpush2.msra.mxu0 0.0
    %235 = vmatprep.subr.mxu0 0.0
    %236 = vmatpush2.msra.mxu0 0.0
    %237 = vmatprep.subr.mxu0 0.0
    %238 = vmatpush2.msra.mxu0 0.0
    %239 = vmatprep.subr.mxu0 0.0
    %240 = vmatpush2.msra.mxu0 0.0
    %241 = vmatprep.subr.mxu0 0.0
    %242 = vmatpush2.msra.mxu0 0.0
    %243 = vmatprep.subr.mxu0 0.0
    %244 = vmatpush2.msra.mxu0 0.0
    %245 = vmatprep.subr.mxu0 0.0
    %246 = vmatpush2.msra.mxu0 0.0
    %247 = vmatprep.subr.mxu0 0.0
    %248 = vmatpush2.msra.mxu0 0.0
    %249 = vmatprep.subr.mxu0 0.0
    %250 = vmatpush2.msra.mxu0 0.0
    %251 = vmatprep.subr.mxu0 0.0
    %252 = vmatpush2.msra.mxu0 0.0
    %253 = vmatprep.subr.mxu0 0.0
    %254 = vmatpush2.msra.mxu0 0.0
    %255 = vmatprep.mubr.f32.mxu0 0.0
    %256 = vmatmul.mubr.f32.gmra.mxu0 %v189
    %v257 = vpop.f32.mrf.mxu0
    %v258 = vadd.f32 %v184, %v257
    %v259 = vpop.f32.mrf.mxu0
    %260 = vdwg.mxu0
    %v262 = vlaneseq
    %v263 = vshrl.u32 %v262, 7
    %v264 = vsub.s32 0, %v263
    %v265 = vrot.slane %v104, %v264
    %v267 = vadd.f32 %v258, %v265
    %v268 = vxor.u32 %v267, 2147483648
    %v269 = vmul.f32 %v268, 1.442695
    %v270 = vpow.pop %v269
    %v271 = vadd.f32 %v270, 1.0
    %v272 = vrcp.pop %v271
    %v273 = vmul.f32 1.0, %v272
    %v274 = vtanh.pop %v267
    %v275 = vmul.f32 %v273, 0.0
    %277 = vrot.lane.b32.xlu0 %v274, 64
    %v278 = vpop.permute.xlu0 %277
    %v280 = vmul.f32 %v273, %v278
    %282 = vrot.lane.b32.xlu0 %v280, 32
    %v283 = vpop.permute.xlu0 %282
    %v285 = vadd.f32 %v275, %v283
    %v286 = vtanh.pop %v285
    %288 = vrot.lane.b32.xlu0 %v286, 64
    %v289 = vpop.permute.xlu0 %288
    %v291 = vmul.f32 %v273, %v289
    %s292 = scalar_lea.vmem [#allocation2], 14
    %v293 = vld [vmem:[%s292] sm:$0x3]
    %294 = vmatprep.subr.mxu0 0.0
    %295 = vmatpush1.msra.mxu0 0.0
    %296 = vmatprep.subr.mxu0 0.0
    %297 = vmatpush1.msra.mxu0 0.0
    %298 = vmatprep.subr.mxu0 0.0
    %299 = vmatpush1.msra.mxu0 0.0
    %300 = vmatprep.subr.mxu0 0.0
    %301 = vmatpush1.msra.mxu0 0.0
    %302 = vmatprep.subr.mxu0 0.0
    %303 = vmatpush1.msra.mxu0 0.0
    %304 = vmatprep.subr.mxu0 0.0
    %305 = vmatpush1.msra.mxu0 0.0
    %306 = vmatprep.subr.mxu0 0.0
    %307 = vmatpush1.msra.mxu0 0.0
    %308 = vmatprep.subr.mxu0 0.0
    %309 = vmatpush1.msra.mxu0 0.0
    %310 = vmatprep.subr.mxu0 0.0
    %311 = vmatpush1.msra.mxu0 0.0
    %312 = vmatprep.subr.mxu0 0.0
    %313 = vmatpush1.msra.mxu0 0.0
    %314 = vmatprep.subr.mxu0 0.0
    %315 = vmatpush1.msra.mxu0 0.0
    %316 = vmatprep.subr.mxu0 0.0
    %317 = vmatpush1.msra.mxu0 0.0
    %318 = vmatprep.subr.mxu0 0.0
    %319 = vmatpush1.msra.mxu0 %v110
    %320 = vmatprep.subr.mxu0 0.0
    %321 = vmatpush1.msra.mxu0 %v109
    %322 = vmatprep.subr.mxu0 0.0
    %323 = vmatpush1.msra.mxu0 %v108
    %324 = vmatprep.subr.mxu0 0.0
    %325 = vmatpush1.msra.mxu0 %v107
    %326 = vmatprep.subr.mxu0 0.0
    %327 = vmatpush2.msra.mxu0 0.0
    %328 = vmatprep.subr.mxu0 0.0
    %329 = vmatpush2.msra.mxu0 0.0
    %330 = vmatprep.subr.mxu0 0.0
    %331 = vmatpush2.msra.mxu0 0.0
    %332 = vmatprep.subr.mxu0 0.0
    %333 = vmatpush2.msra.mxu0 0.0
    %334 = vmatprep.subr.mxu0 0.0
    %335 = vmatpush2.msra.mxu0 0.0
    %336 = vmatprep.subr.mxu0 0.0
    %337 = vmatpush2.msra.mxu0 0.0
    %338 = vmatprep.subr.mxu0 0.0
    %339 = vmatpush2.msra.mxu0 0.0
    %340 = vmatprep.subr.mxu0 0.0
    %341 = vmatpush2.msra.mxu0 0.0
    %342 = vmatprep.subr.mxu0 0.0
    %343 = vmatpush2.msra.mxu0 0.0
    %344 = vmatprep.subr.mxu0 0.0
    %345 = vmatpush2.msra.mxu0 0.0
    %346 = vmatprep.subr.mxu0 0.0
    %347 = vmatpush2.msra.mxu0 0.0
    %348 = vmatprep.subr.mxu0 0.0
    %349 = vmatpush2.msra.mxu0 0.0
    %350 = vmatprep.subr.mxu0 0.0
    %351 = vmatpush2.msra.mxu0 0.0
    %352 = vmatprep.subr.mxu0 0.0
    %353 = vmatpush2.msra.mxu0 0.0
    %354 = vmatprep.subr.mxu0 0.0
    %355 = vmatpush2.msra.mxu0 0.0
    %356 = vmatprep.subr.mxu0 0.0
    %357 = vmatpush2.msra.mxu0 0.0
    %358 = vmatprep.mubr.f32.mxu0 0.0
    %359 = vmatmul.mubr.f32.gmra.mxu0 %v115
    %v360 = vpop.f32.mrf.mxu0
    %v361 = vadd.f32 0.0, %v360
    %v362 = vpop.f32.mrf.mxu0
    %363 = vdwg.mxu0
    %v365 = vsel %vm187, %v293, 0
    %367 = vmatprep.subr.mxu0 0.0
    %368 = vmatpush1.msra.mxu0 0.0
    %369 = vmatprep.subr.mxu0 0.0
    %370 = vmatpush1.msra.mxu0 0.0
    %371 = vmatprep.subr.mxu0 0.0
    %372 = vmatpush1.msra.mxu0 0.0
    %373 = vmatprep.subr.mxu0 0.0
    %374 = vmatpush1.msra.mxu0 0.0
    %375 = vmatprep.subr.mxu0 0.0
    %376 = vmatpush1.msra.mxu0 0.0
    %377 = vmatprep.subr.mxu0 0.0
    %378 = vmatpush1.msra.mxu0 0.0
    %379 = vmatprep.subr.mxu0 0.0
    %380 = vmatpush1.msra.mxu0 0.0
    %381 = vmatprep.subr.mxu0 0.0
    %382 = vmatpush1.msra.mxu0 0.0
    %383 = vmatprep.subr.mxu0 0.0
    %384 = vmatpush1.msra.mxu0 0.0
    %385 = vmatprep.subr.mxu0 0.0
    %386 = vmatpush1.msra.mxu0 0.0
    %387 = vmatprep.subr.mxu0 0.0
    %388 = vmatpush1.msra.mxu0 0.0
    %389 = vmatprep.subr.mxu0 0.0
    %390 = vmatpush1.msra.mxu0 0.0
    %391 = vmatprep.subr.mxu0 0.0
    %392 = vmatpush1.msra.mxu0 0.0
    %393 = vmatprep.subr.mxu0 0.0
    %394 = vmatpush1.msra.mxu0 0.0
    %395 = vmatprep.subr.mxu0 0.0
    %396 = vmatpush1.msra.mxu0 %v106
    %397 = vmatprep.subr.mxu0 0.0
    %398 = vmatpush1.msra.mxu0 %v105
    %399 = vmatprep.subr.mxu0 0.0
    %400 = vmatpush2.msra.mxu0 0.0
    %401 = vmatprep.subr.mxu0 0.0
    %402 = vmatpush2.msra.mxu0 0.0
    %403 = vmatprep.subr.mxu0 0.0
    %404 = vmatpush2.msra.mxu0 0.0
    %405 = vmatprep.subr.mxu0 0.0
    %406 = vmatpush2.msra.mxu0 0.0
    %407 = vmatprep.subr.mxu0 0.0
    %408 = vmatpush2.msra.mxu0 0.0
    %409 = vmatprep.subr.mxu0 0.0
    %410 = vmatpush2.msra.mxu0 0.0
    %411 = vmatprep.subr.mxu0 0.0
    %412 = vmatpush2.msra.mxu0 0.0
    %413 = vmatprep.subr.mxu0 0.0
    %414 = vmatpush2.msra.mxu0 0.0
    %415 = vmatprep.subr.mxu0 0.0
    %416 = vmatpush2.msra.mxu0 0.0
    %417 = vmatprep.subr.mxu0 0.0
    %418 = vmatpush2.msra.mxu0 0.0
    %419 = vmatprep.subr.mxu0 0.0
    %420 = vmatpush2.msra.mxu0 0.0
    %421 = vmatprep.subr.mxu0 0.0
    %422 = vmatpush2.msra.mxu0 0.0
    %423 = vmatprep.subr.mxu0 0.0
    %424 = vmatpush2.msra.mxu0 0.0
    %425 = vmatprep.subr.mxu0 0.0
    %426 = vmatpush2.msra.mxu0 0.0
    %427 = vmatprep.subr.mxu0 0.0
    %428 = vmatpush2.msra.mxu0 0.0
    %429 = vmatprep.subr.mxu0 0.0
    %430 = vmatpush2.msra.mxu0 0.0
    %431 = vmatprep.mubr.f32.mxu0 0.0
    %432 = vmatmul.mubr.f32.gmra.mxu0 %v365
    %v433 = vpop.f32.mrf.mxu0
    %v434 = vadd.f32 %v361, %v433
    %v435 = vpop.f32.mrf.mxu0
    %436 = vdwg.mxu0
    %v438 = vlaneseq
    %v439 = vshrl.u32 %v438, 7
    %v440 = vsub.s32 0, %v439
    %v441 = vrot.slane %v111, %v440
    %v443 = vadd.f32 %v434, %v441
    %v444 = vxor.u32 %v443, 2147483648
    %v445 = vmul.f32 %v444, 1.442695
    %v446 = vpow.pop %v445
    %v447 = vadd.f32 %v446, 1.0
    %v448 = vrcp.pop %v447
    %v449 = vmul.f32 1.0, %v448
    %v450 = vtanh.pop %v443
    %v451 = vmul.f32 %v449, 0.0
    %453 = vrot.lane.b32.xlu0 %v450, 64
    %v454 = vpop.permute.xlu0 %453
    %v456 = vmul.f32 %v449, %v454
    %458 = vrot.lane.b32.xlu0 %v456, 32
    %v459 = vpop.permute.xlu0 %458
    %v461 = vadd.f32 %v451, %v459
    %v462 = vtanh.pop %v461
    %464 = vrot.lane.b32.xlu0 %v462, 64
    %v465 = vpop.permute.xlu0 %464
    %v467 = vmul.f32 %v449, %v465
    %469 = vrot.lane.b32.xlu0 %v291, 32
    %v470 = vpop.permute.xlu0 %469
    %vm472 = vcmask 254976
    %473 = vst.msk [vmem:[#allocation11] sm:$0x3] %vm472, %v470
    %475 = vrot.lane.b32.xlu0 %v467, 32
    %v476 = vpop.permute.xlu0 %475
    %s478 = scalar_lea.vmem [#allocation12], 14
    %479 = vst.msk [vmem:[%s478] sm:$0x3] %vm472, %v476
    %s480 = scalar_lea.vmem [#allocation2], 2
    %v481 = vld [vmem:[%s480] sm:$0x3]
    %v482 = vsel %vm113, %v470, 0
    %484 = vmatprep.subr.mxu0 0.0
    %485 = vmatpush1.msra.mxu0 0.0
    %486 = vmatprep.subr.mxu0 0.0
    %487 = vmatpush1.msra.mxu0 0.0
    %488 = vmatprep.subr.mxu0 0.0
    %489 = vmatpush1.msra.mxu0 0.0
    %490 = vmatprep.subr.mxu0 0.0
    %491 = vmatpush1.msra.mxu0 0.0
    %492 = vmatprep.subr.mxu0 0.0
    %493 = vmatpush1.msra.mxu0 0.0
    %494 = vmatprep.subr.mxu0 0.0
    %495 = vmatpush1.msra.mxu0 0.0
    %496 = vmatprep.subr.mxu0 0.0
    %497 = vmatpush1.msra.mxu0 0.0
    %498 = vmatprep.subr.mxu0 0.0
    %499 = vmatpush1.msra.mxu0 0.0
    %500 = vmatprep.subr.mxu0 0.0
    %501 = vmatpush1.msra.mxu0 0.0
    %502 = vmatprep.subr.mxu0 0.0
    %503 = vmatpush1.msra.mxu0 0.0
    %504 = vmatprep.subr.mxu0 0.0
    %505 = vmatpush1.msra.mxu0 0.0
    %506 = vmatprep.subr.mxu0 0.0
    %507 = vmatpush1.msra.mxu0 0.0
    %508 = vmatprep.subr.mxu0 0.0
    %509 = vmatpush1.msra.mxu0 %v103
    %510 = vmatprep.subr.mxu0 0.0
    %511 = vmatpush1.msra.mxu0 %v102
    %512 = vmatprep.subr.mxu0 0.0
    %513 = vmatpush1.msra.mxu0 %v101
    %514 = vmatprep.subr.mxu0 0.0
    %515 = vmatpush1.msra.mxu0 %v100
    %516 = vmatprep.subr.mxu0 0.0
    %517 = vmatpush2.msra.mxu0 0.0
    %518 = vmatprep.subr.mxu0 0.0
    %519 = vmatpush2.msra.mxu0 0.0
    %520 = vmatprep.subr.mxu0 0.0
    %521 = vmatpush2.msra.mxu0 0.0
    %522 = vmatprep.subr.mxu0 0.0
    %523 = vmatpush2.msra.mxu0 0.0
    %524 = vmatprep.subr.mxu0 0.0
    %525 = vmatpush2.msra.mxu0 0.0
    %526 = vmatprep.subr.mxu0 0.0
    %527 = vmatpush2.msra.mxu0 0.0
    %528 = vmatprep.subr.mxu0 0.0
    %529 = vmatpush2.msra.mxu0 0.0
    %530 = vmatprep.subr.mxu0 0.0
    %531 = vmatpush2.msra.mxu0 0.0
    %532 = vmatprep.subr.mxu0 0.0
    %533 = vmatpush2.msra.mxu0 0.0
    %534 = vmatprep.subr.mxu0 0.0
    %535 = vmatpush2.msra.mxu0 0.0
    %536 = vmatprep.subr.mxu0 0.0
    %537 = vmatpush2.msra.mxu0 0.0
    %538 = vmatprep.subr.mxu0 0.0
    %539 = vmatpush2.msra.mxu0 0.0
    %540 = vmatprep.subr.mxu0 0.0
    %541 = vmatpush2.msra.mxu0 0.0
    %542 = vmatprep.subr.mxu0 0.0
    %543 = vmatpush2.msra.mxu0 0.0
    %544 = vmatprep.subr.mxu0 0.0
    %545 = vmatpush2.msra.mxu0 0.0
    %546 = vmatprep.subr.mxu0 0.0
    %547 = vmatpush2.msra.mxu0 0.0
    %548 = vmatprep.mubr.f32.mxu0 0.0
    %549 = vmatmul.mubr.f32.gmra.mxu0 %v482
    %v550 = vpop.f32.mrf.mxu0
    %v551 = vadd.f32 0.0, %v550
    %v552 = vpop.f32.mrf.mxu0
    %553 = vdwg.mxu0
    %v555 = vsel %vm187, %v481, 0
    %557 = vmatprep.subr.mxu0 0.0
    %558 = vmatpush1.msra.mxu0 0.0
    %559 = vmatprep.subr.mxu0 0.0
    %560 = vmatpush1.msra.mxu0 0.0
    %561 = vmatprep.subr.mxu0 0.0
    %562 = vmatpush1.msra.mxu0 0.0
    %563 = vmatprep.subr.mxu0 0.0
    %564 = vmatpush1.msra.mxu0 0.0
    %565 = vmatprep.subr.mxu0 0.0
    %566 = vmatpush1.msra.mxu0 0.0
    %567 = vmatprep.subr.mxu0 0.0
    %568 = vmatpush1.msra.mxu0 0.0
    %569 = vmatprep.subr.mxu0 0.0
    %570 = vmatpush1.msra.mxu0 0.0
    %571 = vmatprep.subr.mxu0 0.0
    %572 = vmatpush1.msra.mxu0 0.0
    %573 = vmatprep.subr.mxu0 0.0
    %574 = vmatpush1.msra.mxu0 0.0
    %575 = vmatprep.subr.mxu0 0.0
    %576 = vmatpush1.msra.mxu0 0.0
    %577 = vmatprep.subr.mxu0 0.0
    %578 = vmatpush1.msra.mxu0 0.0
    %579 = vmatprep.subr.mxu0 0.0
    %580 = vmatpush1.msra.mxu0 0.0
    %581 = vmatprep.subr.mxu0 0.0
    %582 = vmatpush1.msra.mxu0 0.0
    %583 = vmatprep.subr.mxu0 0.0
    %584 = vmatpush1.msra.mxu0 0.0
    %585 = vmatprep.subr.mxu0 0.0
    %586 = vmatpush1.msra.mxu0 %v99
    %587 = vmatprep.subr.mxu0 0.0
    %588 = vmatpush1.msra.mxu0 %v98
    %589 = vmatprep.subr.mxu0 0.0
    %590 = vmatpush2.msra.mxu0 0.0
    %591 = vmatprep.subr.mxu0 0.0
    %592 = vmatpush2.msra.mxu0 0.0
    %593 = vmatprep.subr.mxu0 0.0
    %594 = vmatpush2.msra.mxu0 0.0
    %595 = vmatprep.subr.mxu0 0.0
    %596 = vmatpush2.msra.mxu0 0.0
    %597 = vmatprep.subr.mxu0 0.0
    %598 = vmatpush2.msra.mxu0 0.0
    %599 = vmatprep.subr.mxu0 0.0
    %600 = vmatpush2.msra.mxu0 0.0
    %601 = vmatprep.subr.mxu0 0.0
    %602 = vmatpush2.msra.mxu0 0.0
    %603 = vmatprep.subr.mxu0 0.0
    %604 = vmatpush2.msra.mxu0 0.0
    %605 = vmatprep.subr.mxu0 0.0
    %606 = vmatpush2.msra.mxu0 0.0
    %607 = vmatprep.subr.mxu0 0.0
    %608 = vmatpush2.msra.mxu0 0.0
    %609 = vmatprep.subr.mxu0 0.0
    %610 = vmatpush2.msra.mxu0 0.0
    %611 = vmatprep.subr.mxu0 0.0
    %612 = vmatpush2.msra.mxu0 0.0
    %613 = vmatprep.subr.mxu0 0.0
    %614 = vmatpush2.msra.mxu0 0.0
    %615 = vmatprep.subr.mxu0 0.0
    %616 = vmatpush2.msra.mxu0 0.0
    %617 = vmatprep.subr.mxu0 0.0
    %618 = vmatpush2.msra.mxu0 0.0
    %619 = vmatprep.subr.mxu0 0.0
    %620 = vmatpush2.msra.mxu0 0.0
    %621 = vmatprep.mubr.f32.mxu0 0.0
    %622 = vmatmul.mubr.f32.gmra.mxu0 %v555
    %v623 = vpop.f32.mrf.mxu0
    %v624 = vadd.f32 %v551, %v623
    %v625 = vpop.f32.mrf.mxu0
    %626 = vdwg.mxu0
    %v627 = vadd.f32 %v624, %v265
    %v628 = vxor.u32 %v627, 2147483648
    %v629 = vmul.f32 %v628, 1.442695
    %v630 = vpow.pop %v629
    %v631 = vadd.f32 %v630, 1.0
    %v632 = vrcp.pop %v631
    %v633 = vmul.f32 1.0, %v632
    %v634 = vtanh.pop %v627
    %v635 = vmul.f32 %v633, %v285
    %637 = vrot.lane.b32.xlu0 %v634, 64
    %v638 = vpop.permute.xlu0 %637
    %v640 = vmul.f32 %v633, %v638
    %642 = vrot.lane.b32.xlu0 %v640, 32
    %v643 = vpop.permute.xlu0 %642
    %v645 = vadd.f32 %v635, %v643
    %v646 = vtanh.pop %v645
    %648 = vrot.lane.b32.xlu0 %v646, 64
    %v649 = vpop.permute.xlu0 %648
    %v651 = vmul.f32 %v633, %v649
    %s652 = scalar_lea.vmem [#allocation2], 12
    %v653 = vld [vmem:[%s652] sm:$0x3]
    %v654 = vsel %vm113, %v476, 0
    %656 = vmatprep.subr.mxu0 0.0
    %657 = vmatpush1.msra.mxu0 0.0
    %658 = vmatprep.subr.mxu0 0.0
    %659 = vmatpush1.msra.mxu0 0.0
    %660 = vmatprep.subr.mxu0 0.0
    %661 = vmatpush1.msra.mxu0 0.0
    %662 = vmatprep.subr.mxu0 0.0
    %663 = vmatpush1.msra.mxu0 0.0
    %664 = vmatprep.subr.mxu0 0.0
    %665 = vmatpush1.msra.mxu0 0.0
    %666 = vmatprep.subr.mxu0 0.0
    %667 = vmatpush1.msra.mxu0 0.0
    %668 = vmatprep.subr.mxu0 0.0
    %669 = vmatpush1.msra.mxu0 0.0
    %670 = vmatprep.subr.mxu0 0.0
    %671 = vmatpush1.msra.mxu0 0.0
    %672 = vmatprep.subr.mxu0 0.0
    %673 = vmatpush1.msra.mxu0 0.0
    %674 = vmatprep.subr.mxu0 0.0
    %675 = vmatpush1.msra.mxu0 0.0
    %676 = vmatprep.subr.mxu0 0.0
    %677 = vmatpush1.msra.mxu0 0.0
    %678 = vmatprep.subr.mxu0 0.0
    %679 = vmatpush1.msra.mxu0 0.0
    %680 = vmatprep.subr.mxu0 0.0
    %681 = vmatpush1.msra.mxu0 %v110
    %682 = vmatprep.subr.mxu0 0.0
    %683 = vmatpush1.msra.mxu0 %v109
    %684 = vmatprep.subr.mxu0 0.0
    %685 = vmatpush1.msra.mxu0 %v108
    %686 = vmatprep.subr.mxu0 0.0
    %687 = vmatpush1.msra.mxu0 %v107
    %688 = vmatprep.subr.mxu0 0.0
    %689 = vmatpush2.msra.mxu0 0.0
    %690 = vmatprep.subr.mxu0 0.0
    %691 = vmatpush2.msra.mxu0 0.0
    %692 = vmatprep.subr.mxu0 0.0
    %693 = vmatpush2.msra.mxu0 0.0
    %694 = vmatprep.subr.mxu0 0.0
    %695 = vmatpush2.msra.mxu0 0.0
    %696 = vmatprep.subr.mxu0 0.0
    %697 = vmatpush2.msra.mxu0 0.0
    %698 = vmatprep.subr.mxu0 0.0
    %699 = vmatpush2.msra.mxu0 0.0
    %700 = vmatprep.subr.mxu0 0.0
    %701 = vmatpush2.msra.mxu0 0.0
    %702 = vmatprep.subr.mxu0 0.0
    %703 = vmatpush2.msra.mxu0 0.0
    %704 = vmatprep.subr.mxu0 0.0
    %705 = vmatpush2.msra.mxu0 0.0
    %706 = vmatprep.subr.mxu0 0.0
    %707 = vmatpush2.msra.mxu0 0.0
    %708 = vmatprep.subr.mxu0 0.0
    %709 = vmatpush2.msra.mxu0 0.0
    %710 = vmatprep.subr.mxu0 0.0
    %711 = vmatpush2.msra.mxu0 0.0
    %712 = vmatprep.subr.mxu0 0.0
    %713 = vmatpush2.msra.mxu0 0.0
    %714 = vmatprep.subr.mxu0 0.0
    %715 = vmatpush2.msra.mxu0 0.0
    %716 = vmatprep.subr.mxu0 0.0
    %717 = vmatpush2.msra.mxu0 0.0
    %718 = vmatprep.subr.mxu0 0.0
    %719 = vmatpush2.msra.mxu0 0.0
    %720 = vmatprep.mubr.f32.mxu0 0.0
    %721 = vmatmul.mubr.f32.gmra.mxu0 %v654
    %v722 = vpop.f32.mrf.mxu0
    %v723 = vadd.f32 0.0, %v722
    %v724 = vpop.f32.mrf.mxu0
    %725 = vdwg.mxu0
    %v727 = vsel %vm187, %v653, 0
    %729 = vmatprep.subr.mxu0 0.0
    %730 = vmatpush1.msra.mxu0 0.0
    %731 = vmatprep.subr.mxu0 0.0
    %732 = vmatpush1.msra.mxu0 0.0
    %733 = vmatprep.subr.mxu0 0.0
    %734 = vmatpush1.msra.mxu0 0.0
    %735 = vmatprep.subr.mxu0 0.0
    %736 = vmatpush1.msra.mxu0 0.0
    %737 = vmatprep.subr.mxu0 0.0
    %738 = vmatpush1.msra.mxu0 0.0
    %739 = vmatprep.subr.mxu0 0.0
    %740 = vmatpush1.msra.mxu0 0.0
    %741 = vmatprep.subr.mxu0 0.0
    %742 = vmatpush1.msra.mxu0 0.0
    %743 = vmatprep.subr.mxu0 0.0
    %744 = vmatpush1.msra.mxu0 0.0
    %745 = vmatprep.subr.mxu0 0.0
    %746 = vmatpush1.msra.mxu0 0.0
    %747 = vmatprep.subr.mxu0 0.0
    %748 = vmatpush1.msra.mxu0 0.0
    %749 = vmatprep.subr.mxu0 0.0
    %750 = vmatpush1.msra.mxu0 0.0
    %751 = vmatprep.subr.mxu0 0.0
    %752 = vmatpush1.msra.mxu0 0.0
    %753 = vmatprep.subr.mxu0 0.0
    %754 = vmatpush1.msra.mxu0 0.0
    %755 = vmatprep.subr.mxu0 0.0
    %756 = vmatpush1.msra.mxu0 0.0
    %757 = vmatprep.subr.mxu0 0.0
    %758 = vmatpush1.msra.mxu0 %v106
    %759 = vmatprep.subr.mxu0 0.0
    %760 = vmatpush1.msra.mxu0 %v105
    %761 = vmatprep.subr.mxu0 0.0
    %762 = vmatpush2.msra.mxu0 0.0
    %763 = vmatprep.subr.mxu0 0.0
    %764 = vmatpush2.msra.mxu0 0.0
    %765 = vmatprep.subr.mxu0 0.0
    %766 = vmatpush2.msra.mxu0 0.0
    %767 = vmatprep.subr.mxu0 0.0
    %768 = vmatpush2.msra.mxu0 0.0
    %769 = vmatprep.subr.mxu0 0.0
    %770 = vmatpush2.msra.mxu0 0.0
    %771 = vmatprep.subr.mxu0 0.0
    %772 = vmatpush2.msra.mxu0 0.0
    %773 = vmatprep.subr.mxu0 0.0
    %774 = vmatpush2.msra.mxu0 0.0
    %775 = vmatprep.subr.mxu0 0.0
    %776 = vmatpush2.msra.mxu0 0.0
    %777 = vmatprep.subr.mxu0 0.0
    %778 = vmatpush2.msra.mxu0 0.0
    %779 = vmatprep.subr.mxu0 0.0
    %780 = vmatpush2.msra.mxu0 0.0
    %781 = vmatprep.subr.mxu0 0.0
    %782 = vmatpush2.msra.mxu0 0.0
    %783 = vmatprep.subr.mxu0 0.0
    %784 = vmatpush2.msra.mxu0 0.0
    %785 = vmatprep.subr.mxu0 0.0
    %786 = vmatpush2.msra.mxu0 0.0
    %787 = vmatprep.subr.mxu0 0.0
    %788 = vmatpush2.msra.mxu0 0.0
    %789 = vmatprep.subr.mxu0 0.0
    %790 = vmatpush2.msra.mxu0 0.0
    %791 = vmatprep.subr.mxu0 0.0
    %792 = vmatpush2.msra.mxu0 0.0
    %793 = vmatprep.mubr.f32.mxu0 0.0
    %794 = vmatmul.mubr.f32.gmra.mxu0 %v727
    %v795 = vpop.f32.mrf.mxu0
    %v796 = vadd.f32 %v723, %v795
    %v797 = vpop.f32.mrf.mxu0
    %798 = vdwg.mxu0
    %v799 = vadd.f32 %v796, %v441
    %v800 = vxor.u32 %v799, 2147483648
    %v801 = vmul.f32 %v800, 1.442695
    %v802 = vpow.pop %v801
    %v803 = vadd.f32 %v802, 1.0
    %v804 = vrcp.pop %v803
    %v805 = vmul.f32 1.0, %v804
    %v806 = vtanh.pop %v799
    %v807 = vmul.f32 %v805, %v461
    %809 = vrot.lane.b32.xlu0 %v806, 64
    %v810 = vpop.permute.xlu0 %809
    %v812 = vmul.f32 %v805, %v810
    %814 = vrot.lane.b32.xlu0 %v812, 32
    %v815 = vpop.permute.xlu0 %814
    %v817 = vadd.f32 %v807, %v815
    %v818 = vtanh.pop %v817
    %820 = vrot.lane.b32.xlu0 %v818, 64
    %v821 = vpop.permute.xlu0 %820
    %v823 = vmul.f32 %v805, %v821
    %825 = vrot.lane.b32.xlu0 %v651, 32
    %v826 = vpop.permute.xlu0 %825
    %s828 = scalar_lea.vmem [#allocation11], 2
    %829 = vst.msk [vmem:[%s828] sm:$0x3] %vm472, %v826
    %831 = vrot.lane.b32.xlu0 %v823, 32
    %v832 = vpop.permute.xlu0 %831
    %s834 = scalar_lea.vmem [#allocation12], 12
    %835 = vst.msk [vmem:[%s834] sm:$0x3] %vm472, %v832
    %s836 = scalar_lea.vmem [#allocation2], 4
    %v837 = vld [vmem:[%s836] sm:$0x3]
    %v838 = vsel %vm113, %v826, 0
    %840 = vmatprep.subr.mxu0 0.0
    %841 = vmatpush1.msra.mxu0 0.0
    %842 = vmatprep.subr.mxu0 0.0
    %843 = vmatpush1.msra.mxu0 0.0
    %844 = vmatprep.subr.mxu0 0.0
    %845 = vmatpush1.msra.mxu0 0.0
    %846 = vmatprep.subr.mxu0 0.0
    %847 = vmatpush1.msra.mxu0 0.0
    %848 = vmatprep.subr.mxu0 0.0
    %849 = vmatpush1.msra.mxu0 0.0
    %850 = vmatprep.subr.mxu0 0.0
    %851 = vmatpush1.msra.mxu0 0.0
    %852 = vmatprep.subr.mxu0 0.0
    %853 = vmatpush1.msra.mxu0 0.0
    %854 = vmatprep.subr.mxu0 0.0
    %855 = vmatpush1.msra.mxu0 0.0
    %856 = vmatprep.subr.mxu0 0.0
    %857 = vmatpush1.msra.mxu0 0.0
    %858 = vmatprep.subr.mxu0 0.0
    %859 = vmatpush1.msra.mxu0 0.0
    %860 = vmatprep.subr.mxu0 0.0
    %861 = vmatpush1.msra.mxu0 0.0
    %862 = vmatprep.subr.mxu0 0.0
    %863 = vmatpush1.msra.mxu0 0.0
    %864 = vmatprep.subr.mxu0 0.0
    %865 = vmatpush1.msra.mxu0 %v103
    %866 = vmatprep.subr.mxu0 0.0
    %867 = vmatpush1.msra.mxu0 %v102
    %868 = vmatprep.subr.mxu0 0.0
    %869 = vmatpush1.msra.mxu0 %v101
    %870 = vmatprep.subr.mxu0 0.0
    %871 = vmatpush1.msra.mxu0 %v100
    %872 = vmatprep.subr.mxu0 0.0
    %873 = vmatpush2.msra.mxu0 0.0
    %874 = vmatprep.subr.mxu0 0.0
    %875 = vmatpush2.msra.mxu0 0.0
    %876 = vmatprep.subr.mxu0 0.0
    %877 = vmatpush2.msra.mxu0 0.0
    %878 = vmatprep.subr.mxu0 0.0
    %879 = vmatpush2.msra.mxu0 0.0
    %880 = vmatprep.subr.mxu0 0.0
    %881 = vmatpush2.msra.mxu0 0.0
    %882 = vmatprep.subr.mxu0 0.0
    %883 = vmatpush2.msra.mxu0 0.0
    %884 = vmatprep.subr.mxu0 0.0
    %885 = vmatpush2.msra.mxu0 0.0
    %886 = vmatprep.subr.mxu0 0.0
    %887 = vmatpush2.msra.mxu0 0.0
    %888 = vmatprep.subr.mxu0 0.0
    %889 = vmatpush2.msra.mxu0 0.0
    %890 = vmatprep.subr.mxu0 0.0
    %891 = vmatpush2.msra.mxu0 0.0
    %892 = vmatprep.subr.mxu0 0.0
    %893 = vmatpush2.msra.mxu0 0.0
    %894 = vmatprep.subr.mxu0 0.0
    %895 = vmatpush2.msra.mxu0 0.0
    %896 = vmatprep.subr.mxu0 0.0
    %897 = vmatpush2.msra.mxu0 0.0
    %898 = vmatprep.subr.mxu0 0.0
    %899 = vmatpush2.msra.mxu0 0.0
    %900 = vmatprep.subr.mxu0 0.0
    %901 = vmatpush2.msra.mxu0 0.0
    %902 = vmatprep.subr.mxu0 0.0
    %903 = vmatpush2.msra.mxu0 0.0
    %904 = vmatprep.mubr.f32.mxu0 0.0
    %905 = vmatmul.mubr.f32.gmra.mxu0 %v838
    %v906 = vpop.f32.mrf.mxu0
    %v907 = vadd.f32 0.0, %v906
    %v908 = vpop.f32.mrf.mxu0
    %909 = vdwg.mxu0
    %v911 = vsel %vm187, %v837, 0
    %913 = vmatprep.subr.mxu0 0.0
    %914 = vmatpush1.msra.mxu0 0.0
    %915 = vmatprep.subr.mxu0 0.0
    %916 = vmatpush1.msra.mxu0 0.0
    %917 = vmatprep.subr.mxu0 0.0
    %918 = vmatpush1.msra.mxu0 0.0
    %919 = vmatprep.subr.mxu0 0.0
    %920 = vmatpush1.msra.mxu0 0.0
    %921 = vmatprep.subr.mxu0 0.0
    %922 = vmatpush1.msra.mxu0 0.0
    %923 = vmatprep.subr.mxu0 0.0
    %924 = vmatpush1.msra.mxu0 0.0
    %925 = vmatprep.subr.mxu0 0.0
    %926 = vmatpush1.msra.mxu0 0.0
    %927 = vmatprep.subr.mxu0 0.0
    %928 = vmatpush1.msra.mxu0 0.0
    %929 = vmatprep.subr.mxu0 0.0
    %930 = vmatpush1.msra.mxu0 0.0
    %931 = vmatprep.subr.mxu0 0.0
    %932 = vmatpush1.msra.mxu0 0.0
    %933 = vmatprep.subr.mxu0 0.0
    %934 = vmatpush1.msra.mxu0 0.0
    %935 = vmatprep.subr.mxu0 0.0
    %936 = vmatpush1.msra.mxu0 0.0
    %937 = vmatprep.subr.mxu0 0.0
    %938 = vmatpush1.msra.mxu0 0.0
    %939 = vmatprep.subr.mxu0 0.0
    %940 = vmatpush1.msra.mxu0 0.0
    %941 = vmatprep.subr.mxu0 0.0
    %942 = vmatpush1.msra.mxu0 %v99
    %943 = vmatprep.subr.mxu0 0.0
    %944 = vmatpush1.msra.mxu0 %v98
    %945 = vmatprep.subr.mxu0 0.0
    %946 = vmatpush2.msra.mxu0 0.0
    %947 = vmatprep.subr.mxu0 0.0
    %948 = vmatpush2.msra.mxu0 0.0
    %949 = vmatprep.subr.mxu0 0.0
    %950 = vmatpush2.msra.mxu0 0.0
    %951 = vmatprep.subr.mxu0 0.0
    %952 = vmatpush2.msra.mxu0 0.0
    %953 = vmatprep.subr.mxu0 0.0
    %954 = vmatpush2.msra.mxu0 0.0
    %955 = vmatprep.subr.mxu0 0.0
    %956 = vmatpush2.msra.mxu0 0.0
    %957 = vmatprep.subr.mxu0 0.0
    %958 = vmatpush2.msra.mxu0 0.0
    %959 = vmatprep.subr.mxu0 0.0
    %960 = vmatpush2.msra.mxu0 0.0
    %961 = vmatprep.subr.mxu0 0.0
    %962 = vmatpush2.msra.mxu0 0.0
    %963 = vmatprep.subr.mxu0 0.0
    %964 = vmatpush2.msra.mxu0 0.0
    %965 = vmatprep.subr.mxu0 0.0
    %966 = vmatpush2.msra.mxu0 0.0
    %967 = vmatprep.subr.mxu0 0.0
    %968 = vmatpush2.msra.mxu0 0.0
    %969 = vmatprep.subr.mxu0 0.0
    %970 = vmatpush2.msra.mxu0 0.0
    %971 = vmatprep.subr.mxu0 0.0
    %972 = vmatpush2.msra.mxu0 0.0
    %973 = vmatprep.subr.mxu0 0.0
    %974 = vmatpush2.msra.mxu0 0.0
    %975 = vmatprep.subr.mxu0 0.0
    %976 = vmatpush2.msra.mxu0 0.0
    %977 = vmatprep.mubr.f32.mxu0 0.0
    %978 = vmatmul.mubr.f32.gmra.mxu0 %v911
    %v979 = vpop.f32.mrf.mxu0
    %v980 = vadd.f32 %v907, %v979
    %v981 = vpop.f32.mrf.mxu0
    %982 = vdwg.mxu0
    %v983 = vadd.f32 %v980, %v265
    %v984 = vxor.u32 %v983, 2147483648
    %v985 = vmul.f32 %v984, 1.442695
    %v986 = vpow.pop %v985
    %v987 = vadd.f32 %v986, 1.0
    %v988 = vrcp.pop %v987
    %v989 = vmul.f32 1.0, %v988
    %v990 = vtanh.pop %v983
    %v991 = vmul.f32 %v989, %v645
    %993 = vrot.lane.b32.xlu0 %v990, 64
    %v994 = vpop.permute.xlu0 %993
    %v996 = vmul.f32 %v989, %v994
    %998 = vrot.lane.b32.xlu0 %v996, 32
    %v999 = vpop.permute.xlu0 %998
    %v1001 = vadd.f32 %v991, %v999
    %v1002 = vtanh.pop %v1001
    %1004 = vrot.lane.b32.xlu0 %v1002, 64
    %v1005 = vpop.permute.xlu0 %1004
    %v1007 = vmul.f32 %v989, %v1005
    %s1008 = scalar_lea.vmem [#allocation2], 10
    %v1009 = vld [vmem:[%s1008] sm:$0x3]
    %v1010 = vsel %vm113, %v832, 0
    %1012 = vmatprep.subr.mxu0 0.0
    %1013 = vmatpush1.msra.mxu0 0.0
    %1014 = vmatprep.subr.mxu0 0.0
    %1015 = vmatpush1.msra.mxu0 0.0
    %1016 = vmatprep.subr.mxu0 0.0
    %1017 = vmatpush1.msra.mxu0 0.0
    %1018 = vmatprep.subr.mxu0 0.0
    %1019 = vmatpush1.msra.mxu0 0.0
    %1020 = vmatprep.subr.mxu0 0.0
    %1021 = vmatpush1.msra.mxu0 0.0
    %1022 = vmatprep.subr.mxu0 0.0
    %1023 = vmatpush1.msra.mxu0 0.0
    %1024 = vmatprep.subr.mxu0 0.0
    %1025 = vmatpush1.msra.mxu0 0.0
    %1026 = vmatprep.subr.mxu0 0.0
    %1027 = vmatpush1.msra.mxu0 0.0
    %1028 = vmatprep.subr.mxu0 0.0
    %1029 = vmatpush1.msra.mxu0 0.0
    %1030 = vmatprep.subr.mxu0 0.0
    %1031 = vmatpush1.msra.mxu0 0.0
    %1032 = vmatprep.subr.mxu0 0.0
    %1033 = vmatpush1.msra.mxu0 0.0
    %1034 = vmatprep.subr.mxu0 0.0
    %1035 = vmatpush1.msra.mxu0 0.0
    %1036 = vmatprep.subr.mxu0 0.0
    %1037 = vmatpush1.msra.mxu0 %v110
    %1038 = vmatprep.subr.mxu0 0.0
    %1039 = vmatpush1.msra.mxu0 %v109
    %1040 = vmatprep.subr.mxu0 0.0
    %1041 = vmatpush1.msra.mxu0 %v108
    %1042 = vmatprep.subr.mxu0 0.0
    %1043 = vmatpush1.msra.mxu0 %v107
    %1044 = vmatprep.subr.mxu0 0.0
    %1045 = vmatpush2.msra.mxu0 0.0
    %1046 = vmatprep.subr.mxu0 0.0
    %1047 = vmatpush2.msra.mxu0 0.0
    %1048 = vmatprep.subr.mxu0 0.0
    %1049 = vmatpush2.msra.mxu0 0.0
    %1050 = vmatprep.subr.mxu0 0.0
    %1051 = vmatpush2.msra.mxu0 0.0
    %1052 = vmatprep.subr.mxu0 0.0
    %1053 = vmatpush2.msra.mxu0 0.0
    %1054 = vmatprep.subr.mxu0 0.0
    %1055 = vmatpush2.msra.mxu0 0.0
    %1056 = vmatprep.subr.mxu0 0.0
    %1057 = vmatpush2.msra.mxu0 0.0
    %1058 = vmatprep.subr.mxu0 0.0
    %1059 = vmatpush2.msra.mxu0 0.0
    %1060 = vmatprep.subr.mxu0 0.0
    %1061 = vmatpush2.msra.mxu0 0.0
    %1062 = vmatprep.subr.mxu0 0.0
    %1063 = vmatpush2.msra.mxu0 0.0
    %1064 = vmatprep.subr.mxu0 0.0
    %1065 = vmatpush2.msra.mxu0 0.0
    %1066 = vmatprep.subr.mxu0 0.0
    %1067 = vmatpush2.msra.mxu0 0.0
    %1068 = vmatprep.subr.mxu0 0.0
    %1069 = vmatpush2.msra.mxu0 0.0
    %1070 = vmatprep.subr.mxu0 0.0
    %1071 = vmatpush2.msra.mxu0 0.0
    %1072 = vmatprep.subr.mxu0 0.0
    %1073 = vmatpush2.msra.mxu0 0.0
    %1074 = vmatprep.subr.mxu0 0.0
    %1075 = vmatpush2.msra.mxu0 0.0
    %1076 = vmatprep.mubr.f32.mxu0 0.0
    %1077 = vmatmul.mubr.f32.gmra.mxu0 %v1010
    %v1078 = vpop.f32.mrf.mxu0
    %v1079 = vadd.f32 0.0, %v1078
    %v1080 = vpop.f32.mrf.mxu0
    %1081 = vdwg.mxu0
    %v1083 = vsel %vm187, %v1009, 0
    %1085 = vmatprep.subr.mxu0 0.0
    %1086 = vmatpush1.msra.mxu0 0.0
    %1087 = vmatprep.subr.mxu0 0.0
    %1088 = vmatpush1.msra.mxu0 0.0
    %1089 = vmatprep.subr.mxu0 0.0
    %1090 = vmatpush1.msra.mxu0 0.0
    %1091 = vmatprep.subr.mxu0 0.0
    %1092 = vmatpush1.msra.mxu0 0.0
    %1093 = vmatprep.subr.mxu0 0.0
    %1094 = vmatpush1.msra.mxu0 0.0
    %1095 = vmatprep.subr.mxu0 0.0
    %1096 = vmatpush1.msra.mxu0 0.0
    %1097 = vmatprep.subr.mxu0 0.0
    %1098 = vmatpush1.msra.mxu0 0.0
    %1099 = vmatprep.subr.mxu0 0.0
    %1100 = vmatpush1.msra.mxu0 0.0
    %1101 = vmatprep.subr.mxu0 0.0
    %1102 = vmatpush1.msra.mxu0 0.0
    %1103 = vmatprep.subr.mxu0 0.0
    %1104 = vmatpush1.msra.mxu0 0.0
    %1105 = vmatprep.subr.mxu0 0.0
    %1106 = vmatpush1.msra.mxu0 0.0
    %1107 = vmatprep.subr.mxu0 0.0
    %1108 = vmatpush1.msra.mxu0 0.0
    %1109 = vmatprep.subr.mxu0 0.0
    %1110 = vmatpush1.msra.mxu0 0.0
    %1111 = vmatprep.subr.mxu0 0.0
    %1112 = vmatpush1.msra.mxu0 0.0
    %1113 = vmatprep.subr.mxu0 0.0
    %1114 = vmatpush1.msra.mxu0 %v106
    %1115 = vmatprep.subr.mxu0 0.0
    %1116 = vmatpush1.msra.mxu0 %v105
    %1117 = vmatprep.subr.mxu0 0.0
    %1118 = vmatpush2.msra.mxu0 0.0
    %1119 = vmatprep.subr.mxu0 0.0
    %1120 = vmatpush2.msra.mxu0 0.0
    %1121 = vmatprep.subr.mxu0 0.0
    %1122 = vmatpush2.msra.mxu0 0.0
    %1123 = vmatprep.subr.mxu0 0.0
    %1124 = vmatpush2.msra.mxu0 0.0
    %1125 = vmatprep.subr.mxu0 0.0
    %1126 = vmatpush2.msra.mxu0 0.0
    %1127 = vmatprep.subr.mxu0 0.0
    %1128 = vmatpush2.msra.mxu0 0.0
    %1129 = vmatprep.subr.mxu0 0.0
    %1130 = vmatpush2.msra.mxu0 0.0
    %1131 = vmatprep.subr.mxu0 0.0
    %1132 = vmatpush2.msra.mxu0 0.0
    %1133 = vmatprep.subr.mxu0 0.0
    %1134 = vmatpush2.msra.mxu0 0.0
    %1135 = vmatprep.subr.mxu0 0.0
    %1136 = vmatpush2.msra.mxu0 0.0
    %1137 = vmatprep.subr.mxu0 0.0
    %1138 = vmatpush2.msra.mxu0 0.0
    %1139 = vmatprep.subr.mxu0 0.0
    %1140 = vmatpush2.msra.mxu0 0.0
    %1141 = vmatprep.subr.mxu0 0.0
    %1142 = vmatpush2.msra.mxu0 0.0
    %1143 = vmatprep.subr.mxu0 0.0
    %1144 = vmatpush2.msra.mxu0 0.0
    %1145 = vmatprep.subr.mxu0 0.0
    %1146 = vmatpush2.msra.mxu0 0.0
    %1147 = vmatprep.subr.mxu0 0.0
    %1148 = vmatpush2.msra.mxu0 0.0
    %1149 = vmatprep.mubr.f32.mxu0 0.0
    %1150 = vmatmul.mubr.f32.gmra.mxu0 %v1083
    %v1151 = vpop.f32.mrf.mxu0
    %v1152 = vadd.f32 %v1079, %v1151
    %v1153 = vpop.f32.mrf.mxu0
    %1154 = vdwg.mxu0
    %v1155 = vadd.f32 %v1152, %v441
    %v1156 = vxor.u32 %v1155, 2147483648
    %v1157 = vmul.f32 %v1156, 1.442695
    %v1158 = vpow.pop %v1157
    %v1159 = vadd.f32 %v1158, 1.0
    %v1160 = vrcp.pop %v1159
    %v1161 = vmul.f32 1.0, %v1160
    %v1162 = vtanh.pop %v1155
    %v1163 = vmul.f32 %v1161, %v817
    %1165 = vrot.lane.b32.xlu0 %v1162, 64
    %v1166 = vpop.permute.xlu0 %1165
    %v1168 = vmul.f32 %v1161, %v1166
    %1170 = vrot.lane.b32.xlu0 %v1168, 32
    %v1171 = vpop.permute.xlu0 %1170
    %v1173 = vadd.f32 %v1163, %v1171
    %v1174 = vtanh.pop %v1173
    %1176 = vrot.lane.b32.xlu0 %v1174, 64
    %v1177 = vpop.permute.xlu0 %1176
    %v1179 = vmul.f32 %v1161, %v1177
    %1181 = vrot.lane.b32.xlu0 %v1007, 32
    %v1182 = vpop.permute.xlu0 %1181
    %s1184 = scalar_lea.vmem [#allocation11], 4
    %1185 = vst.msk [vmem:[%s1184] sm:$0x3] %vm472, %v1182
    %1187 = vrot.lane.b32.xlu0 %v1179, 32
    %v1188 = vpop.permute.xlu0 %1187
    %s1190 = scalar_lea.vmem [#allocation12], 10
    %1191 = vst.msk [vmem:[%s1190] sm:$0x3] %vm472, %v1188
    %s1192 = scalar_lea.vmem [#allocation2], 6
    %v1193 = vld [vmem:[%s1192] sm:$0x3]
    %v1194 = vsel %vm113, %v1182, 0
    %1196 = vmatprep.subr.mxu0 0.0
    %1197 = vmatpush1.msra.mxu0 0.0
    %1198 = vmatprep.subr.mxu0 0.0
    %1199 = vmatpush1.msra.mxu0 0.0
    %1200 = vmatprep.subr.mxu0 0.0
    %1201 = vmatpush1.msra.mxu0 0.0
    %1202 = vmatprep.subr.mxu0 0.0
    %1203 = vmatpush1.msra.mxu0 0.0
    %1204 = vmatprep.subr.mxu0 0.0
    %1205 = vmatpush1.msra.mxu0 0.0
    %1206 = vmatprep.subr.mxu0 0.0
    %1207 = vmatpush1.msra.mxu0 0.0
    %1208 = vmatprep.subr.mxu0 0.0
    %1209 = vmatpush1.msra.mxu0 0.0
    %1210 = vmatprep.subr.mxu0 0.0
    %1211 = vmatpush1.msra.mxu0 0.0
    %1212 = vmatprep.subr.mxu0 0.0
    %1213 = vmatpush1.msra.mxu0 0.0
    %1214 = vmatprep.subr.mxu0 0.0
    %1215 = vmatpush1.msra.mxu0 0.0
    %1216 = vmatprep.subr.mxu0 0.0
    %1217 = vmatpush1.msra.mxu0 0.0
    %1218 = vmatprep.subr.mxu0 0.0
    %1219 = vmatpush1.msra.mxu0 0.0
    %1220 = vmatprep.subr.mxu0 0.0
    %1221 = vmatpush1.msra.mxu0 %v103
    %1222 = vmatprep.subr.mxu0 0.0
    %1223 = vmatpush1.msra.mxu0 %v102
    %1224 = vmatprep.subr.mxu0 0.0
    %1225 = vmatpush1.msra.mxu0 %v101
    %1226 = vmatprep.subr.mxu0 0.0
    %1227 = vmatpush1.msra.mxu0 %v100
    %1228 = vmatprep.subr.mxu0 0.0
    %1229 = vmatpush2.msra.mxu0 0.0
    %1230 = vmatprep.subr.mxu0 0.0
    %1231 = vmatpush2.msra.mxu0 0.0
    %1232 = vmatprep.subr.mxu0 0.0
    %1233 = vmatpush2.msra.mxu0 0.0
    %1234 = vmatprep.subr.mxu0 0.0
    %1235 = vmatpush2.msra.mxu0 0.0
    %1236 = vmatprep.subr.mxu0 0.0
    %1237 = vmatpush2.msra.mxu0 0.0
    %1238 = vmatprep.subr.mxu0 0.0
    %1239 = vmatpush2.msra.mxu0 0.0
    %1240 = vmatprep.subr.mxu0 0.0
    %1241 = vmatpush2.msra.mxu0 0.0
    %1242 = vmatprep.subr.mxu0 0.0
    %1243 = vmatpush2.msra.mxu0 0.0
    %1244 = vmatprep.subr.mxu0 0.0
    %1245 = vmatpush2.msra.mxu0 0.0
    %1246 = vmatprep.subr.mxu0 0.0
    %1247 = vmatpush2.msra.mxu0 0.0
    %1248 = vmatprep.subr.mxu0 0.0
    %1249 = vmatpush2.msra.mxu0 0.0
    %1250 = vmatprep.subr.mxu0 0.0
    %1251 = vmatpush2.msra.mxu0 0.0
    %1252 = vmatprep.subr.mxu0 0.0
    %1253 = vmatpush2.msra.mxu0 0.0
    %1254 = vmatprep.subr.mxu0 0.0
    %1255 = vmatpush2.msra.mxu0 0.0
    %1256 = vmatprep.subr.mxu0 0.0
    %1257 = vmatpush2.msra.mxu0 0.0
    %1258 = vmatprep.subr.mxu0 0.0
    %1259 = vmatpush2.msra.mxu0 0.0
    %1260 = vmatprep.mubr.f32.mxu0 0.0
    %1261 = vmatmul.mubr.f32.gmra.mxu0 %v1194
    %v1262 = vpop.f32.mrf.mxu0
    %v1263 = vadd.f32 0.0, %v1262
    %v1264 = vpop.f32.mrf.mxu0
    %1265 = vdwg.mxu0
    %v1267 = vsel %vm187, %v1193, 0
    %1269 = vmatprep.subr.mxu0 0.0
    %1270 = vmatpush1.msra.mxu0 0.0
    %1271 = vmatprep.subr.mxu0 0.0
    %1272 = vmatpush1.msra.mxu0 0.0
    %1273 = vmatprep.subr.mxu0 0.0
    %1274 = vmatpush1.msra.mxu0 0.0
    %1275 = vmatprep.subr.mxu0 0.0
    %1276 = vmatpush1.msra.mxu0 0.0
    %1277 = vmatprep.subr.mxu0 0.0
    %1278 = vmatpush1.msra.mxu0 0.0
    %1279 = vmatprep.subr.mxu0 0.0
    %1280 = vmatpush1.msra.mxu0 0.0
    %1281 = vmatprep.subr.mxu0 0.0
    %1282 = vmatpush1.msra.mxu0 0.0
    %1283 = vmatprep.subr.mxu0 0.0
    %1284 = vmatpush1.msra.mxu0 0.0
    %1285 = vmatprep.subr.mxu0 0.0
    %1286 = vmatpush1.msra.mxu0 0.0
    %1287 = vmatprep.subr.mxu0 0.0
    %1288 = vmatpush1.msra.mxu0 0.0
    %1289 = vmatprep.subr.mxu0 0.0
    %1290 = vmatpush1.msra.mxu0 0.0
    %1291 = vmatprep.subr.mxu0 0.0
    %1292 = vmatpush1.msra.mxu0 0.0
    %1293 = vmatprep.subr.mxu0 0.0
    %1294 = vmatpush1.msra.mxu0 0.0
    %1295 = vmatprep.subr.mxu0 0.0
    %1296 = vmatpush1.msra.mxu0 0.0
    %1297 = vmatprep.subr.mxu0 0.0
    %1298 = vmatpush1.msra.mxu0 %v99
    %1299 = vmatprep.subr.mxu0 0.0
    %1300 = vmatpush1.msra.mxu0 %v98
    %1301 = vmatprep.subr.mxu0 0.0
    %1302 = vmatpush2.msra.mxu0 0.0
    %1303 = vmatprep.subr.mxu0 0.0
    %1304 = vmatpush2.msra.mxu0 0.0
    %1305 = vmatprep.subr.mxu0 0.0
    %1306 = vmatpush2.msra.mxu0 0.0
    %1307 = vmatprep.subr.mxu0 0.0
    %1308 = vmatpush2.msra.mxu0 0.0
    %1309 = vmatprep.subr.mxu0 0.0
    %1310 = vmatpush2.msra.mxu0 0.0
    %1311 = vmatprep.subr.mxu0 0.0
    %1312 = vmatpush2.msra.mxu0 0.0
    %1313 = vmatprep.subr.mxu0 0.0
    %1314 = vmatpush2.msra.mxu0 0.0
    %1315 = vmatprep.subr.mxu0 0.0
    %1316 = vmatpush2.msra.mxu0 0.0
    %1317 = vmatprep.subr.mxu0 0.0
    %1318 = vmatpush2.msra.mxu0 0.0
    %1319 = vmatprep.subr.mxu0 0.0
    %1320 = vmatpush2.msra.mxu0 0.0
    %1321 = vmatprep.subr.mxu0 0.0
    %1322 = vmatpush2.msra.mxu0 0.0
    %1323 = vmatprep.subr.mxu0 0.0
    %1324 = vmatpush2.msra.mxu0 0.0
    %1325 = vmatprep.subr.mxu0 0.0
    %1326 = vmatpush2.msra.mxu0 0.0
    %1327 = vmatprep.subr.mxu0 0.0
    %1328 = vmatpush2.msra.mxu0 0.0
    %1329 = vmatprep.subr.mxu0 0.0
    %1330 = vmatpush2.msra.mxu0 0.0
    %1331 = vmatprep.subr.mxu0 0.0
    %1332 = vmatpush2.msra.mxu0 0.0
    %1333 = vmatprep.mubr.f32.mxu0 0.0
    %1334 = vmatmul.mubr.f32.gmra.mxu0 %v1267
    %v1335 = vpop.f32.mrf.mxu0
    %v1336 = vadd.f32 %v1263, %v1335
    %v1337 = vpop.f32.mrf.mxu0
    %1338 = vdwg.mxu0
    %v1339 = vadd.f32 %v1336, %v265
    %v1340 = vxor.u32 %v1339, 2147483648
    %v1341 = vmul.f32 %v1340, 1.442695
    %v1342 = vpow.pop %v1341
    %v1343 = vadd.f32 %v1342, 1.0
    %v1344 = vrcp.pop %v1343
    %v1345 = vmul.f32 1.0, %v1344
    %v1346 = vtanh.pop %v1339
    %v1347 = vmul.f32 %v1345, %v1001
    %1349 = vrot.lane.b32.xlu0 %v1346, 64
    %v1350 = vpop.permute.xlu0 %1349
    %v1352 = vmul.f32 %v1345, %v1350
    %1354 = vrot.lane.b32.xlu0 %v1352, 32
    %v1355 = vpop.permute.xlu0 %1354
    %v1357 = vadd.f32 %v1347, %v1355
    %v1358 = vtanh.pop %v1357
    %1360 = vrot.lane.b32.xlu0 %v1358, 64
    %v1361 = vpop.permute.xlu0 %1360
    %v1363 = vmul.f32 %v1345, %v1361
    %s1364 = scalar_lea.vmem [#allocation2], 8
    %v1365 = vld [vmem:[%s1364] sm:$0x3]
    %v1366 = vsel %vm113, %v1188, 0
    %1368 = vmatprep.subr.mxu0 0.0
    %1369 = vmatpush1.msra.mxu0 0.0
    %1370 = vmatprep.subr.mxu0 0.0
    %1371 = vmatpush1.msra.mxu0 0.0
    %1372 = vmatprep.subr.mxu0 0.0
    %1373 = vmatpush1.msra.mxu0 0.0
    %1374 = vmatprep.subr.mxu0 0.0
    %1375 = vmatpush1.msra.mxu0 0.0
    %1376 = vmatprep.subr.mxu0 0.0
    %1377 = vmatpush1.msra.mxu0 0.0
    %1378 = vmatprep.subr.mxu0 0.0
    %1379 = vmatpush1.msra.mxu0 0.0
    %1380 = vmatprep.subr.mxu0 0.0
    %1381 = vmatpush1.msra.mxu0 0.0
    %1382 = vmatprep.subr.mxu0 0.0
    %1383 = vmatpush1.msra.mxu0 0.0
    %1384 = vmatprep.subr.mxu0 0.0
    %1385 = vmatpush1.msra.mxu0 0.0
    %1386 = vmatprep.subr.mxu0 0.0
    %1387 = vmatpush1.msra.mxu0 0.0
    %1388 = vmatprep.subr.mxu0 0.0
    %1389 = vmatpush1.msra.mxu0 0.0
    %1390 = vmatprep.subr.mxu0 0.0
    %1391 = vmatpush1.msra.mxu0 0.0
    %1392 = vmatprep.subr.mxu0 0.0
    %1393 = vmatpush1.msra.mxu0 %v110
    %1394 = vmatprep.subr.mxu0 0.0
    %1395 = vmatpush1.msra.mxu0 %v109
    %1396 = vmatprep.subr.mxu0 0.0
    %1397 = vmatpush1.msra.mxu0 %v108
    %1398 = vmatprep.subr.mxu0 0.0
    %1399 = vmatpush1.msra.mxu0 %v107
    %1400 = vmatprep.subr.mxu0 0.0
    %1401 = vmatpush2.msra.mxu0 0.0
    %1402 = vmatprep.subr.mxu0 0.0
    %1403 = vmatpush2.msra.mxu0 0.0
    %1404 = vmatprep.subr.mxu0 0.0
    %1405 = vmatpush2.msra.mxu0 0.0
    %1406 = vmatprep.subr.mxu0 0.0
    %1407 = vmatpush2.msra.mxu0 0.0
    %1408 = vmatprep.subr.mxu0 0.0
    %1409 = vmatpush2.msra.mxu0 0.0
    %1410 = vmatprep.subr.mxu0 0.0
    %1411 = vmatpush2.msra.mxu0 0.0
    %1412 = vmatprep.subr.mxu0 0.0
    %1413 = vmatpush2.msra.mxu0 0.0
    %1414 = vmatprep.subr.mxu0 0.0
    %1415 = vmatpush2.msra.mxu0 0.0
    %1416 = vmatprep.subr.mxu0 0.0
    %1417 = vmatpush2.msra.mxu0 0.0
    %1418 = vmatprep.subr.mxu0 0.0
    %1419 = vmatpush2.msra.mxu0 0.0
    %1420 = vmatprep.subr.mxu0 0.0
    %1421 = vmatpush2.msra.mxu0 0.0
    %1422 = vmatprep.subr.mxu0 0.0
    %1423 = vmatpush2.msra.mxu0 0.0
    %1424 = vmatprep.subr.mxu0 0.0
    %1425 = vmatpush2.msra.mxu0 0.0
    %1426 = vmatprep.subr.mxu0 0.0
    %1427 = vmatpush2.msra.mxu0 0.0
    %1428 = vmatprep.subr.mxu0 0.0
    %1429 = vmatpush2.msra.mxu0 0.0
    %1430 = vmatprep.subr.mxu0 0.0
    %1431 = vmatpush2.msra.mxu0 0.0
    %1432 = vmatprep.mubr.f32.mxu0 0.0
    %1433 = vmatmul.mubr.f32.gmra.mxu0 %v1366
    %v1434 = vpop.f32.mrf.mxu0
    %v1435 = vadd.f32 0.0, %v1434
    %v1436 = vpop.f32.mrf.mxu0
    %1437 = vdwg.mxu0
    %v1439 = vsel %vm187, %v1365, 0
    %1441 = vmatprep.subr.mxu0 0.0
    %1442 = vmatpush1.msra.mxu0 0.0
    %1443 = vmatprep.subr.mxu0 0.0
    %1444 = vmatpush1.msra.mxu0 0.0
    %1445 = vmatprep.subr.mxu0 0.0
    %1446 = vmatpush1.msra.mxu0 0.0
    %1447 = vmatprep.subr.mxu0 0.0
    %1448 = vmatpush1.msra.mxu0 0.0
    %1449 = vmatprep.subr.mxu0 0.0
    %1450 = vmatpush1.msra.mxu0 0.0
    %1451 = vmatprep.subr.mxu0 0.0
    %1452 = vmatpush1.msra.mxu0 0.0
    %1453 = vmatprep.subr.mxu0 0.0
    %1454 = vmatpush1.msra.mxu0 0.0
    %1455 = vmatprep.subr.mxu0 0.0
    %1456 = vmatpush1.msra.mxu0 0.0
    %1457 = vmatprep.subr.mxu0 0.0
    %1458 = vmatpush1.msra.mxu0 0.0
    %1459 = vmatprep.subr.mxu0 0.0
    %1460 = vmatpush1.msra.mxu0 0.0
    %1461 = vmatprep.subr.mxu0 0.0
    %1462 = vmatpush1.msra.mxu0 0.0
    %1463 = vmatprep.subr.mxu0 0.0
    %1464 = vmatpush1.msra.mxu0 0.0
    %1465 = vmatprep.subr.mxu0 0.0
    %1466 = vmatpush1.msra.mxu0 0.0
    %1467 = vmatprep.subr.mxu0 0.0
    %1468 = vmatpush1.msra.mxu0 0.0
    %1469 = vmatprep.subr.mxu0 0.0
    %1470 = vmatpush1.msra.mxu0 %v106
    %1471 = vmatprep.subr.mxu0 0.0
    %1472 = vmatpush1.msra.mxu0 %v105
    %1473 = vmatprep.subr.mxu0 0.0
    %1474 = vmatpush2.msra.mxu0 0.0
    %1475 = vmatprep.subr.mxu0 0.0
    %1476 = vmatpush2.msra.mxu0 0.0
    %1477 = vmatprep.subr.mxu0 0.0
    %1478 = vmatpush2.msra.mxu0 0.0
    %1479 = vmatprep.subr.mxu0 0.0
    %1480 = vmatpush2.msra.mxu0 0.0
    %1481 = vmatprep.subr.mxu0 0.0
    %1482 = vmatpush2.msra.mxu0 0.0
    %1483 = vmatprep.subr.mxu0 0.0
    %1484 = vmatpush2.msra.mxu0 0.0
    %1485 = vmatprep.subr.mxu0 0.0
    %1486 = vmatpush2.msra.mxu0 0.0
    %1487 = vmatprep.subr.mxu0 0.0
    %1488 = vmatpush2.msra.mxu0 0.0
    %1489 = vmatprep.subr.mxu0 0.0
    %1490 = vmatpush2.msra.mxu0 0.0
    %1491 = vmatprep.subr.mxu0 0.0
    %1492 = vmatpush2.msra.mxu0 0.0
    %1493 = vmatprep.subr.mxu0 0.0
    %1494 = vmatpush2.msra.mxu0 0.0
    %1495 = vmatprep.subr.mxu0 0.0
    %1496 = vmatpush2.msra.mxu0 0.0
    %1497 = vmatprep.subr.mxu0 0.0
    %1498 = vmatpush2.msra.mxu0 0.0
    %1499 = vmatprep.subr.mxu0 0.0
    %1500 = vmatpush2.msra.mxu0 0.0
    %1501 = vmatprep.subr.mxu0 0.0
    %1502 = vmatpush2.msra.mxu0 0.0
    %1503 = vmatprep.subr.mxu0 0.0
    %1504 = vmatpush2.msra.mxu0 0.0
    %1505 = vmatprep.mubr.f32.mxu0 0.0
    %1506 = vmatmul.mubr.f32.gmra.mxu0 %v1439
    %v1507 = vpop.f32.mrf.mxu0
    %v1508 = vadd.f32 %v1435, %v1507
    %v1509 = vpop.f32.mrf.mxu0
    %1510 = vdwg.mxu0
    %v1511 = vadd.f32 %v1508, %v441
    %v1512 = vxor.u32 %v1511, 2147483648
    %v1513 = vmul.f32 %v1512, 1.442695
    %v1514 = vpow.pop %v1513
    %v1515 = vadd.f32 %v1514, 1.0
    %v1516 = vrcp.pop %v1515
    %v1517 = vmul.f32 1.0, %v1516
    %v1518 = vtanh.pop %v1511
    %v1519 = vmul.f32 %v1517, %v1173
    %1521 = vrot.lane.b32.xlu0 %v1518, 64
    %v1522 = vpop.permute.xlu0 %1521
    %v1524 = vmul.f32 %v1517, %v1522
    %1526 = vrot.lane.b32.xlu0 %v1524, 32
    %v1527 = vpop.permute.xlu0 %1526
    %v1529 = vadd.f32 %v1519, %v1527
    %v1530 = vtanh.pop %v1529
    %1532 = vrot.lane.b32.xlu0 %v1530, 64
    %v1533 = vpop.permute.xlu0 %1532
    %v1535 = vmul.f32 %v1517, %v1533
    %1537 = vrot.lane.b32.xlu0 %v1363, 32
    %v1538 = vpop.permute.xlu0 %1537
    %s1540 = scalar_lea.vmem [#allocation11], 6
    %1541 = vst.msk [vmem:[%s1540] sm:$0x3] %vm472, %v1538
    %1543 = vrot.lane.b32.xlu0 %v1535, 32
    %v1544 = vpop.permute.xlu0 %1543
    %s1546 = scalar_lea.vmem [#allocation12], 8
    %1547 = vst.msk [vmem:[%s1546] sm:$0x3] %vm472, %v1544
    %v1548 = vld [vmem:[%s1364] sm:$0x3]
    %v1549 = vsel %vm113, %v1538, 0
    %1551 = vmatprep.subr.mxu0 0.0
    %1552 = vmatpush1.msra.mxu0 0.0
    %1553 = vmatprep.subr.mxu0 0.0
    %1554 = vmatpush1.msra.mxu0 0.0
    %1555 = vmatprep.subr.mxu0 0.0
    %1556 = vmatpush1.msra.mxu0 0.0
    %1557 = vmatprep.subr.mxu0 0.0
    %1558 = vmatpush1.msra.mxu0 0.0
    %1559 = vmatprep.subr.mxu0 0.0
    %1560 = vmatpush1.msra.mxu0 0.0
    %1561 = vmatprep.subr.mxu0 0.0
    %1562 = vmatpush1.msra.mxu0 0.0
    %1563 = vmatprep.subr.mxu0 0.0
    %1564 = vmatpush1.msra.mxu0 0.0
    %1565 = vmatprep.subr.mxu0 0.0
    %1566 = vmatpush1.msra.mxu0 0.0
    %1567 = vmatprep.subr.mxu0 0.0
    %1568 = vmatpush1.msra.mxu0 0.0
    %1569 = vmatprep.subr.mxu0 0.0
    %1570 = vmatpush1.msra.mxu0 0.0
    %1571 = vmatprep.subr.mxu0 0.0
    %1572 = vmatpush1.msra.mxu0 0.0
    %1573 = vmatprep.subr.mxu0 0.0
    %1574 = vmatpush1.msra.mxu0 0.0
    %1575 = vmatprep.subr.mxu0 0.0
    %1576 = vmatpush1.msra.mxu0 %v103
    %1577 = vmatprep.subr.mxu0 0.0
    %1578 = vmatpush1.msra.mxu0 %v102
    %1579 = vmatprep.subr.mxu0 0.0
    %1580 = vmatpush1.msra.mxu0 %v101
    %1581 = vmatprep.subr.mxu0 0.0
    %1582 = vmatpush1.msra.mxu0 %v100
    %1583 = vmatprep.subr.mxu0 0.0
    %1584 = vmatpush2.msra.mxu0 0.0
    %1585 = vmatprep.subr.mxu0 0.0
    %1586 = vmatpush2.msra.mxu0 0.0
    %1587 = vmatprep.subr.mxu0 0.0
    %1588 = vmatpush2.msra.mxu0 0.0
    %1589 = vmatprep.subr.mxu0 0.0
    %1590 = vmatpush2.msra.mxu0 0.0
    %1591 = vmatprep.subr.mxu0 0.0
    %1592 = vmatpush2.msra.mxu0 0.0
    %1593 = vmatprep.subr.mxu0 0.0
    %1594 = vmatpush2.msra.mxu0 0.0
    %1595 = vmatprep.subr.mxu0 0.0
    %1596 = vmatpush2.msra.mxu0 0.0
    %1597 = vmatprep.subr.mxu0 0.0
    %1598 = vmatpush2.msra.mxu0 0.0
    %1599 = vmatprep.subr.mxu0 0.0
    %1600 = vmatpush2.msra.mxu0 0.0
    %1601 = vmatprep.subr.mxu0 0.0
    %1602 = vmatpush2.msra.mxu0 0.0
    %1603 = vmatprep.subr.mxu0 0.0
    %1604 = vmatpush2.msra.mxu0 0.0
    %1605 = vmatprep.subr.mxu0 0.0
    %1606 = vmatpush2.msra.mxu0 0.0
    %1607 = vmatprep.subr.mxu0 0.0
    %1608 = vmatpush2.msra.mxu0 0.0
    %1609 = vmatprep.subr.mxu0 0.0
    %1610 = vmatpush2.msra.mxu0 0.0
    %1611 = vmatprep.subr.mxu0 0.0
    %1612 = vmatpush2.msra.mxu0 0.0
    %1613 = vmatprep.subr.mxu0 0.0
    %1614 = vmatpush2.msra.mxu0 0.0
    %1615 = vmatprep.mubr.f32.mxu0 0.0
    %1616 = vmatmul.mubr.f32.gmra.mxu0 %v1549
    %v1617 = vpop.f32.mrf.mxu0
    %v1618 = vadd.f32 0.0, %v1617
    %v1619 = vpop.f32.mrf.mxu0
    %1620 = vdwg.mxu0
    %v1622 = vsel %vm187, %v1548, 0
    %1624 = vmatprep.subr.mxu0 0.0
    %1625 = vmatpush1.msra.mxu0 0.0
    %1626 = vmatprep.subr.mxu0 0.0
    %1627 = vmatpush1.msra.mxu0 0.0
    %1628 = vmatprep.subr.mxu0 0.0
    %1629 = vmatpush1.msra.mxu0 0.0
    %1630 = vmatprep.subr.mxu0 0.0
    %1631 = vmatpush1.msra.mxu0 0.0
    %1632 = vmatprep.subr.mxu0 0.0
    %1633 = vmatpush1.msra.mxu0 0.0
    %1634 = vmatprep.subr.mxu0 0.0
    %1635 = vmatpush1.msra.mxu0 0.0
    %1636 = vmatprep.subr.mxu0 0.0
    %1637 = vmatpush1.msra.mxu0 0.0
    %1638 = vmatprep.subr.mxu0 0.0
    %1639 = vmatpush1.msra.mxu0 0.0
    %1640 = vmatprep.subr.mxu0 0.0
    %1641 = vmatpush1.msra.mxu0 0.0
    %1642 = vmatprep.subr.mxu0 0.0
    %1643 = vmatpush1.msra.mxu0 0.0
    %1644 = vmatprep.subr.mxu0 0.0
    %1645 = vmatpush1.msra.mxu0 0.0
    %1646 = vmatprep.subr.mxu0 0.0
    %1647 = vmatpush1.msra.mxu0 0.0
    %1648 = vmatprep.subr.mxu0 0.0
    %1649 = vmatpush1.msra.mxu0 0.0
    %1650 = vmatprep.subr.mxu0 0.0
    %1651 = vmatpush1.msra.mxu0 0.0
    %1652 = vmatprep.subr.mxu0 0.0
    %1653 = vmatpush1.msra.mxu0 %v99
    %1654 = vmatprep.subr.mxu0 0.0
    %1655 = vmatpush1.msra.mxu0 %v98
    %1656 = vmatprep.subr.mxu0 0.0
    %1657 = vmatpush2.msra.mxu0 0.0
    %1658 = vmatprep.subr.mxu0 0.0
    %1659 = vmatpush2.msra.mxu0 0.0
    %1660 = vmatprep.subr.mxu0 0.0
    %1661 = vmatpush2.msra.mxu0 0.0
    %1662 = vmatprep.subr.mxu0 0.0
    %1663 = vmatpush2.msra.mxu0 0.0
    %1664 = vmatprep.subr.mxu0 0.0
    %1665 = vmatpush2.msra.mxu0 0.0
    %1666 = vmatprep.subr.mxu0 0.0
    %1667 = vmatpush2.msra.mxu0 0.0
    %1668 = vmatprep.subr.mxu0 0.0
    %1669 = vmatpush2.msra.mxu0 0.0
    %1670 = vmatprep.subr.mxu0 0.0
    %1671 = vmatpush2.msra.mxu0 0.0
    %1672 = vmatprep.subr.mxu0 0.0
    %1673 = vmatpush2.msra.mxu0 0.0
    %1674 = vmatprep.subr.mxu0 0.0
    %1675 = vmatpush2.msra.mxu0 0.0
    %1676 = vmatprep.subr.mxu0 0.0
    %1677 = vmatpush2.msra.mxu0 0.0
    %1678 = vmatprep.subr.mxu0 0.0
    %1679 = vmatpush2.msra.mxu0 0.0
    %1680 = vmatprep.subr.mxu0 0.0
    %1681 = vmatpush2.msra.mxu0 0.0
    %1682 = vmatprep.subr.mxu0 0.0
    %1683 = vmatpush2.msra.mxu0 0.0
    %1684 = vmatprep.subr.mxu0 0.0
    %1685 = vmatpush2.msra.mxu0 0.0
    %1686 = vmatprep.subr.mxu0 0.0
    %1687 = vmatpush2.msra.mxu0 0.0
    %1688 = vmatprep.mubr.f32.mxu0 0.0
    %1689 = vmatmul.mubr.f32.gmra.mxu0 %v1622
    %v1690 = vpop.f32.mrf.mxu0
    %v1691 = vadd.f32 %v1618, %v1690
    %v1692 = vpop.f32.mrf.mxu0
    %1693 = vdwg.mxu0
    %v1694 = vadd.f32 %v1691, %v265
    %v1695 = vxor.u32 %v1694, 2147483648
    %v1696 = vmul.f32 %v1695, 1.442695
    %v1697 = vpow.pop %v1696
    %v1698 = vadd.f32 %v1697, 1.0
    %v1699 = vrcp.pop %v1698
    %v1700 = vmul.f32 1.0, %v1699
    %v1701 = vtanh.pop %v1694
    %v1702 = vmul.f32 %v1700, %v1357
    %1704 = vrot.lane.b32.xlu0 %v1701, 64
    %v1705 = vpop.permute.xlu0 %1704
    %v1707 = vmul.f32 %v1700, %v1705
    %1709 = vrot.lane.b32.xlu0 %v1707, 32
    %v1710 = vpop.permute.xlu0 %1709
    %v1712 = vadd.f32 %v1702, %v1710
    %v1713 = vtanh.pop %v1712
    %1715 = vrot.lane.b32.xlu0 %v1713, 64
    %v1716 = vpop.permute.xlu0 %1715
    %v1718 = vmul.f32 %v1700, %v1716
    %v1719 = vld [vmem:[%s1192] sm:$0x3]
    %v1720 = vsel %vm113, %v1544, 0
    %1722 = vmatprep.subr.mxu0 0.0
    %1723 = vmatpush1.msra.mxu0 0.0
    %1724 = vmatprep.subr.mxu0 0.0
    %1725 = vmatpush1.msra.mxu0 0.0
    %1726 = vmatprep.subr.mxu0 0.0
    %1727 = vmatpush1.msra.mxu0 0.0
    %1728 = vmatprep.subr.mxu0 0.0
    %1729 = vmatpush1.msra.mxu0 0.0
    %1730 = vmatprep.subr.mxu0 0.0
    %1731 = vmatpush1.msra.mxu0 0.0
    %1732 = vmatprep.subr.mxu0 0.0
    %1733 = vmatpush1.msra.mxu0 0.0
    %1734 = vmatprep.subr.mxu0 0.0
    %1735 = vmatpush1.msra.mxu0 0.0
    %1736 = vmatprep.subr.mxu0 0.0
    %1737 = vmatpush1.msra.mxu0 0.0
    %1738 = vmatprep.subr.mxu0 0.0
    %1739 = vmatpush1.msra.mxu0 0.0
    %1740 = vmatprep.subr.mxu0 0.0
    %1741 = vmatpush1.msra.mxu0 0.0
    %1742 = vmatprep.subr.mxu0 0.0
    %1743 = vmatpush1.msra.mxu0 0.0
    %1744 = vmatprep.subr.mxu0 0.0
    %1745 = vmatpush1.msra.mxu0 0.0
    %1746 = vmatprep.subr.mxu0 0.0
    %1747 = vmatpush1.msra.mxu0 %v110
    %1748 = vmatprep.subr.mxu0 0.0
    %1749 = vmatpush1.msra.mxu0 %v109
    %1750 = vmatprep.subr.mxu0 0.0
    %1751 = vmatpush1.msra.mxu0 %v108
    %1752 = vmatprep.subr.mxu0 0.0
    %1753 = vmatpush1.msra.mxu0 %v107
    %1754 = vmatprep.subr.mxu0 0.0
    %1755 = vmatpush2.msra.mxu0 0.0
    %1756 = vmatprep.subr.mxu0 0.0
    %1757 = vmatpush2.msra.mxu0 0.0
    %1758 = vmatprep.subr.mxu0 0.0
    %1759 = vmatpush2.msra.mxu0 0.0
    %1760 = vmatprep.subr.mxu0 0.0
    %1761 = vmatpush2.msra.mxu0 0.0
    %1762 = vmatprep.subr.mxu0 0.0
    %1763 = vmatpush2.msra.mxu0 0.0
    %1764 = vmatprep.subr.mxu0 0.0
    %1765 = vmatpush2.msra.mxu0 0.0
    %1766 = vmatprep.subr.mxu0 0.0
    %1767 = vmatpush2.msra.mxu0 0.0
    %1768 = vmatprep.subr.mxu0 0.0
    %1769 = vmatpush2.msra.mxu0 0.0
    %1770 = vmatprep.subr.mxu0 0.0
    %1771 = vmatpush2.msra.mxu0 0.0
    %1772 = vmatprep.subr.mxu0 0.0
    %1773 = vmatpush2.msra.mxu0 0.0
    %1774 = vmatprep.subr.mxu0 0.0
    %1775 = vmatpush2.msra.mxu0 0.0
    %1776 = vmatprep.subr.mxu0 0.0
    %1777 = vmatpush2.msra.mxu0 0.0
    %1778 = vmatprep.subr.mxu0 0.0
    %1779 = vmatpush2.msra.mxu0 0.0
    %1780 = vmatprep.subr.mxu0 0.0
    %1781 = vmatpush2.msra.mxu0 0.0
    %1782 = vmatprep.subr.mxu0 0.0
    %1783 = vmatpush2.msra.mxu0 0.0
    %1784 = vmatprep.subr.mxu0 0.0
    %1785 = vmatpush2.msra.mxu0 0.0
    %1786 = vmatprep.mubr.f32.mxu0 0.0
    %1787 = vmatmul.mubr.f32.gmra.mxu0 %v1720
    %v1788 = vpop.f32.mrf.mxu0
    %v1789 = vadd.f32 0.0, %v1788
    %v1790 = vpop.f32.mrf.mxu0
    %1791 = vdwg.mxu0
    %v1793 = vsel %vm187, %v1719, 0
    %1795 = vmatprep.subr.mxu0 0.0
    %1796 = vmatpush1.msra.mxu0 0.0
    %1797 = vmatprep.subr.mxu0 0.0
    %1798 = vmatpush1.msra.mxu0 0.0
    %1799 = vmatprep.subr.mxu0 0.0
    %1800 = vmatpush1.msra.mxu0 0.0
    %1801 = vmatprep.subr.mxu0 0.0
    %1802 = vmatpush1.msra.mxu0 0.0
    %1803 = vmatprep.subr.mxu0 0.0
    %1804 = vmatpush1.msra.mxu0 0.0
    %1805 = vmatprep.subr.mxu0 0.0
    %1806 = vmatpush1.msra.mxu0 0.0
    %1807 = vmatprep.subr.mxu0 0.0
    %1808 = vmatpush1.msra.mxu0 0.0
    %1809 = vmatprep.subr.mxu0 0.0
    %1810 = vmatpush1.msra.mxu0 0.0
    %1811 = vmatprep.subr.mxu0 0.0
    %1812 = vmatpush1.msra.mxu0 0.0
    %1813 = vmatprep.subr.mxu0 0.0
    %1814 = vmatpush1.msra.mxu0 0.0
    %1815 = vmatprep.subr.mxu0 0.0
    %1816 = vmatpush1.msra.mxu0 0.0
    %1817 = vmatprep.subr.mxu0 0.0
    %1818 = vmatpush1.msra.mxu0 0.0
    %1819 = vmatprep.subr.mxu0 0.0
    %1820 = vmatpush1.msra.mxu0 0.0
    %1821 = vmatprep.subr.mxu0 0.0
    %1822 = vmatpush1.msra.mxu0 0.0
    %1823 = vmatprep.subr.mxu0 0.0
    %1824 = vmatpush1.msra.mxu0 %v106
    %1825 = vmatprep.subr.mxu0 0.0
    %1826 = vmatpush1.msra.mxu0 %v105
    %1827 = vmatprep.subr.mxu0 0.0
    %1828 = vmatpush2.msra.mxu0 0.0
    %1829 = vmatprep.subr.mxu0 0.0
    %1830 = vmatpush2.msra.mxu0 0.0
    %1831 = vmatprep.subr.mxu0 0.0
    %1832 = vmatpush2.msra.mxu0 0.0
    %1833 = vmatprep.subr.mxu0 0.0
    %1834 = vmatpush2.msra.mxu0 0.0
    %1835 = vmatprep.subr.mxu0 0.0
    %1836 = vmatpush2.msra.mxu0 0.0
    %1837 = vmatprep.subr.mxu0 0.0
    %1838 = vmatpush2.msra.mxu0 0.0
    %1839 = vmatprep.subr.mxu0 0.0
    %1840 = vmatpush2.msra.mxu0 0.0
    %1841 = vmatprep.subr.mxu0 0.0
    %1842 = vmatpush2.msra.mxu0 0.0
    %1843 = vmatprep.subr.mxu0 0.0
    %1844 = vmatpush2.msra.mxu0 0.0
    %1845 = vmatprep.subr.mxu0 0.0
    %1846 = vmatpush2.msra.mxu0 0.0
    %1847 = vmatprep.subr.mxu0 0.0
    %1848 = vmatpush2.msra.mxu0 0.0
    %1849 = vmatprep.subr.mxu0 0.0
    %1850 = vmatpush2.msra.mxu0 0.0
    %1851 = vmatprep.subr.mxu0 0.0
    %1852 = vmatpush2.msra.mxu0 0.0
    %1853 = vmatprep.subr.mxu0 0.0
    %1854 = vmatpush2.msra.mxu0 0.0
    %1855 = vmatprep.subr.mxu0 0.0
    %1856 = vmatpush2.msra.mxu0 0.0
    %1857 = vmatprep.subr.mxu0 0.0
    %1858 = vmatpush2.msra.mxu0 0.0
    %1859 = vmatprep.mubr.f32.mxu0 0.0
    %1860 = vmatmul.mubr.f32.gmra.mxu0 %v1793
    %v1861 = vpop.f32.mrf.mxu0
    %v1862 = vadd.f32 %v1789, %v1861
    %v1863 = vpop.f32.mrf.mxu0
    %1864 = vdwg.mxu0
    %v1865 = vadd.f32 %v1862, %v441
    %v1866 = vxor.u32 %v1865, 2147483648
    %v1867 = vmul.f32 %v1866, 1.442695
    %v1868 = vpow.pop %v1867
    %v1869 = vadd.f32 %v1868, 1.0
    %v1870 = vrcp.pop %v1869
    %v1871 = vmul.f32 1.0, %v1870
    %v1872 = vtanh.pop %v1865
    %v1873 = vmul.f32 %v1871, %v1529
    %1875 = vrot.lane.b32.xlu0 %v1872, 64
    %v1876 = vpop.permute.xlu0 %1875
    %v1878 = vmul.f32 %v1871, %v1876
    %1880 = vrot.lane.b32.xlu0 %v1878, 32
    %v1881 = vpop.permute.xlu0 %1880
    %v1883 = vadd.f32 %v1873, %v1881
    %v1884 = vtanh.pop %v1883
    %1886 = vrot.lane.b32.xlu0 %v1884, 64
    %v1887 = vpop.permute.xlu0 %1886
    %v1889 = vmul.f32 %v1871, %v1887
    %1891 = vrot.lane.b32.xlu0 %v1718, 32
    %v1892 = vpop.permute.xlu0 %1891
    %s1894 = scalar_lea.vmem [#allocation11], 8
    %1895 = vst.msk [vmem:[%s1894] sm:$0x3] %vm472, %v1892
    %1897 = vrot.lane.b32.xlu0 %v1889, 32
    %v1898 = vpop.permute.xlu0 %1897
    %s1900 = scalar_lea.vmem [#allocation12], 6
    %1901 = vst.msk [vmem:[%s1900] sm:$0x3] %vm472, %v1898
    %v1902 = vld [vmem:[%s1008] sm:$0x3]
    %v1903 = vsel %vm113, %v1892, 0
    %1905 = vmatprep.subr.mxu0 0.0
    %1906 = vmatpush1.msra.mxu0 0.0
    %1907 = vmatprep.subr.mxu0 0.0
    %1908 = vmatpush1.msra.mxu0 0.0
    %1909 = vmatprep.subr.mxu0 0.0
    %1910 = vmatpush1.msra.mxu0 0.0
    %1911 = vmatprep.subr.mxu0 0.0
    %1912 = vmatpush1.msra.mxu0 0.0
    %1913 = vmatprep.subr.mxu0 0.0
    %1914 = vmatpush1.msra.mxu0 0.0
    %1915 = vmatprep.subr.mxu0 0.0
    %1916 = vmatpush1.msra.mxu0 0.0
    %1917 = vmatprep.subr.mxu0 0.0
    %1918 = vmatpush1.msra.mxu0 0.0
    %1919 = vmatprep.subr.mxu0 0.0
    %1920 = vmatpush1.msra.mxu0 0.0
    %1921 = vmatprep.subr.mxu0 0.0
    %1922 = vmatpush1.msra.mxu0 0.0
    %1923 = vmatprep.subr.mxu0 0.0
    %1924 = vmatpush1.msra.mxu0 0.0
    %1925 = vmatprep.subr.mxu0 0.0
    %1926 = vmatpush1.msra.mxu0 0.0
    %1927 = vmatprep.subr.mxu0 0.0
    %1928 = vmatpush1.msra.mxu0 0.0
    %1929 = vmatprep.subr.mxu0 0.0
    %1930 = vmatpush1.msra.mxu0 %v103
    %1931 = vmatprep.subr.mxu0 0.0
    %1932 = vmatpush1.msra.mxu0 %v102
    %1933 = vmatprep.subr.mxu0 0.0
    %1934 = vmatpush1.msra.mxu0 %v101
    %1935 = vmatprep.subr.mxu0 0.0
    %1936 = vmatpush1.msra.mxu0 %v100
    %1937 = vmatprep.subr.mxu0 0.0
    %1938 = vmatpush2.msra.mxu0 0.0
    %1939 = vmatprep.subr.mxu0 0.0
    %1940 = vmatpush2.msra.mxu0 0.0
    %1941 = vmatprep.subr.mxu0 0.0
    %1942 = vmatpush2.msra.mxu0 0.0
    %1943 = vmatprep.subr.mxu0 0.0
    %1944 = vmatpush2.msra.mxu0 0.0
    %1945 = vmatprep.subr.mxu0 0.0
    %1946 = vmatpush2.msra.mxu0 0.0
    %1947 = vmatprep.subr.mxu0 0.0
    %1948 = vmatpush2.msra.mxu0 0.0
    %1949 = vmatprep.subr.mxu0 0.0
    %1950 = vmatpush2.msra.mxu0 0.0
    %1951 = vmatprep.subr.mxu0 0.0
    %1952 = vmatpush2.msra.mxu0 0.0
    %1953 = vmatprep.subr.mxu0 0.0
    %1954 = vmatpush2.msra.mxu0 0.0
    %1955 = vmatprep.subr.mxu0 0.0
    %1956 = vmatpush2.msra.mxu0 0.0
    %1957 = vmatprep.subr.mxu0 0.0
    %1958 = vmatpush2.msra.mxu0 0.0
    %1959 = vmatprep.subr.mxu0 0.0
    %1960 = vmatpush2.msra.mxu0 0.0
    %1961 = vmatprep.subr.mxu0 0.0
    %1962 = vmatpush2.msra.mxu0 0.0
    %1963 = vmatprep.subr.mxu0 0.0
    %1964 = vmatpush2.msra.mxu0 0.0
    %1965 = vmatprep.subr.mxu0 0.0
    %1966 = vmatpush2.msra.mxu0 0.0
    %1967 = vmatprep.subr.mxu0 0.0
    %1968 = vmatpush2.msra.mxu0 0.0
    %1969 = vmatprep.mubr.f32.mxu0 0.0
    %1970 = vmatmul.mubr.f32.gmra.mxu0 %v1903
    %v1971 = vpop.f32.mrf.mxu0
    %v1972 = vadd.f32 0.0, %v1971
    %v1973 = vpop.f32.mrf.mxu0
    %1974 = vdwg.mxu0
    %v1976 = vsel %vm187, %v1902, 0
    %1978 = vmatprep.subr.mxu0 0.0
    %1979 = vmatpush1.msra.mxu0 0.0
    %1980 = vmatprep.subr.mxu0 0.0
    %1981 = vmatpush1.msra.mxu0 0.0
    %1982 = vmatprep.subr.mxu0 0.0
    %1983 = vmatpush1.msra.mxu0 0.0
    %1984 = vmatprep.subr.mxu0 0.0
    %1985 = vmatpush1.msra.mxu0 0.0
    %1986 = vmatprep.subr.mxu0 0.0
    %1987 = vmatpush1.msra.mxu0 0.0
    %1988 = vmatprep.subr.mxu0 0.0
    %1989 = vmatpush1.msra.mxu0 0.0
    %1990 = vmatprep.subr.mxu0 0.0
    %1991 = vmatpush1.msra.mxu0 0.0
    %1992 = vmatprep.subr.mxu0 0.0
    %1993 = vmatpush1.msra.mxu0 0.0
    %1994 = vmatprep.subr.mxu0 0.0
    %1995 = vmatpush1.msra.mxu0 0.0
    %1996 = vmatprep.subr.mxu0 0.0
    %1997 = vmatpush1.msra.mxu0 0.0
    %1998 = vmatprep.subr.mxu0 0.0
    %1999 = vmatpush1.msra.mxu0 0.0
    %2000 = vmatprep.subr.mxu0 0.0
    %2001 = vmatpush1.msra.mxu0 0.0
    %2002 = vmatprep.subr.mxu0 0.0
    %2003 = vmatpush1.msra.mxu0 0.0
    %2004 = vmatprep.subr.mxu0 0.0
    %2005 = vmatpush1.msra.mxu0 0.0
    %2006 = vmatprep.subr.mxu0 0.0
    %2007 = vmatpush1.msra.mxu0 %v99
    %2008 = vmatprep.subr.mxu0 0.0
    %2009 = vmatpush1.msra.mxu0 %v98
    %2010 = vmatprep.subr.mxu0 0.0
    %2011 = vmatpush2.msra.mxu0 0.0
    %2012 = vmatprep.subr.mxu0 0.0
    %2013 = vmatpush2.msra.mxu0 0.0
    %2014 = vmatprep.subr.mxu0 0.0
    %2015 = vmatpush2.msra.mxu0 0.0
    %2016 = vmatprep.subr.mxu0 0.0
    %2017 = vmatpush2.msra.mxu0 0.0
    %2018 = vmatprep.subr.mxu0 0.0
    %2019 = vmatpush2.msra.mxu0 0.0
    %2020 = vmatprep.subr.mxu0 0.0
    %2021 = vmatpush2.msra.mxu0 0.0
    %2022 = vmatprep.subr.mxu0 0.0
    %2023 = vmatpush2.msra.mxu0 0.0
    %2024 = vmatprep.subr.mxu0 0.0
    %2025 = vmatpush2.msra.mxu0 0.0
    %2026 = vmatprep.subr.mxu0 0.0
    %2027 = vmatpush2.msra.mxu0 0.0
    %2028 = vmatprep.subr.mxu0 0.0
    %2029 = vmatpush2.msra.mxu0 0.0
    %2030 = vmatprep.subr.mxu0 0.0
    %2031 = vmatpush2.msra.mxu0 0.0
    %2032 = vmatprep.subr.mxu0 0.0
    %2033 = vmatpush2.msra.mxu0 0.0
    %2034 = vmatprep.subr.mxu0 0.0
    %2035 = vmatpush2.msra.mxu0 0.0
    %2036 = vmatprep.subr.mxu0 0.0
    %2037 = vmatpush2.msra.mxu0 0.0
    %2038 = vmatprep.subr.mxu0 0.0
    %2039 = vmatpush2.msra.mxu0 0.0
    %2040 = vmatprep.subr.mxu0 0.0
    %2041 = vmatpush2.msra.mxu0 0.0
    %2042 = vmatprep.mubr.f32.mxu0 0.0
    %2043 = vmatmul.mubr.f32.gmra.mxu0 %v1976
    %v2044 = vpop.f32.mrf.mxu0
    %v2045 = vadd.f32 %v1972, %v2044
    %v2046 = vpop.f32.mrf.mxu0
    %2047 = vdwg.mxu0
    %v2048 = vadd.f32 %v2045, %v265
    %v2049 = vxor.u32 %v2048, 2147483648
    %v2050 = vmul.f32 %v2049, 1.442695
    %v2051 = vpow.pop %v2050
    %v2052 = vadd.f32 %v2051, 1.0
    %v2053 = vrcp.pop %v2052
    %v2054 = vmul.f32 1.0, %v2053
    %v2055 = vtanh.pop %v2048
    %v2056 = vmul.f32 %v2054, %v1712
    %2058 = vrot.lane.b32.xlu0 %v2055, 64
    %v2059 = vpop.permute.xlu0 %2058
    %v2061 = vmul.f32 %v2054, %v2059
    %2063 = vrot.lane.b32.xlu0 %v2061, 32
    %v2064 = vpop.permute.xlu0 %2063
    %v2066 = vadd.f32 %v2056, %v2064
    %v2067 = vtanh.pop %v2066
    %2069 = vrot.lane.b32.xlu0 %v2067, 64
    %v2070 = vpop.permute.xlu0 %2069
    %v2072 = vmul.f32 %v2054, %v2070
    %v2073 = vld [vmem:[%s836] sm:$0x3]
    %v2074 = vsel %vm113, %v1898, 0
    %2076 = vmatprep.subr.mxu0 0.0
    %2077 = vmatpush1.msra.mxu0 0.0
    %2078 = vmatprep.subr.mxu0 0.0
    %2079 = vmatpush1.msra.mxu0 0.0
    %2080 = vmatprep.subr.mxu0 0.0
    %2081 = vmatpush1.msra.mxu0 0.0
    %2082 = vmatprep.subr.mxu0 0.0
    %2083 = vmatpush1.msra.mxu0 0.0
    %2084 = vmatprep.subr.mxu0 0.0
    %2085 = vmatpush1.msra.mxu0 0.0
    %2086 = vmatprep.subr.mxu0 0.0
    %2087 = vmatpush1.msra.mxu0 0.0
    %2088 = vmatprep.subr.mxu0 0.0
    %2089 = vmatpush1.msra.mxu0 0.0
    %2090 = vmatprep.subr.mxu0 0.0
    %2091 = vmatpush1.msra.mxu0 0.0
    %2092 = vmatprep.subr.mxu0 0.0
    %2093 = vmatpush1.msra.mxu0 0.0
    %2094 = vmatprep.subr.mxu0 0.0
    %2095 = vmatpush1.msra.mxu0 0.0
    %2096 = vmatprep.subr.mxu0 0.0
    %2097 = vmatpush1.msra.mxu0 0.0
    %2098 = vmatprep.subr.mxu0 0.0
    %2099 = vmatpush1.msra.mxu0 0.0
    %2100 = vmatprep.subr.mxu0 0.0
    %2101 = vmatpush1.msra.mxu0 %v110
    %2102 = vmatprep.subr.mxu0 0.0
    %2103 = vmatpush1.msra.mxu0 %v109
    %2104 = vmatprep.subr.mxu0 0.0
    %2105 = vmatpush1.msra.mxu0 %v108
    %2106 = vmatprep.subr.mxu0 0.0
    %2107 = vmatpush1.msra.mxu0 %v107
    %2108 = vmatprep.subr.mxu0 0.0
    %2109 = vmatpush2.msra.mxu0 0.0
    %2110 = vmatprep.subr.mxu0 0.0
    %2111 = vmatpush2.msra.mxu0 0.0
    %2112 = vmatprep.subr.mxu0 0.0
    %2113 = vmatpush2.msra.mxu0 0.0
    %2114 = vmatprep.subr.mxu0 0.0
    %2115 = vmatpush2.msra.mxu0 0.0
    %2116 = vmatprep.subr.mxu0 0.0
    %2117 = vmatpush2.msra.mxu0 0.0
    %2118 = vmatprep.subr.mxu0 0.0
    %2119 = vmatpush2.msra.mxu0 0.0
    %2120 = vmatprep.subr.mxu0 0.0
    %2121 = vmatpush2.msra.mxu0 0.0
    %2122 = vmatprep.subr.mxu0 0.0
    %2123 = vmatpush2.msra.mxu0 0.0
    %2124 = vmatprep.subr.mxu0 0.0
    %2125 = vmatpush2.msra.mxu0 0.0
    %2126 = vmatprep.subr.mxu0 0.0
    %2127 = vmatpush2.msra.mxu0 0.0
    %2128 = vmatprep.subr.mxu0 0.0
    %2129 = vmatpush2.msra.mxu0 0.0
    %2130 = vmatprep.subr.mxu0 0.0
    %2131 = vmatpush2.msra.mxu0 0.0
    %2132 = vmatprep.subr.mxu0 0.0
    %2133 = vmatpush2.msra.mxu0 0.0
    %2134 = vmatprep.subr.mxu0 0.0
    %2135 = vmatpush2.msra.mxu0 0.0
    %2136 = vmatprep.subr.mxu0 0.0
    %2137 = vmatpush2.msra.mxu0 0.0
    %2138 = vmatprep.subr.mxu0 0.0
    %2139 = vmatpush2.msra.mxu0 0.0
    %2140 = vmatprep.mubr.f32.mxu0 0.0
    %2141 = vmatmul.mubr.f32.gmra.mxu0 %v2074
    %v2142 = vpop.f32.mrf.mxu0
    %v2143 = vadd.f32 0.0, %v2142
    %v2144 = vpop.f32.mrf.mxu0
    %2145 = vdwg.mxu0
    %v2147 = vsel %vm187, %v2073, 0
    %2149 = vmatprep.subr.mxu0 0.0
    %2150 = vmatpush1.msra.mxu0 0.0
    %2151 = vmatprep.subr.mxu0 0.0
    %2152 = vmatpush1.msra.mxu0 0.0
    %2153 = vmatprep.subr.mxu0 0.0
    %2154 = vmatpush1.msra.mxu0 0.0
    %2155 = vmatprep.subr.mxu0 0.0
    %2156 = vmatpush1.msra.mxu0 0.0
    %2157 = vmatprep.subr.mxu0 0.0
    %2158 = vmatpush1.msra.mxu0 0.0
    %2159 = vmatprep.subr.mxu0 0.0
    %2160 = vmatpush1.msra.mxu0 0.0
    %2161 = vmatprep.subr.mxu0 0.0
    %2162 = vmatpush1.msra.mxu0 0.0
    %2163 = vmatprep.subr.mxu0 0.0
    %2164 = vmatpush1.msra.mxu0 0.0
    %2165 = vmatprep.subr.mxu0 0.0
    %2166 = vmatpush1.msra.mxu0 0.0
    %2167 = vmatprep.subr.mxu0 0.0
    %2168 = vmatpush1.msra.mxu0 0.0
    %2169 = vmatprep.subr.mxu0 0.0
    %2170 = vmatpush1.msra.mxu0 0.0
    %2171 = vmatprep.subr.mxu0 0.0
    %2172 = vmatpush1.msra.mxu0 0.0
    %2173 = vmatprep.subr.mxu0 0.0
    %2174 = vmatpush1.msra.mxu0 0.0
    %2175 = vmatprep.subr.mxu0 0.0
    %2176 = vmatpush1.msra.mxu0 0.0
    %2177 = vmatprep.subr.mxu0 0.0
    %2178 = vmatpush1.msra.mxu0 %v106
    %2179 = vmatprep.subr.mxu0 0.0
    %2180 = vmatpush1.msra.mxu0 %v105
    %2181 = vmatprep.subr.mxu0 0.0
    %2182 = vmatpush2.msra.mxu0 0.0
    %2183 = vmatprep.subr.mxu0 0.0
    %2184 = vmatpush2.msra.mxu0 0.0
    %2185 = vmatprep.subr.mxu0 0.0
    %2186 = vmatpush2.msra.mxu0 0.0
    %2187 = vmatprep.subr.mxu0 0.0
    %2188 = vmatpush2.msra.mxu0 0.0
    %2189 = vmatprep.subr.mxu0 0.0
    %2190 = vmatpush2.msra.mxu0 0.0
    %2191 = vmatprep.subr.mxu0 0.0
    %2192 = vmatpush2.msra.mxu0 0.0
    %2193 = vmatprep.subr.mxu0 0.0
    %2194 = vmatpush2.msra.mxu0 0.0
    %2195 = vmatprep.subr.mxu0 0.0
    %2196 = vmatpush2.msra.mxu0 0.0
    %2197 = vmatprep.subr.mxu0 0.0
    %2198 = vmatpush2.msra.mxu0 0.0
    %2199 = vmatprep.subr.mxu0 0.0
    %2200 = vmatpush2.msra.mxu0 0.0
    %2201 = vmatprep.subr.mxu0 0.0
    %2202 = vmatpush2.msra.mxu0 0.0
    %2203 = vmatprep.subr.mxu0 0.0
    %2204 = vmatpush2.msra.mxu0 0.0
    %2205 = vmatprep.subr.mxu0 0.0
    %2206 = vmatpush2.msra.mxu0 0.0
    %2207 = vmatprep.subr.mxu0 0.0
    %2208 = vmatpush2.msra.mxu0 0.0
    %2209 = vmatprep.subr.mxu0 0.0
    %2210 = vmatpush2.msra.mxu0 0.0
    %2211 = vmatprep.subr.mxu0 0.0
    %2212 = vmatpush2.msra.mxu0 0.0
    %2213 = vmatprep.mubr.f32.mxu0 0.0
    %2214 = vmatmul.mubr.f32.gmra.mxu0 %v2147
    %v2215 = vpop.f32.mrf.mxu0
    %v2216 = vadd.f32 %v2143, %v2215
    %v2217 = vpop.f32.mrf.mxu0
    %2218 = vdwg.mxu0
    %v2219 = vadd.f32 %v2216, %v441
    %v2220 = vxor.u32 %v2219, 2147483648
    %v2221 = vmul.f32 %v2220, 1.442695
    %v2222 = vpow.pop %v2221
    %v2223 = vadd.f32 %v2222, 1.0
    %v2224 = vrcp.pop %v2223
    %v2225 = vmul.f32 1.0, %v2224
    %v2226 = vtanh.pop %v2219
    %v2227 = vmul.f32 %v2225, %v1883
    %2229 = vrot.lane.b32.xlu0 %v2226, 64
    %v2230 = vpop.permute.xlu0 %2229
    %v2232 = vmul.f32 %v2225, %v2230
    %2234 = vrot.lane.b32.xlu0 %v2232, 32
    %v2235 = vpop.permute.xlu0 %2234
    %v2237 = vadd.f32 %v2227, %v2235
    %v2238 = vtanh.pop %v2237
    %2240 = vrot.lane.b32.xlu0 %v2238, 64
    %v2241 = vpop.permute.xlu0 %2240
    %v2243 = vmul.f32 %v2225, %v2241
    %2245 = vrot.lane.b32.xlu0 %v2072, 32
    %v2246 = vpop.permute.xlu0 %2245
    %s2248 = scalar_lea.vmem [#allocation11], 10
    %2249 = vst.msk [vmem:[%s2248] sm:$0x3] %vm472, %v2246
    %2251 = vrot.lane.b32.xlu0 %v2243, 32
    %v2252 = vpop.permute.xlu0 %2251
    %s2254 = scalar_lea.vmem [#allocation12], 4
    %2255 = vst.msk [vmem:[%s2254] sm:$0x3] %vm472, %v2252
    %v2256 = vld [vmem:[%s652] sm:$0x3]
    %v2257 = vsel %vm113, %v2246, 0
    %2259 = vmatprep.subr.mxu0 0.0
    %2260 = vmatpush1.msra.mxu0 0.0
    %2261 = vmatprep.subr.mxu0 0.0
    %2262 = vmatpush1.msra.mxu0 0.0
    %2263 = vmatprep.subr.mxu0 0.0
    %2264 = vmatpush1.msra.mxu0 0.0
    %2265 = vmatprep.subr.mxu0 0.0
    %2266 = vmatpush1.msra.mxu0 0.0
    %2267 = vmatprep.subr.mxu0 0.0
    %2268 = vmatpush1.msra.mxu0 0.0
    %2269 = vmatprep.subr.mxu0 0.0
    %2270 = vmatpush1.msra.mxu0 0.0
    %2271 = vmatprep.subr.mxu0 0.0
    %2272 = vmatpush1.msra.mxu0 0.0
    %2273 = vmatprep.subr.mxu0 0.0
    %2274 = vmatpush1.msra.mxu0 0.0
    %2275 = vmatprep.subr.mxu0 0.0
    %2276 = vmatpush1.msra.mxu0 0.0
    %2277 = vmatprep.subr.mxu0 0.0
    %2278 = vmatpush1.msra.mxu0 0.0
    %2279 = vmatprep.subr.mxu0 0.0
    %2280 = vmatpush1.msra.mxu0 0.0
    %2281 = vmatprep.subr.mxu0 0.0
    %2282 = vmatpush1.msra.mxu0 0.0
    %2283 = vmatprep.subr.mxu0 0.0
    %2284 = vmatpush1.msra.mxu0 %v103
    %2285 = vmatprep.subr.mxu0 0.0
    %2286 = vmatpush1.msra.mxu0 %v102
    %2287 = vmatprep.subr.mxu0 0.0
    %2288 = vmatpush1.msra.mxu0 %v101
    %2289 = vmatprep.subr.mxu0 0.0
    %2290 = vmatpush1.msra.mxu0 %v100
    %2291 = vmatprep.subr.mxu0 0.0
    %2292 = vmatpush2.msra.mxu0 0.0
    %2293 = vmatprep.subr.mxu0 0.0
    %2294 = vmatpush2.msra.mxu0 0.0
    %2295 = vmatprep.subr.mxu0 0.0
    %2296 = vmatpush2.msra.mxu0 0.0
    %2297 = vmatprep.subr.mxu0 0.0
    %2298 = vmatpush2.msra.mxu0 0.0
    %2299 = vmatprep.subr.mxu0 0.0
    %2300 = vmatpush2.msra.mxu0 0.0
    %2301 = vmatprep.subr.mxu0 0.0
    %2302 = vmatpush2.msra.mxu0 0.0
    %2303 = vmatprep.subr.mxu0 0.0
    %2304 = vmatpush2.msra.mxu0 0.0
    %2305 = vmatprep.subr.mxu0 0.0
    %2306 = vmatpush2.msra.mxu0 0.0
    %2307 = vmatprep.subr.mxu0 0.0
    %2308 = vmatpush2.msra.mxu0 0.0
    %2309 = vmatprep.subr.mxu0 0.0
    %2310 = vmatpush2.msra.mxu0 0.0
    %2311 = vmatprep.subr.mxu0 0.0
    %2312 = vmatpush2.msra.mxu0 0.0
    %2313 = vmatprep.subr.mxu0 0.0
    %2314 = vmatpush2.msra.mxu0 0.0
    %2315 = vmatprep.subr.mxu0 0.0
    %2316 = vmatpush2.msra.mxu0 0.0
    %2317 = vmatprep.subr.mxu0 0.0
    %2318 = vmatpush2.msra.mxu0 0.0
    %2319 = vmatprep.subr.mxu0 0.0
    %2320 = vmatpush2.msra.mxu0 0.0
    %2321 = vmatprep.subr.mxu0 0.0
    %2322 = vmatpush2.msra.mxu0 0.0
    %2323 = vmatprep.mubr.f32.mxu0 0.0
    %2324 = vmatmul.mubr.f32.gmra.mxu0 %v2257
    %v2325 = vpop.f32.mrf.mxu0
    %v2326 = vadd.f32 0.0, %v2325
    %v2327 = vpop.f32.mrf.mxu0
    %2328 = vdwg.mxu0
    %v2330 = vsel %vm187, %v2256, 0
    %2332 = vmatprep.subr.mxu0 0.0
    %2333 = vmatpush1.msra.mxu0 0.0
    %2334 = vmatprep.subr.mxu0 0.0
    %2335 = vmatpush1.msra.mxu0 0.0
    %2336 = vmatprep.subr.mxu0 0.0
    %2337 = vmatpush1.msra.mxu0 0.0
    %2338 = vmatprep.subr.mxu0 0.0
    %2339 = vmatpush1.msra.mxu0 0.0
    %2340 = vmatprep.subr.mxu0 0.0
    %2341 = vmatpush1.msra.mxu0 0.0
    %2342 = vmatprep.subr.mxu0 0.0
    %2343 = vmatpush1.msra.mxu0 0.0
    %2344 = vmatprep.subr.mxu0 0.0
    %2345 = vmatpush1.msra.mxu0 0.0
    %2346 = vmatprep.subr.mxu0 0.0
    %2347 = vmatpush1.msra.mxu0 0.0
    %2348 = vmatprep.subr.mxu0 0.0
    %2349 = vmatpush1.msra.mxu0 0.0
    %2350 = vmatprep.subr.mxu0 0.0
    %2351 = vmatpush1.msra.mxu0 0.0
    %2352 = vmatprep.subr.mxu0 0.0
    %2353 = vmatpush1.msra.mxu0 0.0
    %2354 = vmatprep.subr.mxu0 0.0
    %2355 = vmatpush1.msra.mxu0 0.0
    %2356 = vmatprep.subr.mxu0 0.0
    %2357 = vmatpush1.msra.mxu0 0.0
    %2358 = vmatprep.subr.mxu0 0.0
    %2359 = vmatpush1.msra.mxu0 0.0
    %2360 = vmatprep.subr.mxu0 0.0
    %2361 = vmatpush1.msra.mxu0 %v99
    %2362 = vmatprep.subr.mxu0 0.0
    %2363 = vmatpush1.msra.mxu0 %v98
    %2364 = vmatprep.subr.mxu0 0.0
    %2365 = vmatpush2.msra.mxu0 0.0
    %2366 = vmatprep.subr.mxu0 0.0
    %2367 = vmatpush2.msra.mxu0 0.0
    %2368 = vmatprep.subr.mxu0 0.0
    %2369 = vmatpush2.msra.mxu0 0.0
    %2370 = vmatprep.subr.mxu0 0.0
    %2371 = vmatpush2.msra.mxu0 0.0
    %2372 = vmatprep.subr.mxu0 0.0
    %2373 = vmatpush2.msra.mxu0 0.0
    %2374 = vmatprep.subr.mxu0 0.0
    %2375 = vmatpush2.msra.mxu0 0.0
    %2376 = vmatprep.subr.mxu0 0.0
    %2377 = vmatpush2.msra.mxu0 0.0
    %2378 = vmatprep.subr.mxu0 0.0
    %2379 = vmatpush2.msra.mxu0 0.0
    %2380 = vmatprep.subr.mxu0 0.0
    %2381 = vmatpush2.msra.mxu0 0.0
    %2382 = vmatprep.subr.mxu0 0.0
    %2383 = vmatpush2.msra.mxu0 0.0
    %2384 = vmatprep.subr.mxu0 0.0
    %2385 = vmatpush2.msra.mxu0 0.0
    %2386 = vmatprep.subr.mxu0 0.0
    %2387 = vmatpush2.msra.mxu0 0.0
    %2388 = vmatprep.subr.mxu0 0.0
    %2389 = vmatpush2.msra.mxu0 0.0
    %2390 = vmatprep.subr.mxu0 0.0
    %2391 = vmatpush2.msra.mxu0 0.0
    %2392 = vmatprep.subr.mxu0 0.0
    %2393 = vmatpush2.msra.mxu0 0.0
    %2394 = vmatprep.subr.mxu0 0.0
    %2395 = vmatpush2.msra.mxu0 0.0
    %2396 = vmatprep.mubr.f32.mxu0 0.0
    %2397 = vmatmul.mubr.f32.gmra.mxu0 %v2330
    %v2398 = vpop.f32.mrf.mxu0
    %v2399 = vadd.f32 %v2326, %v2398
    %v2400 = vpop.f32.mrf.mxu0
    %2401 = vdwg.mxu0
    %v2402 = vadd.f32 %v2399, %v265
    %v2403 = vxor.u32 %v2402, 2147483648
    %v2404 = vmul.f32 %v2403, 1.442695
    %v2405 = vpow.pop %v2404
    %v2406 = vadd.f32 %v2405, 1.0
    %v2407 = vrcp.pop %v2406
    %v2408 = vmul.f32 1.0, %v2407
    %v2409 = vtanh.pop %v2402
    %v2410 = vmul.f32 %v2408, %v2066
    %2412 = vrot.lane.b32.xlu0 %v2409, 64
    %v2413 = vpop.permute.xlu0 %2412
    %v2415 = vmul.f32 %v2408, %v2413
    %2417 = vrot.lane.b32.xlu0 %v2415, 32
    %v2418 = vpop.permute.xlu0 %2417
    %v2420 = vadd.f32 %v2410, %v2418
    %v2421 = vtanh.pop %v2420
    %2423 = vrot.lane.b32.xlu0 %v2421, 64
    %v2424 = vpop.permute.xlu0 %2423
    %v2426 = vmul.f32 %v2408, %v2424
    %v2427 = vld [vmem:[%s480] sm:$0x3]
    %v2428 = vsel %vm113, %v2252, 0
    %2430 = vmatprep.subr.mxu0 0.0
    %2431 = vmatpush1.msra.mxu0 0.0
    %2432 = vmatprep.subr.mxu0 0.0
    %2433 = vmatpush1.msra.mxu0 0.0
    %2434 = vmatprep.subr.mxu0 0.0
    %2435 = vmatpush1.msra.mxu0 0.0
    %2436 = vmatprep.subr.mxu0 0.0
    %2437 = vmatpush1.msra.mxu0 0.0
    %2438 = vmatprep.subr.mxu0 0.0
    %2439 = vmatpush1.msra.mxu0 0.0
    %2440 = vmatprep.subr.mxu0 0.0
    %2441 = vmatpush1.msra.mxu0 0.0
    %2442 = vmatprep.subr.mxu0 0.0
    %2443 = vmatpush1.msra.mxu0 0.0
    %2444 = vmatprep.subr.mxu0 0.0
    %2445 = vmatpush1.msra.mxu0 0.0
    %2446 = vmatprep.subr.mxu0 0.0
    %2447 = vmatpush1.msra.mxu0 0.0
    %2448 = vmatprep.subr.mxu0 0.0
    %2449 = vmatpush1.msra.mxu0 0.0
    %2450 = vmatprep.subr.mxu0 0.0
    %2451 = vmatpush1.msra.mxu0 0.0
    %2452 = vmatprep.subr.mxu0 0.0
    %2453 = vmatpush1.msra.mxu0 0.0
    %2454 = vmatprep.subr.mxu0 0.0
    %2455 = vmatpush1.msra.mxu0 %v110
    %2456 = vmatprep.subr.mxu0 0.0
    %2457 = vmatpush1.msra.mxu0 %v109
    %2458 = vmatprep.subr.mxu0 0.0
    %2459 = vmatpush1.msra.mxu0 %v108
    %2460 = vmatprep.subr.mxu0 0.0
    %2461 = vmatpush1.msra.mxu0 %v107
    %2462 = vmatprep.subr.mxu0 0.0
    %2463 = vmatpush2.msra.mxu0 0.0
    %2464 = vmatprep.subr.mxu0 0.0
    %2465 = vmatpush2.msra.mxu0 0.0
    %2466 = vmatprep.subr.mxu0 0.0
    %2467 = vmatpush2.msra.mxu0 0.0
    %2468 = vmatprep.subr.mxu0 0.0
    %2469 = vmatpush2.msra.mxu0 0.0
    %2470 = vmatprep.subr.mxu0 0.0
    %2471 = vmatpush2.msra.mxu0 0.0
    %2472 = vmatprep.subr.mxu0 0.0
    %2473 = vmatpush2.msra.mxu0 0.0
    %2474 = vmatprep.subr.mxu0 0.0
    %2475 = vmatpush2.msra.mxu0 0.0
    %2476 = vmatprep.subr.mxu0 0.0
    %2477 = vmatpush2.msra.mxu0 0.0
    %2478 = vmatprep.subr.mxu0 0.0
    %2479 = vmatpush2.msra.mxu0 0.0
    %2480 = vmatprep.subr.mxu0 0.0
    %2481 = vmatpush2.msra.mxu0 0.0
    %2482 = vmatprep.subr.mxu0 0.0
    %2483 = vmatpush2.msra.mxu0 0.0
    %2484 = vmatprep.subr.mxu0 0.0
    %2485 = vmatpush2.msra.mxu0 0.0
    %2486 = vmatprep.subr.mxu0 0.0
    %2487 = vmatpush2.msra.mxu0 0.0
    %2488 = vmatprep.subr.mxu0 0.0
    %2489 = vmatpush2.msra.mxu0 0.0
    %2490 = vmatprep.subr.mxu0 0.0
    %2491 = vmatpush2.msra.mxu0 0.0
    %2492 = vmatprep.subr.mxu0 0.0
    %2493 = vmatpush2.msra.mxu0 0.0
    %2494 = vmatprep.mubr.f32.mxu0 0.0
    %2495 = vmatmul.mubr.f32.gmra.mxu0 %v2428
    %v2496 = vpop.f32.mrf.mxu0
    %v2497 = vadd.f32 0.0, %v2496
    %v2498 = vpop.f32.mrf.mxu0
    %2499 = vdwg.mxu0
    %v2501 = vsel %vm187, %v2427, 0
    %2503 = vmatprep.subr.mxu0 0.0
    %2504 = vmatpush1.msra.mxu0 0.0
    %2505 = vmatprep.subr.mxu0 0.0
    %2506 = vmatpush1.msra.mxu0 0.0
    %2507 = vmatprep.subr.mxu0 0.0
    %2508 = vmatpush1.msra.mxu0 0.0
    %2509 = vmatprep.subr.mxu0 0.0
    %2510 = vmatpush1.msra.mxu0 0.0
    %2511 = vmatprep.subr.mxu0 0.0
    %2512 = vmatpush1.msra.mxu0 0.0
    %2513 = vmatprep.subr.mxu0 0.0
    %2514 = vmatpush1.msra.mxu0 0.0
    %2515 = vmatprep.subr.mxu0 0.0
    %2516 = vmatpush1.msra.mxu0 0.0
    %2517 = vmatprep.subr.mxu0 0.0
    %2518 = vmatpush1.msra.mxu0 0.0
    %2519 = vmatprep.subr.mxu0 0.0
    %2520 = vmatpush1.msra.mxu0 0.0
    %2521 = vmatprep.subr.mxu0 0.0
    %2522 = vmatpush1.msra.mxu0 0.0
    %2523 = vmatprep.subr.mxu0 0.0
    %2524 = vmatpush1.msra.mxu0 0.0
    %2525 = vmatprep.subr.mxu0 0.0
    %2526 = vmatpush1.msra.mxu0 0.0
    %2527 = vmatprep.subr.mxu0 0.0
    %2528 = vmatpush1.msra.mxu0 0.0
    %2529 = vmatprep.subr.mxu0 0.0
    %2530 = vmatpush1.msra.mxu0 0.0
    %2531 = vmatprep.subr.mxu0 0.0
    %2532 = vmatpush1.msra.mxu0 %v106
    %2533 = vmatprep.subr.mxu0 0.0
    %2534 = vmatpush1.msra.mxu0 %v105
    %2535 = vmatprep.subr.mxu0 0.0
    %2536 = vmatpush2.msra.mxu0 0.0
    %2537 = vmatprep.subr.mxu0 0.0
    %2538 = vmatpush2.msra.mxu0 0.0
    %2539 = vmatprep.subr.mxu0 0.0
    %2540 = vmatpush2.msra.mxu0 0.0
    %2541 = vmatprep.subr.mxu0 0.0
    %2542 = vmatpush2.msra.mxu0 0.0
    %2543 = vmatprep.subr.mxu0 0.0
    %2544 = vmatpush2.msra.mxu0 0.0
    %2545 = vmatprep.subr.mxu0 0.0
    %2546 = vmatpush2.msra.mxu0 0.0
    %2547 = vmatprep.subr.mxu0 0.0
    %2548 = vmatpush2.msra.mxu0 0.0
    %2549 = vmatprep.subr.mxu0 0.0
    %2550 = vmatpush2.msra.mxu0 0.0
    %2551 = vmatprep.subr.mxu0 0.0
    %2552 = vmatpush2.msra.mxu0 0.0
    %2553 = vmatprep.subr.mxu0 0.0
    %2554 = vmatpush2.msra.mxu0 0.0
    %2555 = vmatprep.subr.mxu0 0.0
    %2556 = vmatpush2.msra.mxu0 0.0
    %2557 = vmatprep.subr.mxu0 0.0
    %2558 = vmatpush2.msra.mxu0 0.0
    %2559 = vmatprep.subr.mxu0 0.0
    %2560 = vmatpush2.msra.mxu0 0.0
    %2561 = vmatprep.subr.mxu0 0.0
    %2562 = vmatpush2.msra.mxu0 0.0
    %2563 = vmatprep.subr.mxu0 0.0
    %2564 = vmatpush2.msra.mxu0 0.0
    %2565 = vmatprep.subr.mxu0 0.0
    %2566 = vmatpush2.msra.mxu0 0.0
    %2567 = vmatprep.mubr.f32.mxu0 0.0
    %2568 = vmatmul.mubr.f32.gmra.mxu0 %v2501
    %v2569 = vpop.f32.mrf.mxu0
    %v2570 = vadd.f32 %v2497, %v2569
    %v2571 = vpop.f32.mrf.mxu0
    %2572 = vdwg.mxu0
    %v2573 = vadd.f32 %v2570, %v441
    %v2574 = vxor.u32 %v2573, 2147483648
    %v2575 = vmul.f32 %v2574, 1.442695
    %v2576 = vpow.pop %v2575
    %v2577 = vadd.f32 %v2576, 1.0
    %v2578 = vrcp.pop %v2577
    %v2579 = vmul.f32 1.0, %v2578
    %v2580 = vtanh.pop %v2573
    %v2581 = vmul.f32 %v2579, %v2237
    %2583 = vrot.lane.b32.xlu0 %v2580, 64
    %v2584 = vpop.permute.xlu0 %2583
    %v2586 = vmul.f32 %v2579, %v2584
    %2588 = vrot.lane.b32.xlu0 %v2586, 32
    %v2589 = vpop.permute.xlu0 %2588
    %v2591 = vadd.f32 %v2581, %v2589
    %v2592 = vtanh.pop %v2591
    %2594 = vrot.lane.b32.xlu0 %v2592, 64
    %v2595 = vpop.permute.xlu0 %2594
    %v2597 = vmul.f32 %v2579, %v2595
    %2599 = vrot.lane.b32.xlu0 %v2426, 32
    %v2600 = vpop.permute.xlu0 %2599
    %s2602 = scalar_lea.vmem [#allocation11], 12
    %2603 = vst.msk [vmem:[%s2602] sm:$0x3] %vm472, %v2600
    %2605 = vrot.lane.b32.xlu0 %v2597, 32
    %v2606 = vpop.permute.xlu0 %2605
    %s2608 = scalar_lea.vmem [#allocation12], 2
    %2609 = vst.msk [vmem:[%s2608] sm:$0x3] %vm472, %v2606
    %v2610 = vld [vmem:[%s292] sm:$0x3]
    %v2611 = vsel %vm113, %v2600, 0
    %2613 = vmatprep.subr.mxu0 0.0
    %2614 = vmatpush1.msra.mxu0 0.0
    %2615 = vmatprep.subr.mxu0 0.0
    %2616 = vmatpush1.msra.mxu0 0.0
    %2617 = vmatprep.subr.mxu0 0.0
    %2618 = vmatpush1.msra.mxu0 0.0
    %2619 = vmatprep.subr.mxu0 0.0
    %2620 = vmatpush1.msra.mxu0 0.0
    %2621 = vmatprep.subr.mxu0 0.0
    %2622 = vmatpush1.msra.mxu0 0.0
    %2623 = vmatprep.subr.mxu0 0.0
    %2624 = vmatpush1.msra.mxu0 0.0
    %2625 = vmatprep.subr.mxu0 0.0
    %2626 = vmatpush1.msra.mxu0 0.0
    %2627 = vmatprep.subr.mxu0 0.0
    %2628 = vmatpush1.msra.mxu0 0.0
    %2629 = vmatprep.subr.mxu0 0.0
    %2630 = vmatpush1.msra.mxu0 0.0
    %2631 = vmatprep.subr.mxu0 0.0
    %2632 = vmatpush1.msra.mxu0 0.0
    %2633 = vmatprep.subr.mxu0 0.0
    %2634 = vmatpush1.msra.mxu0 0.0
    %2635 = vmatprep.subr.mxu0 0.0
    %2636 = vmatpush1.msra.mxu0 0.0
    %2637 = vmatprep.subr.mxu0 0.0
    %2638 = vmatpush1.msra.mxu0 %v103
    %2639 = vmatprep.subr.mxu0 0.0
    %2640 = vmatpush1.msra.mxu0 %v102
    %2641 = vmatprep.subr.mxu0 0.0
    %2642 = vmatpush1.msra.mxu0 %v101
    %2643 = vmatprep.subr.mxu0 0.0
    %2644 = vmatpush1.msra.mxu0 %v100
    %2645 = vmatprep.subr.mxu0 0.0
    %2646 = vmatpush2.msra.mxu0 0.0
    %2647 = vmatprep.subr.mxu0 0.0
    %2648 = vmatpush2.msra.mxu0 0.0
    %2649 = vmatprep.subr.mxu0 0.0
    %2650 = vmatpush2.msra.mxu0 0.0
    %2651 = vmatprep.subr.mxu0 0.0
    %2652 = vmatpush2.msra.mxu0 0.0
    %2653 = vmatprep.subr.mxu0 0.0
    %2654 = vmatpush2.msra.mxu0 0.0
    %2655 = vmatprep.subr.mxu0 0.0
    %2656 = vmatpush2.msra.mxu0 0.0
    %2657 = vmatprep.subr.mxu0 0.0
    %2658 = vmatpush2.msra.mxu0 0.0
    %2659 = vmatprep.subr.mxu0 0.0
    %2660 = vmatpush2.msra.mxu0 0.0
    %2661 = vmatprep.subr.mxu0 0.0
    %2662 = vmatpush2.msra.mxu0 0.0
    %2663 = vmatprep.subr.mxu0 0.0
    %2664 = vmatpush2.msra.mxu0 0.0
    %2665 = vmatprep.subr.mxu0 0.0
    %2666 = vmatpush2.msra.mxu0 0.0
    %2667 = vmatprep.subr.mxu0 0.0
    %2668 = vmatpush2.msra.mxu0 0.0
    %2669 = vmatprep.subr.mxu0 0.0
    %2670 = vmatpush2.msra.mxu0 0.0
    %2671 = vmatprep.subr.mxu0 0.0
    %2672 = vmatpush2.msra.mxu0 0.0
    %2673 = vmatprep.subr.mxu0 0.0
    %2674 = vmatpush2.msra.mxu0 0.0
    %2675 = vmatprep.subr.mxu0 0.0
    %2676 = vmatpush2.msra.mxu0 0.0
    %2677 = vmatprep.mubr.f32.mxu0 0.0
    %2678 = vmatmul.mubr.f32.gmra.mxu0 %v2611
    %v2679 = vpop.f32.mrf.mxu0
    %v2680 = vadd.f32 0.0, %v2679
    %v2681 = vpop.f32.mrf.mxu0
    %2682 = vdwg.mxu0
    %v2684 = vsel %vm187, %v2610, 0
    %2686 = vmatprep.subr.mxu0 0.0
    %2687 = vmatpush1.msra.mxu0 0.0
    %2688 = vmatprep.subr.mxu0 0.0
    %2689 = vmatpush1.msra.mxu0 0.0
    %2690 = vmatprep.subr.mxu0 0.0
    %2691 = vmatpush1.msra.mxu0 0.0
    %2692 = vmatprep.subr.mxu0 0.0
    %2693 = vmatpush1.msra.mxu0 0.0
    %2694 = vmatprep.subr.mxu0 0.0
    %2695 = vmatpush1.msra.mxu0 0.0
    %2696 = vmatprep.subr.mxu0 0.0
    %2697 = vmatpush1.msra.mxu0 0.0
    %2698 = vmatprep.subr.mxu0 0.0
    %2699 = vmatpush1.msra.mxu0 0.0
    %2700 = vmatprep.subr.mxu0 0.0
    %2701 = vmatpush1.msra.mxu0 0.0
    %2702 = vmatprep.subr.mxu0 0.0
    %2703 = vmatpush1.msra.mxu0 0.0
    %2704 = vmatprep.subr.mxu0 0.0
    %2705 = vmatpush1.msra.mxu0 0.0
    %2706 = vmatprep.subr.mxu0 0.0
    %2707 = vmatpush1.msra.mxu0 0.0
    %2708 = vmatprep.subr.mxu0 0.0
    %2709 = vmatpush1.msra.mxu0 0.0
    %2710 = vmatprep.subr.mxu0 0.0
    %2711 = vmatpush1.msra.mxu0 0.0
    %2712 = vmatprep.subr.mxu0 0.0
    %2713 = vmatpush1.msra.mxu0 0.0
    %2714 = vmatprep.subr.mxu0 0.0
    %2715 = vmatpush1.msra.mxu0 %v99
    %2716 = vmatprep.subr.mxu0 0.0
    %2717 = vmatpush1.msra.mxu0 %v98
    %2718 = vmatprep.subr.mxu0 0.0
    %2719 = vmatpush2.msra.mxu0 0.0
    %2720 = vmatprep.subr.mxu0 0.0
    %2721 = vmatpush2.msra.mxu0 0.0
    %2722 = vmatprep.subr.mxu0 0.0
    %2723 = vmatpush2.msra.mxu0 0.0
    %2724 = vmatprep.subr.mxu0 0.0
    %2725 = vmatpush2.msra.mxu0 0.0
    %2726 = vmatprep.subr.mxu0 0.0
    %2727 = vmatpush2.msra.mxu0 0.0
    %2728 = vmatprep.subr.mxu0 0.0
    %2729 = vmatpush2.msra.mxu0 0.0
    %2730 = vmatprep.subr.mxu0 0.0
    %2731 = vmatpush2.msra.mxu0 0.0
    %2732 = vmatprep.subr.mxu0 0.0
    %2733 = vmatpush2.msra.mxu0 0.0
    %2734 = vmatprep.subr.mxu0 0.0
    %2735 = vmatpush2.msra.mxu0 0.0
    %2736 = vmatprep.subr.mxu0 0.0
    %2737 = vmatpush2.msra.mxu0 0.0
    %2738 = vmatprep.subr.mxu0 0.0
    %2739 = vmatpush2.msra.mxu0 0.0
    %2740 = vmatprep.subr.mxu0 0.0
    %2741 = vmatpush2.msra.mxu0 0.0
    %2742 = vmatprep.subr.mxu0 0.0
    %2743 = vmatpush2.msra.mxu0 0.0
    %2744 = vmatprep.subr.mxu0 0.0
    %2745 = vmatpush2.msra.mxu0 0.0
    %2746 = vmatprep.subr.mxu0 0.0
    %2747 = vmatpush2.msra.mxu0 0.0
    %2748 = vmatprep.subr.mxu0 0.0
    %2749 = vmatpush2.msra.mxu0 0.0
    %2750 = vmatprep.mubr.f32.mxu0 0.0
    %2751 = vmatmul.mubr.f32.gmra.mxu0 %v2684
    %v2752 = vpop.f32.mrf.mxu0
    %v2753 = vadd.f32 %v2680, %v2752
    %v2754 = vpop.f32.mrf.mxu0
    %2755 = vdwg.mxu0
    %v2756 = vadd.f32 %v2753, %v265
    %v2757 = vxor.u32 %v2756, 2147483648
    %v2758 = vmul.f32 %v2757, 1.442695
    %v2759 = vpow.pop %v2758
    %v2760 = vadd.f32 %v2759, 1.0
    %v2761 = vrcp.pop %v2760
    %v2762 = vmul.f32 1.0, %v2761
    %v2763 = vtanh.pop %v2756
    %v2764 = vmul.f32 %v2762, %v2420
    %2766 = vrot.lane.b32.xlu0 %v2763, 64
    %v2767 = vpop.permute.xlu0 %2766
    %v2769 = vmul.f32 %v2762, %v2767
    %2771 = vrot.lane.b32.xlu0 %v2769, 32
    %v2772 = vpop.permute.xlu0 %2771
    %v2774 = vadd.f32 %v2764, %v2772
    %v2775 = vtanh.pop %v2774
    %2777 = vrot.lane.b32.xlu0 %v2775, 64
    %v2778 = vpop.permute.xlu0 %2777
    %v2780 = vmul.f32 %v2762, %v2778
    %v2781 = vld [vmem:[#allocation2] sm:$0x3]
    %v2782 = vsel %vm113, %v2606, 0
    %2784 = vmatprep.subr.mxu0 0.0
    %2785 = vmatpush1.msra.mxu0 0.0
    %2786 = vmatprep.subr.mxu0 0.0
    %2787 = vmatpush1.msra.mxu0 0.0
    %2788 = vmatprep.subr.mxu0 0.0
    %2789 = vmatpush1.msra.mxu0 0.0
    %2790 = vmatprep.subr.mxu0 0.0
    %2791 = vmatpush1.msra.mxu0 0.0
    %2792 = vmatprep.subr.mxu0 0.0
    %2793 = vmatpush1.msra.mxu0 0.0
    %2794 = vmatprep.subr.mxu0 0.0
    %2795 = vmatpush1.msra.mxu0 0.0
    %2796 = vmatprep.subr.mxu0 0.0
    %2797 = vmatpush1.msra.mxu0 0.0
    %2798 = vmatprep.subr.mxu0 0.0
    %2799 = vmatpush1.msra.mxu0 0.0
    %2800 = vmatprep.subr.mxu0 0.0
    %2801 = vmatpush1.msra.mxu0 0.0
    %2802 = vmatprep.subr.mxu0 0.0
    %2803 = vmatpush1.msra.mxu0 0.0
    %2804 = vmatprep.subr.mxu0 0.0
    %2805 = vmatpush1.msra.mxu0 0.0
    %2806 = vmatprep.subr.mxu0 0.0
    %2807 = vmatpush1.msra.mxu0 0.0
    %2808 = vmatprep.subr.mxu0 0.0
    %2809 = vmatpush1.msra.mxu0 %v110
    %2810 = vmatprep.subr.mxu0 0.0
    %2811 = vmatpush1.msra.mxu0 %v109
    %2812 = vmatprep.subr.mxu0 0.0
    %2813 = vmatpush1.msra.mxu0 %v108
    %2814 = vmatprep.subr.mxu0 0.0
    %2815 = vmatpush1.msra.mxu0 %v107
    %2816 = vmatprep.subr.mxu0 0.0
    %2817 = vmatpush2.msra.mxu0 0.0
    %2818 = vmatprep.subr.mxu0 0.0
    %2819 = vmatpush2.msra.mxu0 0.0
    %2820 = vmatprep.subr.mxu0 0.0
    %2821 = vmatpush2.msra.mxu0 0.0
    %2822 = vmatprep.subr.mxu0 0.0
    %2823 = vmatpush2.msra.mxu0 0.0
    %2824 = vmatprep.subr.mxu0 0.0
    %2825 = vmatpush2.msra.mxu0 0.0
    %2826 = vmatprep.subr.mxu0 0.0
    %2827 = vmatpush2.msra.mxu0 0.0
    %2828 = vmatprep.subr.mxu0 0.0
    %2829 = vmatpush2.msra.mxu0 0.0
    %2830 = vmatprep.subr.mxu0 0.0
    %2831 = vmatpush2.msra.mxu0 0.0
    %2832 = vmatprep.subr.mxu0 0.0
    %2833 = vmatpush2.msra.mxu0 0.0
    %2834 = vmatprep.subr.mxu0 0.0
    %2835 = vmatpush2.msra.mxu0 0.0
    %2836 = vmatprep.subr.mxu0 0.0
    %2837 = vmatpush2.msra.mxu0 0.0
    %2838 = vmatprep.subr.mxu0 0.0
    %2839 = vmatpush2.msra.mxu0 0.0
    %2840 = vmatprep.subr.mxu0 0.0
    %2841 = vmatpush2.msra.mxu0 0.0
    %2842 = vmatprep.subr.mxu0 0.0
    %2843 = vmatpush2.msra.mxu0 0.0
    %2844 = vmatprep.subr.mxu0 0.0
    %2845 = vmatpush2.msra.mxu0 0.0
    %2846 = vmatprep.subr.mxu0 0.0
    %2847 = vmatpush2.msra.mxu0 0.0
    %2848 = vmatprep.mubr.f32.mxu0 0.0
    %2849 = vmatmul.mubr.f32.gmra.mxu0 %v2782
    %v2850 = vpop.f32.mrf.mxu0
    %v2851 = vadd.f32 0.0, %v2850
    %v2852 = vpop.f32.mrf.mxu0
    %2853 = vdwg.mxu0
    %v2855 = vsel %vm187, %v2781, 0
    %2857 = vmatprep.subr.mxu0 0.0
    %2858 = vmatpush1.msra.mxu0 0.0
    %2859 = vmatprep.subr.mxu0 0.0
    %2860 = vmatpush1.msra.mxu0 0.0
    %2861 = vmatprep.subr.mxu0 0.0
    %2862 = vmatpush1.msra.mxu0 0.0
    %2863 = vmatprep.subr.mxu0 0.0
    %2864 = vmatpush1.msra.mxu0 0.0
    %2865 = vmatprep.subr.mxu0 0.0
    %2866 = vmatpush1.msra.mxu0 0.0
    %2867 = vmatprep.subr.mxu0 0.0
    %2868 = vmatpush1.msra.mxu0 0.0
    %2869 = vmatprep.subr.mxu0 0.0
    %2870 = vmatpush1.msra.mxu0 0.0
    %2871 = vmatprep.subr.mxu0 0.0
    %2872 = vmatpush1.msra.mxu0 0.0
    %2873 = vmatprep.subr.mxu0 0.0
    %2874 = vmatpush1.msra.mxu0 0.0
    %2875 = vmatprep.subr.mxu0 0.0
    %2876 = vmatpush1.msra.mxu0 0.0
    %2877 = vmatprep.subr.mxu0 0.0
    %2878 = vmatpush1.msra.mxu0 0.0
    %2879 = vmatprep.subr.mxu0 0.0
    %2880 = vmatpush1.msra.mxu0 0.0
    %2881 = vmatprep.subr.mxu0 0.0
    %2882 = vmatpush1.msra.mxu0 0.0
    %2883 = vmatprep.subr.mxu0 0.0
    %2884 = vmatpush1.msra.mxu0 0.0
    %2885 = vmatprep.subr.mxu0 0.0
    %2886 = vmatpush1.msra.mxu0 %v106
    %2887 = vmatprep.subr.mxu0 0.0
    %2888 = vmatpush1.msra.mxu0 %v105
    %2889 = vmatprep.subr.mxu0 0.0
    %2890 = vmatpush2.msra.mxu0 0.0
    %2891 = vmatprep.subr.mxu0 0.0
    %2892 = vmatpush2.msra.mxu0 0.0
    %2893 = vmatprep.subr.mxu0 0.0
    %2894 = vmatpush2.msra.mxu0 0.0
    %2895 = vmatprep.subr.mxu0 0.0
    %2896 = vmatpush2.msra.mxu0 0.0
    %2897 = vmatprep.subr.mxu0 0.0
    %2898 = vmatpush2.msra.mxu0 0.0
    %2899 = vmatprep.subr.mxu0 0.0
    %2900 = vmatpush2.msra.mxu0 0.0
    %2901 = vmatprep.subr.mxu0 0.0
    %2902 = vmatpush2.msra.mxu0 0.0
    %2903 = vmatprep.subr.mxu0 0.0
    %2904 = vmatpush2.msra.mxu0 0.0
    %2905 = vmatprep.subr.mxu0 0.0
    %2906 = vmatpush2.msra.mxu0 0.0
    %2907 = vmatprep.subr.mxu0 0.0
    %2908 = vmatpush2.msra.mxu0 0.0
    %2909 = vmatprep.subr.mxu0 0.0
    %2910 = vmatpush2.msra.mxu0 0.0
    %2911 = vmatprep.subr.mxu0 0.0
    %2912 = vmatpush2.msra.mxu0 0.0
    %2913 = vmatprep.subr.mxu0 0.0
    %2914 = vmatpush2.msra.mxu0 0.0
    %2915 = vmatprep.subr.mxu0 0.0
    %2916 = vmatpush2.msra.mxu0 0.0
    %2917 = vmatprep.subr.mxu0 0.0
    %2918 = vmatpush2.msra.mxu0 0.0
    %2919 = vmatprep.subr.mxu0 0.0
    %2920 = vmatpush2.msra.mxu0 0.0
    %2921 = vmatprep.mubr.f32.mxu0 0.0
    %2922 = vmatmul.mubr.f32.gmra.mxu0 %v2855
    %v2923 = vpop.f32.mrf.mxu0
    %v2924 = vadd.f32 %v2851, %v2923
    %v2925 = vpop.f32.mrf.mxu0
    %2926 = vdwg.mxu0
    %v2927 = vadd.f32 %v2924, %v441
    %v2928 = vxor.u32 %v2927, 2147483648
    %v2929 = vmul.f32 %v2928, 1.442695
    %v2930 = vpow.pop %v2929
    %v2931 = vadd.f32 %v2930, 1.0
    %v2932 = vrcp.pop %v2931
    %v2933 = vmul.f32 1.0, %v2932
    %v2934 = vtanh.pop %v2927
    %v2935 = vmul.f32 %v2933, %v2591
    %2937 = vrot.lane.b32.xlu0 %v2934, 64
    %v2938 = vpop.permute.xlu0 %2937
    %v2940 = vmul.f32 %v2933, %v2938
    %2942 = vrot.lane.b32.xlu0 %v2940, 32
    %v2943 = vpop.permute.xlu0 %2942
    %v2945 = vadd.f32 %v2935, %v2943
    %v2946 = vtanh.pop %v2945
    %2948 = vrot.lane.b32.xlu0 %v2946, 64
    %v2949 = vpop.permute.xlu0 %2948
    %v2951 = vmul.f32 %v2933, %v2949
    %2953 = vrot.lane.b32.xlu0 %v2780, 32
    %v2954 = vpop.permute.xlu0 %2953
    %s2956 = scalar_lea.vmem [#allocation11], 14
    %2957 = vst.msk [vmem:[%s2956] sm:$0x3] %vm472, %v2954
    %2959 = vrot.lane.b32.xlu0 %v2951, 32
    %v2960 = vpop.permute.xlu0 %2959
    %2962 = vst.msk [vmem:[#allocation12] sm:$0x3] %vm472, %v2960
    // Predicated region
    $region50: #{tpu_custom_call.1} parent=1 // pred_check
      _
    $region51: #{tpu_custom_call.1} parent=1 // pred_check_branch
      %2964 = sbr.rel (0) target = $region53
    $region52: #{tpu_custom_call.1} parent=1 // pred_region
      %s2966 = ssub.s32 256, 256
      %2967 = vsyncadd [#allocation4], %s2966
      %s2968 = sshll.u32 [#allocation11], 4
      %s2969 = int_to_ptr.vmem [resolvable:$true] %s2968
      %2974 = dma.vmem_to_hbm [thread:$0]  %s2969, 256, %s7, [#allocation4], 32, 32, 2
    $region53: #{tpu_custom_call.1} parent=1 // pred_fallthru
      _
    // Predicated region
    $region54: #{tpu_custom_call.1} parent=1 // pred_check
      _
    $region55: #{tpu_custom_call.1} parent=1 // pred_check_branch
      %2976 = sbr.rel (0) target = $region57
    $region56: #{tpu_custom_call.1} parent=1 // pred_region
      %s2978 = ssub.s32 256, 256
      %2979 = vsyncadd [#allocation13], %s2978
      %s2980 = sshll.u32 [#allocation12], 4
      %s2981 = int_to_ptr.vmem [resolvable:$true] %s2980
      %2986 = dma.vmem_to_hbm [thread:$0]  %s2981, 256, %s8, [#allocation13], 32, 32, 2
    $region57: #{tpu_custom_call.1} parent=1 // pred_fallthru
      _
    // Predicated region
    $region58: #{tpu_custom_call.1} parent=1 // pred_check
      _
    $region59: #{tpu_custom_call.1} parent=1 // pred_check_branch
      %2988 = sbr.rel (0) target = $region61
    $region60: #{tpu_custom_call.1} parent=1 // pred_region
      %2989 = dma.done [#allocation4], 256
    $region61: #{tpu_custom_call.1} parent=1 // pred_fallthru
      _
    // Predicated region
    $region62: #{tpu_custom_call.1} parent=1 // pred_check
      _
    $region63: #{tpu_custom_call.1} parent=1 // pred_check_branch
      %2991 = sbr.rel (0) target = $region65
    $region64: #{tpu_custom_call.1} parent=1 // pred_region
      %2992 = dma.done [#allocation13], 256
    $region65: #{tpu_custom_call.1} parent=1 // pred_fallthru
      _
    %2993 = vsyncpa [#allocation3], 1
    %2994 = vsyncpa [#allocation6], 1
    %2995 = vsyncpa [#allocation9], 1
    %2996 = vsyncpa [#allocation4], 1
    %2997 = vsyncpa [#allocation13], 1

</llo_original>
